<compile_context>
chip_gen: v5e
topology: v5e:2x2
jax: 0.10.0
libtpu: 0.0.40
codegen_flags: <defaults>
</compile_context>

<pallas_src>
import numpy as np

import jax
import jax.numpy as jnp
from jax import lax
from jax.experimental import pallas as pl
from jax.experimental.pallas import tpu as pltpu


# ----------------------------- helpers -----------------------------


def _round_up(x, m):
    return ((x + m - 1) // m) * m


def _pad_axis(a, axis, target):
    pad = target - a.shape[axis]
    if pad == 0:
        return a
    widths = [(0, 0)] * a.ndim
    widths[axis] = (0, pad)
    return jnp.pad(a, widths)


def fold_bn(gamma, beta, mean, var, eps=1e-5):
    scale = gamma / jnp.sqrt(var + eps)
    bias = beta - mean * scale
    return scale.reshape(1, -1), bias.reshape(1, -1)


def bilinear_matrix(out_size, in_size):
    """F.interpolate(mode='bilinear', align_corners=False) as an (out, in) matrix."""
    # TODO(synk): older checkpoints sometimes used align_corners=True; verify.
    if out_size == in_size:
        return jnp.eye(out_size, dtype=jnp.float32)
    scale = in_size / out_size
    dst = np.arange(out_size, dtype=np.float64)
    src = np.clip((dst + 0.5) * scale - 0.5, 0.0, in_size - 1)
    i0 = np.floor(src).astype(np.int64)
    i1 = np.minimum(i0 + 1, in_size - 1)
    w1 = src - i0
    w0 = 1.0 - w1
    A = np.zeros((out_size, in_size), dtype=np.float64)
    A[np.arange(out_size), i0] += w0
    A[np.arange(out_size), i1] += w1
    return jnp.asarray(A, dtype=jnp.float32)


def _vmem_limit_bytes():
    """Generation-aware VMEM budget: ~3/4 of physical (48 MiB v7x, 96 MiB v5e/v6e)."""
    cap = 64 * 1024 * 1024
    try:
        cap = getattr(pltpu.get_tpu_info(), "vmem_capacity_bytes", cap)
    except Exception:
        pass
    return int(min(cap * 3 // 4, 112 * 1024 * 1024))


# ----------------------------- Kernel A: fused conv stack -----------------------------


def _c5_conv_stack_kernel(x_ref, w_ref, sc_ref, bi_ref, wl_ref, out_ref,
                          pad_ref, acc_ref):
    """Grid = (N, 4). Per (image, layer): 3x3 dilated conv -> folded BN -> ReLU, with the
    activation resident in the halo-padded VMEM scratch; last layer also runs conv_last."""
    l = pl.program_id(1)
    H, W = out_ref.shape[1], out_ref.shape[2]
    Cp = pad_ref.shape[-1]
    Kp = out_ref.shape[-1]
    HW = H * W

    @pl.when(l == 0)
    def _init():
        # Zero only the 2-wide halo ring, once per image; the interior is always
        # (over)written at the fixed (2, 2) offset, so the ring stays valid for every
        # layer (d=2 reads the full ring, d=1 only the inner 1-ring).
        zrow = jnp.zeros((2, W + 4, Cp), pad_ref.dtype)
        zcol = jnp.zeros((H + 4, 2, Cp), pad_ref.dtype)
        pad_ref[0:2, :, :] = zrow
        pad_ref[H + 2:H + 4, :, :] = zrow
        pad_ref[:, 0:2, :] = zcol
        pad_ref[:, W + 2:W + 4, :] = zcol
        pad_ref[2:2 + H, 2:2 + W, :] = x_ref[0]

    def conv_bn_relu(d):
        # 9 taps accumulated directly into the f32 accumulator (no im2col slab).
        base = 2 - d
        for kh in range(3):
            for kw in range(3):
                t = kh * 3 + kw
                tap = pad_ref[base + kh * d:base + kh * d + H,
                              base + kw * d:base + kw * d + W, :].reshape(HW, Cp)
                contrib = jnp.dot(tap, w_ref[0, t],
                                  preferred_element_type=jnp.float32)
                if t == 0:
                    acc_ref[...] = contrib
                else:
                    acc_ref[...] += contrib
        # folded BatchNorm (inference) + ReLU in f32, written back into the interior
        y = jnp.maximum(acc_ref[...] * sc_ref[0] + bi_ref[0], 0.0)
        pad_ref[2:2 + H, 2:2 + W, :] = y.reshape(H, W, Cp).astype(pad_ref.dtype)

    # dilation schedule of the module: conv1/conv2 -> d=2, conv3/conv4 -> d=1
    @pl.when(l < 2)
    def _():
        conv_bn_relu(2)

    @pl.when(l >= 2)
    def _():
        conv_bn_relu(1)

    @pl.when(l == pl.num_programs(1) - 1)
    def _final():
        # conv_last (1x1, bias=False): lane-dense (H*W, Cp) @ (Cp, Kp) -> bf16 logits
        act = pad_ref[2:2 + H, 2:2 + W, :].reshape(HW, Cp)
        logits = jnp.dot(act, wl_ref[...], preferred_element_type=jnp.float32)
        out_ref[...] = logits.reshape(1, H, W, Kp).astype(out_ref.dtype)


def conv_stack(x, conv_ws, scales, biases, w_last, num_class):
    N, H, W, Cin = x.shape
    Cp = _round_up(Cin, 128)
    Kp = _round_up(num_class, 128)
    L = 4

    # cast to bf16 at the pallas_call boundary; pad channels to lane-dense multiples of 128
    xb = _pad_axis(x, 3, Cp).astype(jnp.bfloat16)
    # (L, 9, Cp, Cp): per-layer, per-tap (Cin, Cout) matrices, streamed per layer by the grid
    w_stack = jnp.stack([_pad_axis(_pad_axis(w, 2, Cp), 3, Cp) for w in conv_ws]
                        ).reshape(L, 9, Cp, Cp).astype(jnp.bfloat16)
    sc_stack = jnp.stack([_pad_axis(s.reshape(1, -1), 1, Cp) for s in scales]
                         ).astype(jnp.float32)                       # (L, 1, Cp)
    bi_stack = jnp.stack([_pad_axis(b.reshape(1, -1), 1, Cp) for b in biases]
                         ).astype(jnp.float32)                       # (L, 1, Cp)
    wl = _pad_axis(_pad_axis(w_last, 0, Cp), 1, Kp).astype(jnp.bfloat16)   # (Cp, Kp)

    # TODO(synk): at fc_dim=4096 the (1, 9, Cp, Cp) weight block needs an extra K-tiling
    # grid axis (or emit_pipeline) so only a slice of the 302 MB layer weight is resident.
    return pl.pallas_call(
        _c5_conv_stack_kernel,
        out_shape=jax.ShapeDtypeStruct((N, H, W, Kp), jnp.bfloat16),
        grid=(N, L),
        in_specs=[
            pl.BlockSpec((1, H, W, Cp), lambda n, l: (n, 0, 0, 0)),
            pl.BlockSpec((1, 9, Cp, Cp), lambda n, l: (l, 0, 0, 0)),   # stream per layer
            pl.BlockSpec((1, 1, Cp), lambda n, l: (l, 0, 0)),
            pl.BlockSpec((1, 1, Cp), lambda n, l: (l, 0, 0)),
            pl.BlockSpec((Cp, Kp), lambda n, l: (0, 0)),
        ],
        out_specs=pl.BlockSpec((1, H, W, Kp), lambda n, l: (n, 0, 0, 0)),
        scratch_shapes=[
            pltpu.VMEM((H + 4, W + 4, Cp), jnp.bfloat16),   # halo-padded resident activation
            pltpu.VMEM((H * W, Cp), jnp.float32),           # f32 conv accumulator
        ],
        compiler_params=pltpu.CompilerParams(
            dimension_semantics=("parallel", "arbitrary"),
            vmem_limit_bytes=_vmem_limit_bytes()),
    )(xb, w_stack, sc_stack, bi_stack, wl)


# ----------------------- Kernel B: separable resize + log_softmax -----------------------


def _resize_logsoftmax_kernel(x_ref, ah_ref, awT_ref, out_ref):
    """Per (image, Hout-tile): bf16 separable bilinear resize (f32 accumulation) fused
    with f32 log_softmax over the class dim; emits NCHW f32."""
    C, Hin, Win = x_ref.shape[1:]
    THO, Wout = out_ref.shape[2], out_ref.shape[3]

    # W-resize: class/H folded into M -> ONE lane-dense (C*Hin, Win) @ (Win, Wout) matmul
    u = jnp.dot(x_ref[0].reshape(C * Hin, Win), awT_ref[...],
                preferred_element_type=jnp.float32)
    u = u.reshape(C, Hin, Wout).astype(jnp.bfloat16)

    # H-resize for this Hout tile: batched over classes, contracting Hin.  The broadcast
    # of the (THO, Hin) bf16 tile over C is tiny thanks to Hout tiling.
    ah_b = jnp.broadcast_to(ah_ref[...], (C, THO, Hin))
    z = lax.dot_general(ah_b, u, (((2,), (1,)), ((0,), (0,))),
                        preferred_element_type=jnp.float32)           # (C, THO, Wout)

    # log_softmax over the class dim (tile-local reduction), in f32
    mx = jnp.max(z, axis=0, keepdims=True)
    s = z - mx
    lse = jnp.log(jnp.sum(jnp.exp(s), axis=0, keepdims=True))
    out_ref[...] = (s - lse).reshape(1, C, THO, Wout)


def _pick_row_tile(hout, cap=32):
    """Largest multiple-of-8 divisor of hout that is <= cap (or hout itself if small)."""
    if hout <= cap:
        return hout
    for t in range(cap, 7, -8):
        if hout % t == 0:
            return t
    return hout   # fall back to untiled


def upsample_logsoftmax(t_nchw, seg_size):
    N, C, Hin, Win = t_nchw.shape
    Hout, Wout = seg_size
    tho = _pick_row_tile(Hout)
    Ah = bilinear_matrix(Hout, Hin).astype(jnp.bfloat16)               # (Hout, Hin)
    AwT = bilinear_matrix(Wout, Win).T.astype(jnp.bfloat16)            # (Win, Wout)
    return pl.pallas_call(
        _resize_logsoftmax_kernel,
        out_shape=jax.ShapeDtypeStruct((N, C, Hout, Wout), jnp.float32),
        grid=(N, Hout // tho),
        in_specs=[
            pl.BlockSpec((1, C, Hin, Win), lambda n, ho: (n, 0, 0, 0)),
            pl.BlockSpec((tho, Hin), lambda n, ho: (ho, 0)),
            pl.BlockSpec((Win, Wout), lambda n, ho: (0, 0)),
        ],
        out_specs=pl.BlockSpec((1, C, tho, Wout), lambda n, ho: (n, 0, ho, 0)),
        compiler_params=pltpu.CompilerParams(
            dimension_semantics=("parallel", "parallel"),
            vmem_limit_bytes=_vmem_limit_bytes()),
    )(t_nchw.astype(jnp.bfloat16), Ah, AwT)


# ----------------------------- full forward -----------------------------


def c5bilinear_forward(x, params, seg_size, num_class):
    """x: (N, H, W, fc_dim) NHWC f32.  Returns (N, num_class, Hout, Wout) NCHW log-probs."""
    logits = conv_stack(
        x,
        [params["w1"], params["w2"], params["w3"], params["w4"]],
        [params["s1"], params["s2"], params["s3"], params["s4"]],
        [params["b1"], params["b2"], params["b3"], params["b4"]],
        params["w_last"], num_class)                     # (N, H, W, Kp) bf16
    # drop padded classes + NHWC -> NCHW (tiny bf16 tensor, layout plumbing outside kernels)
    t = jnp.transpose(logits[..., :num_class], (0, 3, 1, 2))
    return upsample_logsoftmax(t, seg_size)


# ----------------------------- pure-JAX reference -----------------------------


def reference_forward(x, params, seg_size, num_class):
    """Same math (bf16 matmul inputs, f32 accumulation, f32 BN/ReLU/log-softmax) via XLA."""
    def conv_bn_relu(h, w, s, b, d):
        y = lax.conv_general_dilated(
            h.astype(jnp.bfloat16), w.astype(jnp.bfloat16),
            window_strides=(1, 1), padding=((d, d), (d, d)), rhs_dilation=(d, d),
            dimension_numbers=("NHWC", "HWIO", "NHWC"),
            preferred_element_type=jnp.float32)
        return jnp.maximum(y * s.reshape(1, 1, 1, -1) + b.reshape(1, 1, 1, -1), 0.0)

    h = x
    h = conv_bn_relu(h, params["w1"], params["s1"], params["b1"], 2)
    h = conv_bn_relu(h, params["w2"], params["s2"], params["b2"], 2)
    h = conv_bn_relu(h, params["w3"], params["s3"], params["b3"], 1)
    h = conv_bn_relu(h, params["w4"], params["s4"], params["b4"], 1)
    logits = jnp.einsum("nhwc,ck->nhwk", h.astype(jnp.bfloat16),
                        params["w_last"].astype(jnp.bfloat16),
                        preferred_element_type=jnp.float32).astype(jnp.bfloat16)
    Hout, Wout = seg_size
    Ah = bilinear_matrix(Hout, logits.shape[1]).astype(jnp.bfloat16)
    Aw = bilinear_matrix(Wout, logits.shape[2]).astype(jnp.bfloat16)
    t = jnp.transpose(logits, (0, 3, 1, 2))                           # (N, K, Hin, Win)
    u = jnp.einsum("nkhw,vw->nkhv", t, Aw,
                   preferred_element_type=jnp.float32).astype(jnp.bfloat16)
    z = jnp.einsum("oh,nkhv->nkov", Ah, u, preferred_element_type=jnp.float32)
    return jax.nn.log_softmax(z, axis=1)                              # NCHW


# ----------------------------- main -----------------------------

if __name__ == "__main__":
    # Small shapes consistent with the module (real defaults: fc_dim=4096, num_class=150,
    # segSize=384).  fc_dim=128 is already lane-dense; num_class=16 gets padded to 128.
    N, H, W = 2, 8, 8
    fc_dim, num_class, seg = 128, 16, 16

    key = jax.random.PRNGKey(0)
    ks = jax.random.split(key, 32)
    x = jax.random.normal(ks[0], (N, H, W, fc_dim), jnp.float32)

    params = {}
    for li in range(1, 5):
        kw_, kg, kb, km, kv = (ks[5 * li], ks[5 * li + 1], ks[5 * li + 2],
                               ks[5 * li + 3], ks[5 * li + 4])
        params[f"w{li}"] = 0.03 * jax.random.normal(kw_, (3, 3, fc_dim, fc_dim), jnp.float32)
        gamma = 0.8 + 0.4 * jax.random.uniform(kg, (fc_dim,), jnp.float32)
        beta = 0.1 * jax.random.normal(kb, (fc_dim,), jnp.float32)
        mean = 0.1 * jax.random.normal(km, (fc_dim,), jnp.float32)
        var = 0.5 + jax.random.uniform(kv, (fc_dim,), jnp.float32)
        params[f"s{li}"], params[f"b{li}"] = fold_bn(gamma, beta, mean, var)
    params["w_last"] = 0.05 * jax.random.normal(ks[30], (fc_dim, num_class), jnp.float32)

    out = c5bilinear_forward(x, params, (seg, seg), num_class)
    out = jax.block_until_ready(out)
    assert out.shape == (N, num_class, seg, seg), out.shape

    ref = jax.block_until_ready(reference_forward(x, params, (seg, seg), num_class))
    if not np.allclose(np.asarray(out), np.asarray(ref), atol=2e-2, rtol=2e-2):
        raise AssertionError("Pallas output does not match JAX reference")

    print("KERNEL_OK")
</pallas_src>

<mosaic_0001>
module attributes {stable_mosaic.version = 11 : i64} {
  func.func @_c5_conv_stack_kernel(%arg0: i32, %arg1: i32, %arg2: memref<1x8x8x128xbf16, #tpu.memory_space<vmem>>, %arg3: memref<1x9x128x128xbf16, #tpu.memory_space<vmem>>, %arg4: memref<1x1x128xf32, #tpu.memory_space<vmem>>, %arg5: memref<1x1x128xf32, #tpu.memory_space<vmem>>, %arg6: memref<128x128xbf16, #tpu.memory_space<vmem>>, %arg7: memref<1x8x8x128xbf16, #tpu.memory_space<vmem>>, %arg8: memref<12x12x128xbf16, #tpu.memory_space<vmem>>, %arg9: memref<64x128xf32, #tpu.memory_space<vmem>>) attributes {dimension_semantics = [#tpu.dimension_semantics<parallel>, #tpu.dimension_semantics<arbitrary>], iteration_bounds = array<i64: 2, 4>, scalar_prefetch = 0 : i64, scratch_operands = 2 : i64, tpu.core_type = #tpu.core_type<tc>, window_params = [{transform_indices = @transform_0, window_bounds = array<i64: 1, 8, 8, 128>}, {transform_indices = @transform_1, window_bounds = array<i64: 1, 9, 128, 128>}, {transform_indices = @transform_2, window_bounds = array<i64: 1, 1, 128>}, {transform_indices = @transform_3, window_bounds = array<i64: 1, 1, 128>}, {pipeline_mode = #tpu.pipeline_mode<synchronous>, transform_indices = @transform_4, window_bounds = array<i64: 128, 128>}, {transform_indices = @transform_5, window_bounds = array<i64: 1, 8, 8, 128>}]} {
    %c0_i32 = arith.constant 0 : i32
    %0 = arith.cmpi eq, %arg1, %c0_i32 : i32
    %1 = arith.extui %0 : i1 to i32
    %c0_i32_0 = arith.constant 0 : i32
    %2 = arith.cmpi ne, %1, %c0_i32_0 : i32
    scf.if %2 {
      %cst = arith.constant 0.000000e+00 : bf16
      %12 = vector.broadcast %cst : bf16 to vector<2x12x128xbf16>
      %cst_5 = arith.constant 0.000000e+00 : bf16
      %13 = vector.broadcast %cst_5 : bf16 to vector<12x2x128xbf16>
      %c0 = arith.constant 0 : index
      %c0_6 = arith.constant 0 : index
      %c0_7 = arith.constant 0 : index
      %14 = vector.load %arg8[%c0, %c0_6, %c0_7] : memref<12x12x128xbf16, #tpu.memory_space<vmem>>, vector<2x12x128xbf16>
      tpu.vector_store %arg8[%c0, %c0_6, %c0_7], %12 {strides = array<i32>} : memref<12x12x128xbf16, #tpu.memory_space<vmem>>, vector<2x12x128xbf16>,
      %c10 = arith.constant 10 : index
      %c0_8 = arith.constant 0 : index
      %c0_9 = arith.constant 0 : index
      %15 = vector.load %arg8[%c10, %c0_8, %c0_9] : memref<12x12x128xbf16, #tpu.memory_space<vmem>>, vector<2x12x128xbf16>
      tpu.vector_store %arg8[%c10, %c0_8, %c0_9], %12 {strides = array<i32>} : memref<12x12x128xbf16, #tpu.memory_space<vmem>>, vector<2x12x128xbf16>,
      %c0_10 = arith.constant 0 : index
      %c0_11 = arith.constant 0 : index
      %c0_12 = arith.constant 0 : index
      %16 = vector.load %arg8[%c0_10, %c0_11, %c0_12] : memref<12x12x128xbf16, #tpu.memory_space<vmem>>, vector<12x2x128xbf16>
      tpu.vector_store %arg8[%c0_10, %c0_11, %c0_12], %13 {strides = array<i32>} : memref<12x12x128xbf16, #tpu.memory_space<vmem>>, vector<12x2x128xbf16>,
      %c0_13 = arith.constant 0 : index
      %c10_14 = arith.constant 10 : index
      %c0_15 = arith.constant 0 : index
      %17 = vector.load %arg8[%c0_13, %c10_14, %c0_15] : memref<12x12x128xbf16, #tpu.memory_space<vmem>>, vector<12x2x128xbf16>
      tpu.vector_store %arg8[%c0_13, %c10_14, %c0_15], %13 {strides = array<i32>} : memref<12x12x128xbf16, #tpu.memory_space<vmem>>, vector<12x2x128xbf16>,
      %c0_16 = arith.constant 0 : index
      %c0_17 = arith.constant 0 : index
      %c0_18 = arith.constant 0 : index
      %c0_19 = arith.constant 0 : index
      %18 = vector.load %arg2[%c0_16, %c0_17, %c0_18, %c0_19] : memref<1x8x8x128xbf16, #tpu.memory_space<vmem>>, vector<1x8x8x128xbf16>
      %19 = vector.shape_cast %18 : vector<1x8x8x128xbf16> to vector<8x8x128xbf16>
      %c2 = arith.constant 2 : index
      %c2_20 = arith.constant 2 : index
      %c0_21 = arith.constant 0 : index
      %20 = vector.load %arg8[%c2, %c2_20, %c0_21] : memref<12x12x128xbf16, #tpu.memory_space<vmem>>, vector<8x8x128xbf16>
      tpu.vector_store %arg8[%c2, %c2_20, %c0_21], %19 {strides = array<i32>} : memref<12x12x128xbf16, #tpu.memory_space<vmem>>, vector<8x8x128xbf16>,
    } else {
    }
    %c2_i32 = arith.constant 2 : i32
    %3 = arith.cmpi slt, %arg1, %c2_i32 : i32
    %4 = arith.extui %3 : i1 to i32
    %c0_i32_1 = arith.constant 0 : i32
    %5 = arith.cmpi ne, %4, %c0_i32_1 : i32
    scf.if %5 {
      %c0 = arith.constant 0 : index
      %c0_5 = arith.constant 0 : index
      %c0_6 = arith.constant 0 : index
      %12 = vector.load %arg8[%c0, %c0_5, %c0_6] : memref<12x12x128xbf16, #tpu.memory_space<vmem>>, vector<8x8x128xbf16>
      %13 = vector.shape_cast %12 : vector<8x8x128xbf16> to vector<64x128xbf16>
      %c0_7 = arith.constant 0 : index
      %c0_8 = arith.constant 0 : index
      %c0_9 = arith.constant 0 : index
      %c0_10 = arith.constant 0 : index
      %14 = vector.load %arg3[%c0_7, %c0_8, %c0_9, %c0_10] : memref<1x9x128x128xbf16, #tpu.memory_space<vmem>>, vector<1x1x128x128xbf16>
      %15 = vector.shape_cast %14 : vector<1x1x128x128xbf16> to vector<128x128xbf16>
      %cst = arith.constant dense<0.000000e+00> : vector<64x128xf32>
      %16 = tpu.matmul %13, %15, %cst {dimension_numbers = #tpu.dot_dimension_numbers<[1], [0], [0], [1], [0, 0, 1, 1], [], []>} : vector<64x128xbf16>, vector<128x128xbf16>, vector<64x128xf32> -> vector<64x128xf32>
      %c0_11 = arith.constant 0 : index
      %c0_12 = arith.constant 0 : index
      %17 = vector.load %arg9[%c0_11, %c0_12] : memref<64x128xf32, #tpu.memory_space<vmem>>, vector<64x128xf32>
      tpu.vector_store %arg9[%c0_11, %c0_12], %16 {strides = array<i32>} : memref<64x128xf32, #tpu.memory_space<vmem>>, vector<64x128xf32>,
      %c0_13 = arith.constant 0 : index
      %c2 = arith.constant 2 : index
      %c0_14 = arith.constant 0 : index
      %18 = vector.load %arg8[%c0_13, %c2, %c0_14] : memref<12x12x128xbf16, #tpu.memory_space<vmem>>, vector<8x8x128xbf16>
      %19 = vector.shape_cast %18 : vector<8x8x128xbf16> to vector<64x128xbf16>
      %c0_15 = arith.constant 0 : index
      %c1 = arith.constant 1 : index
      %c0_16 = arith.constant 0 : index
      %c0_17 = arith.constant 0 : index
      %20 = vector.load %arg3[%c0_15, %c1, %c0_16, %c0_17] : memref<1x9x128x128xbf16, #tpu.memory_space<vmem>>, vector<1x1x128x128xbf16>
      %21 = vector.shape_cast %20 : vector<1x1x128x128xbf16> to vector<128x128xbf16>
      %cst_18 = arith.constant dense<0.000000e+00> : vector<64x128xf32>
      %22 = tpu.matmul %19, %21, %cst_18 {dimension_numbers = #tpu.dot_dimension_numbers<[1], [0], [0], [1], [0, 0, 1, 1], [], []>} : vector<64x128xbf16>, vector<128x128xbf16>, vector<64x128xf32> -> vector<64x128xf32>
      %c0_19 = arith.constant 0 : index
      %c0_20 = arith.constant 0 : index
      %23 = vector.load %arg9[%c0_19, %c0_20] : memref<64x128xf32, #tpu.memory_space<vmem>>, vector<64x128xf32>
      %24 = arith.addf %23, %22 : vector<64x128xf32>
      %c0_21 = arith.constant 0 : index
      %c0_22 = arith.constant 0 : index
      %25 = vector.load %arg9[%c0_21, %c0_22] : memref<64x128xf32, #tpu.memory_space<vmem>>, vector<64x128xf32>
      tpu.vector_store %arg9[%c0_21, %c0_22], %24 {strides = array<i32>} : memref<64x128xf32, #tpu.memory_space<vmem>>, vector<64x128xf32>,
      %c0_23 = arith.constant 0 : index
      %c4 = arith.constant 4 : index
      %c0_24 = arith.constant 0 : index
      %26 = vector.load %arg8[%c0_23, %c4, %c0_24] : memref<12x12x128xbf16, #tpu.memory_space<vmem>>, vector<8x8x128xbf16>
      %27 = vector.shape_cast %26 : vector<8x8x128xbf16> to vector<64x128xbf16>
      %c0_25 = arith.constant 0 : index
      %c2_26 = arith.constant 2 : index
      %c0_27 = arith.constant 0 : index
      %c0_28 = arith.constant 0 : index
      %28 = vector.load %arg3[%c0_25, %c2_26, %c0_27, %c0_28] : memref<1x9x128x128xbf16, #tpu.memory_space<vmem>>, vector<1x1x128x128xbf16>
      %29 = vector.shape_cast %28 : vector<1x1x128x128xbf16> to vector<128x128xbf16>
      %cst_29 = arith.constant dense<0.000000e+00> : vector<64x128xf32>
      %30 = tpu.matmul %27, %29, %cst_29 {dimension_numbers = #tpu.dot_dimension_numbers<[1], [0], [0], [1], [0, 0, 1, 1], [], []>} : vector<64x128xbf16>, vector<128x128xbf16>, vector<64x128xf32> -> vector<64x128xf32>
      %c0_30 = arith.constant 0 : index
      %c0_31 = arith.constant 0 : index
      %31 = vector.load %arg9[%c0_30, %c0_31] : memref<64x128xf32, #tpu.memory_space<vmem>>, vector<64x128xf32>
      %32 = arith.addf %31, %30 : vector<64x128xf32>
      %c0_32 = arith.constant 0 : index
      %c0_33 = arith.constant 0 : index
      %33 = vector.load %arg9[%c0_32, %c0_33] : memref<64x128xf32, #tpu.memory_space<vmem>>, vector<64x128xf32>
      tpu.vector_store %arg9[%c0_32, %c0_33], %32 {strides = array<i32>} : memref<64x128xf32, #tpu.memory_space<vmem>>, vector<64x128xf32>,
      %c2_34 = arith.constant 2 : index
      %c0_35 = arith.constant 0 : index
      %c0_36 = arith.constant 0 : index
      %34 = vector.load %arg8[%c2_34, %c0_35, %c0_36] : memref<12x12x128xbf16, #tpu.memory_space<vmem>>, vector<8x8x128xbf16>
      %35 = vector.shape_cast %34 : vector<8x8x128xbf16> to vector<64x128xbf16>
      %c0_37 = arith.constant 0 : index
      %c3 = arith.constant 3 : index
      %c0_38 = arith.constant 0 : index
      %c0_39 = arith.constant 0 : index
      %36 = vector.load %arg3[%c0_37, %c3, %c0_38, %c0_39] : memref<1x9x128x128xbf16, #tpu.memory_space<vmem>>, vector<1x1x128x128xbf16>
      %37 = vector.shape_cast %36 : vector<1x1x128x128xbf16> to vector<128x128xbf16>
      %cst_40 = arith.constant dense<0.000000e+00> : vector<64x128xf32>
      %38 = tpu.matmul %35, %37, %cst_40 {dimension_numbers = #tpu.dot_dimension_numbers<[1], [0], [0], [1], [0, 0, 1, 1], [], []>} : vector<64x128xbf16>, vector<128x128xbf16>, vector<64x128xf32> -> vector<64x128xf32>
      %c0_41 = arith.constant 0 : index
      %c0_42 = arith.constant 0 : index
      %39 = vector.load %arg9[%c0_41, %c0_42] : memref<64x128xf32, #tpu.memory_space<vmem>>, vector<64x128xf32>
      %40 = arith.addf %39, %38 : vector<64x128xf32>
      %c0_43 = arith.constant 0 : index
      %c0_44 = arith.constant 0 : index
      %41 = vector.load %arg9[%c0_43, %c0_44] : memref<64x128xf32, #tpu.memory_space<vmem>>, vector<64x128xf32>
      tpu.vector_store %arg9[%c0_43, %c0_44], %40 {strides = array<i32>} : memref<64x128xf32, #tpu.memory_space<vmem>>, vector<64x128xf32>,
      %c2_45 = arith.constant 2 : index
      %c2_46 = arith.constant 2 : index
      %c0_47 = arith.constant 0 : index
      %42 = vector.load %arg8[%c2_45, %c2_46, %c0_47] : memref<12x12x128xbf16, #tpu.memory_space<vmem>>, vector<8x8x128xbf16>
      %43 = vector.shape_cast %42 : vector<8x8x128xbf16> to vector<64x128xbf16>
      %c0_48 = arith.constant 0 : index
      %c4_49 = arith.constant 4 : index
      %c0_50 = arith.constant 0 : index
      %c0_51 = arith.constant 0 : index
      %44 = vector.load %arg3[%c0_48, %c4_49, %c0_50, %c0_51] : memref<1x9x128x128xbf16, #tpu.memory_space<vmem>>, vector<1x1x128x128xbf16>
      %45 = vector.shape_cast %44 : vector<1x1x128x128xbf16> to vector<128x128xbf16>
      %cst_52 = arith.constant dense<0.000000e+00> : vector<64x128xf32>
      %46 = tpu.matmul %43, %45, %cst_52 {dimension_numbers = #tpu.dot_dimension_numbers<[1], [0], [0], [1], [0, 0, 1, 1], [], []>} : vector<64x128xbf16>, vector<128x128xbf16>, vector<64x128xf32> -> vector<64x128xf32>
      %c0_53 = arith.constant 0 : index
      %c0_54 = arith.constant 0 : index
      %47 = vector.load %arg9[%c0_53, %c0_54] : memref<64x128xf32, #tpu.memory_space<vmem>>, vector<64x128xf32>
      %48 = arith.addf %47, %46 : vector<64x128xf32>
      %c0_55 = arith.constant 0 : index
      %c0_56 = arith.constant 0 : index
      %49 = vector.load %arg9[%c0_55, %c0_56] : memref<64x128xf32, #tpu.memory_space<vmem>>, vector<64x128xf32>
      tpu.vector_store %arg9[%c0_55, %c0_56], %48 {strides = array<i32>} : memref<64x128xf32, #tpu.memory_space<vmem>>, vector<64x128xf32>,
      %c2_57 = arith.constant 2 : index
      %c4_58 = arith.constant 4 : index
      %c0_59 = arith.constant 0 : index
      %50 = vector.load %arg8[%c2_57, %c4_58, %c0_59] : memref<12x12x128xbf16, #tpu.memory_space<vmem>>, vector<8x8x128xbf16>
      %51 = vector.shape_cast %50 : vector<8x8x128xbf16> to vector<64x128xbf16>
      %c0_60 = arith.constant 0 : index
      %c5 = arith.constant 5 : index
      %c0_61 = arith.constant 0 : index
      %c0_62 = arith.constant 0 : index
      %52 = vector.load %arg3[%c0_60, %c5, %c0_61, %c0_62] : memref<1x9x128x128xbf16, #tpu.memory_space<vmem>>, vector<1x1x128x128xbf16>
      %53 = vector.shape_cast %52 : vector<1x1x128x128xbf16> to vector<128x128xbf16>
      %cst_63 = arith.constant dense<0.000000e+00> : vector<64x128xf32>
      %54 = tpu.matmul %51, %53, %cst_63 {dimension_numbers = #tpu.dot_dimension_numbers<[1], [0], [0], [1], [0, 0, 1, 1], [], []>} : vector<64x128xbf16>, vector<128x128xbf16>, vector<64x128xf32> -> vector<64x128xf32>
      %c0_64 = arith.constant 0 : index
      %c0_65 = arith.constant 0 : index
      %55 = vector.load %arg9[%c0_64, %c0_65] : memref<64x128xf32, #tpu.memory_space<vmem>>, vector<64x128xf32>
      %56 = arith.addf %55, %54 : vector<64x128xf32>
      %c0_66 = arith.constant 0 : index
      %c0_67 = arith.constant 0 : index
      %57 = vector.load %arg9[%c0_66, %c0_67] : memref<64x128xf32, #tpu.memory_space<vmem>>, vector<64x128xf32>
      tpu.vector_store %arg9[%c0_66, %c0_67], %56 {strides = array<i32>} : memref<64x128xf32, #tpu.memory_space<vmem>>, vector<64x128xf32>,
      %c4_68 = arith.constant 4 : index
      %c0_69 = arith.constant 0 : index
      %c0_70 = arith.constant 0 : index
      %58 = vector.load %arg8[%c4_68, %c0_69, %c0_70] : memref<12x12x128xbf16, #tpu.memory_space<vmem>>, vector<8x8x128xbf16>
      %59 = vector.shape_cast %58 : vector<8x8x128xbf16> to vector<64x128xbf16>
      %c0_71 = arith.constant 0 : index
      %c6 = arith.constant 6 : index
      %c0_72 = arith.constant 0 : index
      %c0_73 = arith.constant 0 : index
      %60 = vector.load %arg3[%c0_71, %c6, %c0_72, %c0_73] : memref<1x9x128x128xbf16, #tpu.memory_space<vmem>>, vector<1x1x128x128xbf16>
      %61 = vector.shape_cast %60 : vector<1x1x128x128xbf16> to vector<128x128xbf16>
      %cst_74 = arith.constant dense<0.000000e+00> : vector<64x128xf32>
      %62 = tpu.matmul %59, %61, %cst_74 {dimension_numbers = #tpu.dot_dimension_numbers<[1], [0], [0], [1], [0, 0, 1, 1], [], []>} : vector<64x128xbf16>, vector<128x128xbf16>, vector<64x128xf32> -> vector<64x128xf32>
      %c0_75 = arith.constant 0 : index
      %c0_76 = arith.constant 0 : index
      %63 = vector.load %arg9[%c0_75, %c0_76] : memref<64x128xf32, #tpu.memory_space<vmem>>, vector<64x128xf32>
      %64 = arith.addf %63, %62 : vector<64x128xf32>
      %c0_77 = arith.constant 0 : index
      %c0_78 = arith.constant 0 : index
      %65 = vector.load %arg9[%c0_77, %c0_78] : memref<64x128xf32, #tpu.memory_space<vmem>>, vector<64x128xf32>
      tpu.vector_store %arg9[%c0_77, %c0_78], %64 {strides = array<i32>} : memref<64x128xf32, #tpu.memory_space<vmem>>, vector<64x128xf32>,
      %c4_79 = arith.constant 4 : index
      %c2_80 = arith.constant 2 : index
      %c0_81 = arith.constant 0 : index
      %66 = vector.load %arg8[%c4_79, %c2_80, %c0_81] : memref<12x12x128xbf16, #tpu.memory_space<vmem>>, vector<8x8x128xbf16>
      %67 = vector.shape_cast %66 : vector<8x8x128xbf16> to vector<64x128xbf16>
      %c0_82 = arith.constant 0 : index
      %c7 = arith.constant 7 : index
      %c0_83 = arith.constant 0 : index
      %c0_84 = arith.constant 0 : index
      %68 = vector.load %arg3[%c0_82, %c7, %c0_83, %c0_84] : memref<1x9x128x128xbf16, #tpu.memory_space<vmem>>, vector<1x1x128x128xbf16>
      %69 = vector.shape_cast %68 : vector<1x1x128x128xbf16> to vector<128x128xbf16>
      %cst_85 = arith.constant dense<0.000000e+00> : vector<64x128xf32>
      %70 = tpu.matmul %67, %69, %cst_85 {dimension_numbers = #tpu.dot_dimension_numbers<[1], [0], [0], [1], [0, 0, 1, 1], [], []>} : vector<64x128xbf16>, vector<128x128xbf16>, vector<64x128xf32> -> vector<64x128xf32>
      %c0_86 = arith.constant 0 : index
      %c0_87 = arith.constant 0 : index
      %71 = vector.load %arg9[%c0_86, %c0_87] : memref<64x128xf32, #tpu.memory_space<vmem>>, vector<64x128xf32>
      %72 = arith.addf %71, %70 : vector<64x128xf32>
      %c0_88 = arith.constant 0 : index
      %c0_89 = arith.constant 0 : index
      %73 = vector.load %arg9[%c0_88, %c0_89] : memref<64x128xf32, #tpu.memory_space<vmem>>, vector<64x128xf32>
      tpu.vector_store %arg9[%c0_88, %c0_89], %72 {strides = array<i32>} : memref<64x128xf32, #tpu.memory_space<vmem>>, vector<64x128xf32>,
      %c4_90 = arith.constant 4 : index
      %c4_91 = arith.constant 4 : index
      %c0_92 = arith.constant 0 : index
      %74 = vector.load %arg8[%c4_90, %c4_91, %c0_92] : memref<12x12x128xbf16, #tpu.memory_space<vmem>>, vector<8x8x128xbf16>
      %75 = vector.shape_cast %74 : vector<8x8x128xbf16> to vector<64x128xbf16>
      %c0_93 = arith.constant 0 : index
      %c8 = arith.constant 8 : index
      %c0_94 = arith.constant 0 : index
      %c0_95 = arith.constant 0 : index
      %76 = vector.load %arg3[%c0_93, %c8, %c0_94, %c0_95] : memref<1x9x128x128xbf16, #tpu.memory_space<vmem>>, vector<1x1x128x128xbf16>
      %77 = vector.shape_cast %76 : vector<1x1x128x128xbf16> to vector<128x128xbf16>
      %cst_96 = arith.constant dense<0.000000e+00> : vector<64x128xf32>
      %78 = tpu.matmul %75, %77, %cst_96 {dimension_numbers = #tpu.dot_dimension_numbers<[1], [0], [0], [1], [0, 0, 1, 1], [], []>} : vector<64x128xbf16>, vector<128x128xbf16>, vector<64x128xf32> -> vector<64x128xf32>
      %c0_97 = arith.constant 0 : index
      %c0_98 = arith.constant 0 : index
      %79 = vector.load %arg9[%c0_97, %c0_98] : memref<64x128xf32, #tpu.memory_space<vmem>>, vector<64x128xf32>
      %80 = arith.addf %79, %78 : vector<64x128xf32>
      %c0_99 = arith.constant 0 : index
      %c0_100 = arith.constant 0 : index
      %81 = vector.load %arg9[%c0_99, %c0_100] : memref<64x128xf32, #tpu.memory_space<vmem>>, vector<64x128xf32>
      tpu.vector_store %arg9[%c0_99, %c0_100], %80 {strides = array<i32>} : memref<64x128xf32, #tpu.memory_space<vmem>>, vector<64x128xf32>,
      %c0_101 = arith.constant 0 : index
      %c0_102 = arith.constant 0 : index
      %82 = vector.load %arg9[%c0_101, %c0_102] : memref<64x128xf32, #tpu.memory_space<vmem>>, vector<64x128xf32>
      %c0_103 = arith.constant 0 : index
      %c0_104 = arith.constant 0 : index
      %c0_105 = arith.constant 0 : index
      %83 = vector.load %arg4[%c0_103, %c0_104, %c0_105] : memref<1x1x128xf32, #tpu.memory_space<vmem>>, vector<1x1x128xf32>
      %84 = vector.shape_cast %83 : vector<1x1x128xf32> to vector<1x128xf32>
      %85 = vector.broadcast %84 : vector<1x128xf32> to vector<64x128xf32>
      %86 = arith.mulf %82, %85 : vector<64x128xf32>
      %c0_106 = arith.constant 0 : index
      %c0_107 = arith.constant 0 : index
      %c0_108 = arith.constant 0 : index
      %87 = vector.load %arg5[%c0_106, %c0_107, %c0_108] : memref<1x1x128xf32, #tpu.memory_space<vmem>>, vector<1x1x128xf32>
      %88 = vector.shape_cast %87 : vector<1x1x128xf32> to vector<1x128xf32>
      %89 = vector.broadcast %88 : vector<1x128xf32> to vector<64x128xf32>
      %90 = arith.addf %86, %89 : vector<64x128xf32>
      %cst_109 = arith.constant 0.000000e+00 : f32
      %91 = vector.broadcast %cst_109 : f32 to vector<64x128xf32>
      %92 = arith.maximumf %90, %91 : vector<64x128xf32>
      %93 = vector.shape_cast %92 : vector<64x128xf32> to vector<8x8x128xf32>
      %94 = arith.truncf %93 : vector<8x8x128xf32> to vector<8x8x128xbf16>
      %c2_110 = arith.constant 2 : index
      %c2_111 = arith.constant 2 : index
      %c0_112 = arith.constant 0 : index
      %95 = vector.load %arg8[%c2_110, %c2_111, %c0_112] : memref<12x12x128xbf16, #tpu.memory_space<vmem>>, vector<8x8x128xbf16>
      tpu.vector_store %arg8[%c2_110, %c2_111, %c0_112], %94 {strides = array<i32>} : memref<12x12x128xbf16, #tpu.memory_space<vmem>>, vector<8x8x128xbf16>,
    } else {
    }
    %c2_i32_2 = arith.constant 2 : i32
    %6 = arith.cmpi sge, %arg1, %c2_i32_2 : i32
    %7 = arith.extui %6 : i1 to i32
    %c0_i32_3 = arith.constant 0 : i32
    %8 = arith.cmpi ne, %7, %c0_i32_3 : i32
    scf.if %8 {
      %c1 = arith.constant 1 : index
      %c1_5 = arith.constant 1 : index
      %c0 = arith.constant 0 : index
      %12 = vector.load %arg8[%c1, %c1_5, %c0] : memref<12x12x128xbf16, #tpu.memory_space<vmem>>, vector<8x8x128xbf16>
      %13 = vector.shape_cast %12 : vector<8x8x128xbf16> to vector<64x128xbf16>
      %c0_6 = arith.constant 0 : index
      %c0_7 = arith.constant 0 : index
      %c0_8 = arith.constant 0 : index
      %c0_9 = arith.constant 0 : index
      %14 = vector.load %arg3[%c0_6, %c0_7, %c0_8, %c0_9] : memref<1x9x128x128xbf16, #tpu.memory_space<vmem>>, vector<1x1x128x128xbf16>
      %15 = vector.shape_cast %14 : vector<1x1x128x128xbf16> to vector<128x128xbf16>
      %cst = arith.constant dense<0.000000e+00> : vector<64x128xf32>
      %16 = tpu.matmul %13, %15, %cst {dimension_numbers = #tpu.dot_dimension_numbers<[1], [0], [0], [1], [0, 0, 1, 1], [], []>} : vector<64x128xbf16>, vector<128x128xbf16>, vector<64x128xf32> -> vector<64x128xf32>
      %c0_10 = arith.constant 0 : index
      %c0_11 = arith.constant 0 : index
      %17 = vector.load %arg9[%c0_10, %c0_11] : memref<64x128xf32, #tpu.memory_space<vmem>>, vector<64x128xf32>
      tpu.vector_store %arg9[%c0_10, %c0_11], %16 {strides = array<i32>} : memref<64x128xf32, #tpu.memory_space<vmem>>, vector<64x128xf32>,
      %c1_12 = arith.constant 1 : index
      %c2 = arith.constant 2 : index
      %c0_13 = arith.constant 0 : index
      %18 = vector.load %arg8[%c1_12, %c2, %c0_13] : memref<12x12x128xbf16, #tpu.memory_space<vmem>>, vector<8x8x128xbf16>
      %19 = vector.shape_cast %18 : vector<8x8x128xbf16> to vector<64x128xbf16>
      %c0_14 = arith.constant 0 : index
      %c1_15 = arith.constant 1 : index
      %c0_16 = arith.constant 0 : index
      %c0_17 = arith.constant 0 : index
      %20 = vector.load %arg3[%c0_14, %c1_15, %c0_16, %c0_17] : memref<1x9x128x128xbf16, #tpu.memory_space<vmem>>, vector<1x1x128x128xbf16>
      %21 = vector.shape_cast %20 : vector<1x1x128x128xbf16> to vector<128x128xbf16>
      %cst_18 = arith.constant dense<0.000000e+00> : vector<64x128xf32>
      %22 = tpu.matmul %19, %21, %cst_18 {dimension_numbers = #tpu.dot_dimension_numbers<[1], [0], [0], [1], [0, 0, 1, 1], [], []>} : vector<64x128xbf16>, vector<128x128xbf16>, vector<64x128xf32> -> vector<64x128xf32>
      %c0_19 = arith.constant 0 : index
      %c0_20 = arith.constant 0 : index
      %23 = vector.load %arg9[%c0_19, %c0_20] : memref<64x128xf32, #tpu.memory_space<vmem>>, vector<64x128xf32>
      %24 = arith.addf %23, %22 : vector<64x128xf32>
      %c0_21 = arith.constant 0 : index
      %c0_22 = arith.constant 0 : index
      %25 = vector.load %arg9[%c0_21, %c0_22] : memref<64x128xf32, #tpu.memory_space<vmem>>, vector<64x128xf32>
      tpu.vector_store %arg9[%c0_21, %c0_22], %24 {strides = array<i32>} : memref<64x128xf32, #tpu.memory_space<vmem>>, vector<64x128xf32>,
      %c1_23 = arith.constant 1 : index
      %c3 = arith.constant 3 : index
      %c0_24 = arith.constant 0 : index
      %26 = vector.load %arg8[%c1_23, %c3, %c0_24] : memref<12x12x128xbf16, #tpu.memory_space<vmem>>, vector<8x8x128xbf16>
      %27 = vector.shape_cast %26 : vector<8x8x128xbf16> to vector<64x128xbf16>
      %c0_25 = arith.constant 0 : index
      %c2_26 = arith.constant 2 : index
      %c0_27 = arith.constant 0 : index
      %c0_28 = arith.constant 0 : index
      %28 = vector.load %arg3[%c0_25, %c2_26, %c0_27, %c0_28] : memref<1x9x128x128xbf16, #tpu.memory_space<vmem>>, vector<1x1x128x128xbf16>
      %29 = vector.shape_cast %28 : vector<1x1x128x128xbf16> to vector<128x128xbf16>
      %cst_29 = arith.constant dense<0.000000e+00> : vector<64x128xf32>
      %30 = tpu.matmul %27, %29, %cst_29 {dimension_numbers = #tpu.dot_dimension_numbers<[1], [0], [0], [1], [0, 0, 1, 1], [], []>} : vector<64x128xbf16>, vector<128x128xbf16>, vector<64x128xf32> -> vector<64x128xf32>
      %c0_30 = arith.constant 0 : index
      %c0_31 = arith.constant 0 : index
      %31 = vector.load %arg9[%c0_30, %c0_31] : memref<64x128xf32, #tpu.memory_space<vmem>>, vector<64x128xf32>
      %32 = arith.addf %31, %30 : vector<64x128xf32>
      %c0_32 = arith.constant 0 : index
      %c0_33 = arith.constant 0 : index
      %33 = vector.load %arg9[%c0_32, %c0_33] : memref<64x128xf32, #tpu.memory_space<vmem>>, vector<64x128xf32>
      tpu.vector_store %arg9[%c0_32, %c0_33], %32 {strides = array<i32>} : memref<64x128xf32, #tpu.memory_space<vmem>>, vector<64x128xf32>,
      %c2_34 = arith.constant 2 : index
      %c1_35 = arith.constant 1 : index
      %c0_36 = arith.constant 0 : index
      %34 = vector.load %arg8[%c2_34, %c1_35, %c0_36] : memref<12x12x128xbf16, #tpu.memory_space<vmem>>, vector<8x8x128xbf16>
      %35 = vector.shape_cast %34 : vector<8x8x128xbf16> to vector<64x128xbf16>
      %c0_37 = arith.constant 0 : index
      %c3_38 = arith.constant 3 : index
      %c0_39 = arith.constant 0 : index
      %c0_40 = arith.constant 0 : index
      %36 = vector.load %arg3[%c0_37, %c3_38, %c0_39, %c0_40] : memref<1x9x128x128xbf16, #tpu.memory_space<vmem>>, vector<1x1x128x128xbf16>
      %37 = vector.shape_cast %36 : vector<1x1x128x128xbf16> to vector<128x128xbf16>
      %cst_41 = arith.constant dense<0.000000e+00> : vector<64x128xf32>
      %38 = tpu.matmul %35, %37, %cst_41 {dimension_numbers = #tpu.dot_dimension_numbers<[1], [0], [0], [1], [0, 0, 1, 1], [], []>} : vector<64x128xbf16>, vector<128x128xbf16>, vector<64x128xf32> -> vector<64x128xf32>
      %c0_42 = arith.constant 0 : index
      %c0_43 = arith.constant 0 : index
      %39 = vector.load %arg9[%c0_42, %c0_43] : memref<64x128xf32, #tpu.memory_space<vmem>>, vector<64x128xf32>
      %40 = arith.addf %39, %38 : vector<64x128xf32>
      %c0_44 = arith.constant 0 : index
      %c0_45 = arith.constant 0 : index
      %41 = vector.load %arg9[%c0_44, %c0_45] : memref<64x128xf32, #tpu.memory_space<vmem>>, vector<64x128xf32>
      tpu.vector_store %arg9[%c0_44, %c0_45], %40 {strides = array<i32>} : memref<64x128xf32, #tpu.memory_space<vmem>>, vector<64x128xf32>,
      %c2_46 = arith.constant 2 : index
      %c2_47 = arith.constant 2 : index
      %c0_48 = arith.constant 0 : index
      %42 = vector.load %arg8[%c2_46, %c2_47, %c0_48] : memref<12x12x128xbf16, #tpu.memory_space<vmem>>, vector<8x8x128xbf16>
      %43 = vector.shape_cast %42 : vector<8x8x128xbf16> to vector<64x128xbf16>
      %c0_49 = arith.constant 0 : index
      %c4 = arith.constant 4 : index
      %c0_50 = arith.constant 0 : index
      %c0_51 = arith.constant 0 : index
      %44 = vector.load %arg3[%c0_49, %c4, %c0_50, %c0_51] : memref<1x9x128x128xbf16, #tpu.memory_space<vmem>>, vector<1x1x128x128xbf16>
      %45 = vector.shape_cast %44 : vector<1x1x128x128xbf16> to vector<128x128xbf16>
      %cst_52 = arith.constant dense<0.000000e+00> : vector<64x128xf32>
      %46 = tpu.matmul %43, %45, %cst_52 {dimension_numbers = #tpu.dot_dimension_numbers<[1], [0], [0], [1], [0, 0, 1, 1], [], []>} : vector<64x128xbf16>, vector<128x128xbf16>, vector<64x128xf32> -> vector<64x128xf32>
      %c0_53 = arith.constant 0 : index
      %c0_54 = arith.constant 0 : index
      %47 = vector.load %arg9[%c0_53, %c0_54] : memref<64x128xf32, #tpu.memory_space<vmem>>, vector<64x128xf32>
      %48 = arith.addf %47, %46 : vector<64x128xf32>
      %c0_55 = arith.constant 0 : index
      %c0_56 = arith.constant 0 : index
      %49 = vector.load %arg9[%c0_55, %c0_56] : memref<64x128xf32, #tpu.memory_space<vmem>>, vector<64x128xf32>
      tpu.vector_store %arg9[%c0_55, %c0_56], %48 {strides = array<i32>} : memref<64x128xf32, #tpu.memory_space<vmem>>, vector<64x128xf32>,
      %c2_57 = arith.constant 2 : index
      %c3_58 = arith.constant 3 : index
      %c0_59 = arith.constant 0 : index
      %50 = vector.load %arg8[%c2_57, %c3_58, %c0_59] : memref<12x12x128xbf16, #tpu.memory_space<vmem>>, vector<8x8x128xbf16>
      %51 = vector.shape_cast %50 : vector<8x8x128xbf16> to vector<64x128xbf16>
      %c0_60 = arith.constant 0 : index
      %c5 = arith.constant 5 : index
      %c0_61 = arith.constant 0 : index
      %c0_62 = arith.constant 0 : index
      %52 = vector.load %arg3[%c0_60, %c5, %c0_61, %c0_62] : memref<1x9x128x128xbf16, #tpu.memory_space<vmem>>, vector<1x1x128x128xbf16>
      %53 = vector.shape_cast %52 : vector<1x1x128x128xbf16> to vector<128x128xbf16>
      %cst_63 = arith.constant dense<0.000000e+00> : vector<64x128xf32>
      %54 = tpu.matmul %51, %53, %cst_63 {dimension_numbers = #tpu.dot_dimension_numbers<[1], [0], [0], [1], [0, 0, 1, 1], [], []>} : vector<64x128xbf16>, vector<128x128xbf16>, vector<64x128xf32> -> vector<64x128xf32>
      %c0_64 = arith.constant 0 : index
      %c0_65 = arith.constant 0 : index
      %55 = vector.load %arg9[%c0_64, %c0_65] : memref<64x128xf32, #tpu.memory_space<vmem>>, vector<64x128xf32>
      %56 = arith.addf %55, %54 : vector<64x128xf32>
      %c0_66 = arith.constant 0 : index
      %c0_67 = arith.constant 0 : index
      %57 = vector.load %arg9[%c0_66, %c0_67] : memref<64x128xf32, #tpu.memory_space<vmem>>, vector<64x128xf32>
      tpu.vector_store %arg9[%c0_66, %c0_67], %56 {strides = array<i32>} : memref<64x128xf32, #tpu.memory_space<vmem>>, vector<64x128xf32>,
      %c3_68 = arith.constant 3 : index
      %c1_69 = arith.constant 1 : index
      %c0_70 = arith.constant 0 : index
      %58 = vector.load %arg8[%c3_68, %c1_69, %c0_70] : memref<12x12x128xbf16, #tpu.memory_space<vmem>>, vector<8x8x128xbf16>
      %59 = vector.shape_cast %58 : vector<8x8x128xbf16> to vector<64x128xbf16>
      %c0_71 = arith.constant 0 : index
      %c6 = arith.constant 6 : index
      %c0_72 = arith.constant 0 : index
      %c0_73 = arith.constant 0 : index
      %60 = vector.load %arg3[%c0_71, %c6, %c0_72, %c0_73] : memref<1x9x128x128xbf16, #tpu.memory_space<vmem>>, vector<1x1x128x128xbf16>
      %61 = vector.shape_cast %60 : vector<1x1x128x128xbf16> to vector<128x128xbf16>
      %cst_74 = arith.constant dense<0.000000e+00> : vector<64x128xf32>
      %62 = tpu.matmul %59, %61, %cst_74 {dimension_numbers = #tpu.dot_dimension_numbers<[1], [0], [0], [1], [0, 0, 1, 1], [], []>} : vector<64x128xbf16>, vector<128x128xbf16>, vector<64x128xf32> -> vector<64x128xf32>
      %c0_75 = arith.constant 0 : index
      %c0_76 = arith.constant 0 : index
      %63 = vector.load %arg9[%c0_75, %c0_76] : memref<64x128xf32, #tpu.memory_space<vmem>>, vector<64x128xf32>
      %64 = arith.addf %63, %62 : vector<64x128xf32>
      %c0_77 = arith.constant 0 : index
      %c0_78 = arith.constant 0 : index
      %65 = vector.load %arg9[%c0_77, %c0_78] : memref<64x128xf32, #tpu.memory_space<vmem>>, vector<64x128xf32>
      tpu.vector_store %arg9[%c0_77, %c0_78], %64 {strides = array<i32>} : memref<64x128xf32, #tpu.memory_space<vmem>>, vector<64x128xf32>,
      %c3_79 = arith.constant 3 : index
      %c2_80 = arith.constant 2 : index
      %c0_81 = arith.constant 0 : index
      %66 = vector.load %arg8[%c3_79, %c2_80, %c0_81] : memref<12x12x128xbf16, #tpu.memory_space<vmem>>, vector<8x8x128xbf16>
      %67 = vector.shape_cast %66 : vector<8x8x128xbf16> to vector<64x128xbf16>
      %c0_82 = arith.constant 0 : index
      %c7 = arith.constant 7 : index
      %c0_83 = arith.constant 0 : index
      %c0_84 = arith.constant 0 : index
      %68 = vector.load %arg3[%c0_82, %c7, %c0_83, %c0_84] : memref<1x9x128x128xbf16, #tpu.memory_space<vmem>>, vector<1x1x128x128xbf16>
      %69 = vector.shape_cast %68 : vector<1x1x128x128xbf16> to vector<128x128xbf16>
      %cst_85 = arith.constant dense<0.000000e+00> : vector<64x128xf32>
      %70 = tpu.matmul %67, %69, %cst_85 {dimension_numbers = #tpu.dot_dimension_numbers<[1], [0], [0], [1], [0, 0, 1, 1], [], []>} : vector<64x128xbf16>, vector<128x128xbf16>, vector<64x128xf32> -> vector<64x128xf32>
      %c0_86 = arith.constant 0 : index
      %c0_87 = arith.constant 0 : index
      %71 = vector.load %arg9[%c0_86, %c0_87] : memref<64x128xf32, #tpu.memory_space<vmem>>, vector<64x128xf32>
      %72 = arith.addf %71, %70 : vector<64x128xf32>
      %c0_88 = arith.constant 0 : index
      %c0_89 = arith.constant 0 : index
      %73 = vector.load %arg9[%c0_88, %c0_89] : memref<64x128xf32, #tpu.memory_space<vmem>>, vector<64x128xf32>
      tpu.vector_store %arg9[%c0_88, %c0_89], %72 {strides = array<i32>} : memref<64x128xf32, #tpu.memory_space<vmem>>, vector<64x128xf32>,
      %c3_90 = arith.constant 3 : index
      %c3_91 = arith.constant 3 : index
      %c0_92 = arith.constant 0 : index
      %74 = vector.load %arg8[%c3_90, %c3_91, %c0_92] : memref<12x12x128xbf16, #tpu.memory_space<vmem>>, vector<8x8x128xbf16>
      %75 = vector.shape_cast %74 : vector<8x8x128xbf16> to vector<64x128xbf16>
      %c0_93 = arith.constant 0 : index
      %c8 = arith.constant 8 : index
      %c0_94 = arith.constant 0 : index
      %c0_95 = arith.constant 0 : index
      %76 = vector.load %arg3[%c0_93, %c8, %c0_94, %c0_95] : memref<1x9x128x128xbf16, #tpu.memory_space<vmem>>, vector<1x1x128x128xbf16>
      %77 = vector.shape_cast %76 : vector<1x1x128x128xbf16> to vector<128x128xbf16>
      %cst_96 = arith.constant dense<0.000000e+00> : vector<64x128xf32>
      %78 = tpu.matmul %75, %77, %cst_96 {dimension_numbers = #tpu.dot_dimension_numbers<[1], [0], [0], [1], [0, 0, 1, 1], [], []>} : vector<64x128xbf16>, vector<128x128xbf16>, vector<64x128xf32> -> vector<64x128xf32>
      %c0_97 = arith.constant 0 : index
      %c0_98 = arith.constant 0 : index
      %79 = vector.load %arg9[%c0_97, %c0_98] : memref<64x128xf32, #tpu.memory_space<vmem>>, vector<64x128xf32>
      %80 = arith.addf %79, %78 : vector<64x128xf32>
      %c0_99 = arith.constant 0 : index
      %c0_100 = arith.constant 0 : index
      %81 = vector.load %arg9[%c0_99, %c0_100] : memref<64x128xf32, #tpu.memory_space<vmem>>, vector<64x128xf32>
      tpu.vector_store %arg9[%c0_99, %c0_100], %80 {strides = array<i32>} : memref<64x128xf32, #tpu.memory_space<vmem>>, vector<64x128xf32>,
      %c0_101 = arith.constant 0 : index
      %c0_102 = arith.constant 0 : index
      %82 = vector.load %arg9[%c0_101, %c0_102] : memref<64x128xf32, #tpu.memory_space<vmem>>, vector<64x128xf32>
      %c0_103 = arith.constant 0 : index
      %c0_104 = arith.constant 0 : index
      %c0_105 = arith.constant 0 : index
      %83 = vector.load %arg4[%c0_103, %c0_104, %c0_105] : memref<1x1x128xf32, #tpu.memory_space<vmem>>, vector<1x1x128xf32>
      %84 = vector.shape_cast %83 : vector<1x1x128xf32> to vector<1x128xf32>
      %85 = vector.broadcast %84 : vector<1x128xf32> to vector<64x128xf32>
      %86 = arith.mulf %82, %85 : vector<64x128xf32>
      %c0_106 = arith.constant 0 : index
      %c0_107 = arith.constant 0 : index
      %c0_108 = arith.constant 0 : index
      %87 = vector.load %arg5[%c0_106, %c0_107, %c0_108] : memref<1x1x128xf32, #tpu.memory_space<vmem>>, vector<1x1x128xf32>
      %88 = vector.shape_cast %87 : vector<1x1x128xf32> to vector<1x128xf32>
      %89 = vector.broadcast %88 : vector<1x128xf32> to vector<64x128xf32>
      %90 = arith.addf %86, %89 : vector<64x128xf32>
      %cst_109 = arith.constant 0.000000e+00 : f32
      %91 = vector.broadcast %cst_109 : f32 to vector<64x128xf32>
      %92 = arith.maximumf %90, %91 : vector<64x128xf32>
      %93 = vector.shape_cast %92 : vector<64x128xf32> to vector<8x8x128xf32>
      %94 = arith.truncf %93 : vector<8x8x128xf32> to vector<8x8x128xbf16>
      %c2_110 = arith.constant 2 : index
      %c2_111 = arith.constant 2 : index
      %c0_112 = arith.constant 0 : index
      %95 = vector.load %arg8[%c2_110, %c2_111, %c0_112] : memref<12x12x128xbf16, #tpu.memory_space<vmem>>, vector<8x8x128xbf16>
      tpu.vector_store %arg8[%c2_110, %c2_111, %c0_112], %94 {strides = array<i32>} : memref<12x12x128xbf16, #tpu.memory_space<vmem>>, vector<8x8x128xbf16>,
    } else {
    }
    %c3_i32 = arith.constant 3 : i32
    %9 = arith.cmpi eq, %arg1, %c3_i32 : i32
    %10 = arith.extui %9 : i1 to i32
    %c0_i32_4 = arith.constant 0 : i32
    %11 = arith.cmpi ne, %10, %c0_i32_4 : i32
    scf.if %11 {
      %c2 = arith.constant 2 : index
      %c2_5 = arith.constant 2 : index
      %c0 = arith.constant 0 : index
      %12 = vector.load %arg8[%c2, %c2_5, %c0] : memref<12x12x128xbf16, #tpu.memory_space<vmem>>, vector<8x8x128xbf16>
      %13 = vector.shape_cast %12 : vector<8x8x128xbf16> to vector<64x128xbf16>
      %c0_6 = arith.constant 0 : index
      %c0_7 = arith.constant 0 : index
      %14 = vector.load %arg6[%c0_6, %c0_7] : memref<128x128xbf16, #tpu.memory_space<vmem>>, vector<128x128xbf16>
      %cst = arith.constant dense<0.000000e+00> : vector<64x128xf32>
      %15 = tpu.matmul %13, %14, %cst {dimension_numbers = #tpu.dot_dimension_numbers<[1], [0], [0], [1], [0, 0, 1, 1], [], []>} : vector<64x128xbf16>, vector<128x128xbf16>, vector<64x128xf32> -> vector<64x128xf32>
      %16 = vector.shape_cast %15 : vector<64x128xf32> to vector<1x8x8x128xf32>
      %17 = arith.truncf %16 : vector<1x8x8x128xf32> to vector<1x8x8x128xbf16>
      %c0_8 = arith.constant 0 : index
      %c0_9 = arith.constant 0 : index
      %c0_10 = arith.constant 0 : index
      %c0_11 = arith.constant 0 : index
      %18 = vector.load %arg7[%c0_8, %c0_9, %c0_10, %c0_11] : memref<1x8x8x128xbf16, #tpu.memory_space<vmem>>, vector<1x8x8x128xbf16>
      tpu.vector_store %arg7[%c0_8, %c0_9, %c0_10, %c0_11], %17 {strides = array<i32>} : memref<1x8x8x128xbf16, #tpu.memory_space<vmem>>, vector<1x8x8x128xbf16>,
    } else {
    }
    return
  }
  func.func @transform_0(%arg0: i32, %arg1: i32) -> (i32, i32, i32, i32) {
    %c0_i32 = arith.constant 0 : i32
    %c0_i32_0 = arith.constant 0 : i32
    %c0_i32_1 = arith.constant 0 : i32
    %c0_i32_2 = arith.constant 0 : i32
    return %arg0, %c0_i32, %c0_i32_0, %c0_i32_1 : i32, i32, i32, i32
  }
  func.func @transform_1(%arg0: i32, %arg1: i32) -> (i32, i32, i32, i32) {
    %c0_i32 = arith.constant 0 : i32
    %c0_i32_0 = arith.constant 0 : i32
    %c0_i32_1 = arith.constant 0 : i32
    %c0_i32_2 = arith.constant 0 : i32
    return %arg1, %c0_i32, %c0_i32_0, %c0_i32_1 : i32, i32, i32, i32
  }
  func.func @transform_2(%arg0: i32, %arg1: i32) -> (i32, i32, i32) {
    %c0_i32 = arith.constant 0 : i32
    %c0_i32_0 = arith.constant 0 : i32
    %c0_i32_1 = arith.constant 0 : i32
    return %arg1, %c0_i32, %c0_i32_0 : i32, i32, i32
  }
  func.func @transform_3(%arg0: i32, %arg1: i32) -> (i32, i32, i32) {
    %c0_i32 = arith.constant 0 : i32
    %c0_i32_0 = arith.constant 0 : i32
    %c0_i32_1 = arith.constant 0 : i32
    return %arg1, %c0_i32, %c0_i32_0 : i32, i32, i32
  }
  func.func @transform_4(%arg0: i32, %arg1: i32) -> (i32, i32) {
    %c0_i32 = arith.constant 0 : i32
    %c0_i32_0 = arith.constant 0 : i32
    %c0_i32_1 = arith.constant 0 : i32
    return %c0_i32, %c0_i32_0 : i32, i32
  }
  func.func @transform_5(%arg0: i32, %arg1: i32) -> (i32, i32, i32, i32) {
    %c0_i32 = arith.constant 0 : i32
    %c0_i32_0 = arith.constant 0 : i32
    %c0_i32_1 = arith.constant 0 : i32
    %c0_i32_2 = arith.constant 0 : i32
    return %arg0, %c0_i32, %c0_i32_0, %c0_i32_1 : i32, i32, i32, i32
  }
}

</mosaic_0001>

<llo_original>
// kernel: tpu_custom_call.1
$region0: #{tpu_custom_call.1}
  #allocation0 [shape = 'u32[]', space=smem, size = 0x4, offset = 0x4, fixed_abs, tag = 'smem constant byte address 0x4 - core index']
  #allocation1 [shape = 'u32[72,128]{1,0:T(1,128)}', space=vmem, size = 0x9000, scoped, tag = 'internal scratch']
  #allocation2 [shape = 'bf16[12,12,128]{2,1,0:T(8,128)(2,1)}', space=vmem, size = 0xc000, scoped, tag = 'scratch operand']
  #allocation3 [shape = 'f32[64,128]{1,0:T(8,128)}', space=vmem, size = 0x8000, scoped, tag = 'scratch operand']
  %s0 = inlined_call_operand.hbm [shape: bf16[2,8,8,128], index: 0, kind: input, shape index: {}]
  %s1 = inlined_call_operand.hbm [shape: bf16[4,9,128,128], index: 1, kind: input, shape index: {}]
  %s2 = inlined_call_operand.hbm [shape: f32[4,1,128], index: 2, kind: input, shape index: {}]
  %s3 = inlined_call_operand.hbm [shape: f32[4,1,128], index: 3, kind: input, shape index: {}]
  %s4 = inlined_call_operand.hbm [shape: bf16[128,128], index: 4, kind: input, shape index: {}]
  %s5 = inlined_call_operand.hbm [shape: bf16[2,8,8,128], index: 5, kind: output, shape index: {}]
  %s6 = sld [smem:[#allocation0]]
  $region89: #{tpu_custom_call.1} parent=0
    _
  %s8 = ssub.s32 1, %s6
  %s9 = scalar_select 0, %s8, %s6
  $region1: #{tpu_custom_call.1} parent=0
    #allocation4 [shape = 'u8[32768]{0}', space=vmem, size = 0x8000, scoped, tag = 'input window, operand 0']
    #allocation5 [shape = 's32[2]{0}', space=sflag, size = 0x8, scoped, tag = 'scoped memory for tpu_custom_call.1']
    #allocation6 [shape = 's32[2]{0}', space=sflag, size = 0x8, scoped, tag = 'scoped memory for tpu_custom_call.1']
    #allocation7 [shape = 'u8[589824]{0}', space=vmem, size = 0x90000, scoped, tag = 'input window, operand 1']
    #allocation8 [shape = 's32[2]{0}', space=sflag, size = 0x8, scoped, tag = 'scoped memory for tpu_custom_call.1']
    #allocation9 [shape = 'u8[1024]{0}', space=vmem, size = 0x400, scoped, tag = 'input window, operand 2']
    #allocation10 [shape = 'u8[1024]{0}', space=vmem, size = 0x400, scoped, tag = 'input window, operand 3']
    #allocation11 [shape = 's32[2]{0}', space=sflag, size = 0x8, scoped, tag = 'scoped memory for tpu_custom_call.1']
    #allocation12 [shape = 'u8[32768]{0}', space=vmem, size = 0x8000, scoped, tag = 'input window, operand 4, single buffered']
    #allocation13 [shape = 'u8[32768]{0}', space=vmem, size = 0x8000, scoped, tag = 'output window, operand 0']
    %10 = vsyncpa [#allocation5], 0
    %s11 = scalar_lea.sflag [#allocation5], 1
    %12 = vsyncpa %s11, 0
    %13 = vsyncpa [#allocation8], 0
    %s14 = scalar_lea.sflag [#allocation8], 1
    %15 = vsyncpa %s14, 0
    %16 = vsyncpa [#allocation11], 0
    %s17 = scalar_lea.sflag [#allocation11], 1
    %18 = vsyncpa %s17, 0
    %19 = vsyncpa [#allocation6], 0
    %s20 = scalar_lea.sflag [#allocation6], 1
    %21 = vsyncpa %s20, 0
    loop: start=0, step=1, limit=10
    $region2: #{tpu_custom_call.1} parent=1 // loop_pre_header
      _
    $region3: #{tpu_custom_call.1} parent=1 // loop_header
      %s23 = sphi 0, %s27
      %p24 = scmp.ge.s32.totalorder %s23, 10
      %s30 = sphi 0, %s42
      %s31 = sphi 0, %s38
      %s32 = sphi 0, %s30
      %s33 = sphi 0, %s31
      %s34 = sphi 0, %s32
      %s35 = sphi 0, %s33
      %s45 = sphi 0, %s47
      %s48 = sphi 0, %s45
      %s49 = sphi 0, %s48
      %s65 = sphi 0, %s49
      %s71 = sphi 0, %s73
      %s74 = sphi 0, %s71
      %s75 = sphi 0, %s74
      %s91 = sphi 0, %s75
      %s97 = sphi 0, %s99
      %s100 = sphi 0, %s97
      %s101 = sphi 0, %s100
      %s117 = sphi 0, %s101
      %s123 = sphi 0, %s125
      %s126 = sphi 0, %s123
      %s127 = sphi 0, %s126
      %s143 = sphi 0, %s127
      %s147 = sphi 0, %s147
      %s149 = sphi 0, %s147
      %s150 = sphi 0, %s149
      %s164 = sphi 0, %s150
      %s170 = sphi 0, %s172
      %s173 = sphi 0, %s170
      %s174 = sphi 0, %s173
      %s190 = sphi 0, %s174
    $region4: #{tpu_custom_call.1} parent=1 // loop_header_branch
      %26 = sbr.rel (%p24) target = $region8
    $region5: #{tpu_custom_call.1} parent=1 // loop_body
      %s28 = ssub.s32 %s23, 1
      %s29 = ssub.s32 %s23, 2
      %s36 = sadd.s32 1, %s31
      %p37 = scmp.ge.s32.totalorder %s36, 4
      %s38 = scalar_select %p37, 0, %s36
      %s39 = sadd.s32 1, %s30
      %s40 = scalar_select %p37, %s39, %s30
      %p41 = scmp.ge.s32.totalorder %s40, 2
      %s42 = scalar_select %p41, 0, %s40
      %s43 = ssub.s32 %s30, %s42
      %p44 = scmp.eq.s32.totalorder %s43, 0
      %s46 = sadd.s32 %s45, 1
      %s47 = scalar_select %p44, %s45, %s46
      %p50 = pneg %p44
      %p51 = scmp.eq.s32.totalorder %s23, 7
      %p52 = por %p50, %p51
      %p53 = scmp.ne.s32.totalorder %s45, %s48
      %p54 = scmp.eq.s32.totalorder %s23, 0
      %p55 = por %p53, %p54
      %p56 = scmp.ne.s32.totalorder %s45, %s48
      %p57 = scmp.eq.s32.totalorder %s28, 7
      %p58 = por %p56, %p57
      %p59 = scmp.ne.s32.totalorder %s48, %s49
      %p60 = scmp.eq.s32.totalorder %s28, 0
      %p61 = por %p59, %p60
      %p62 = scmp.ne.s32.totalorder %s48, %s49
      %p63 = scmp.eq.s32.totalorder %s29, 7
      %p64 = por %p62, %p63
      %p66 = scmp.ne.s32.totalorder %s49, %s65
      %p67 = scmp.eq.s32.totalorder %s29, 0
      %p68 = por %p66, %p67
      %s69 = ssub.s32 %s31, %s38
      %p70 = scmp.eq.s32.totalorder %s69, 0
      %s72 = sadd.s32 %s71, 1
      %s73 = scalar_select %p70, %s71, %s72
      %p76 = pneg %p70
      %p77 = scmp.eq.s32.totalorder %s23, 7
      %p78 = por %p76, %p77
      %p79 = scmp.ne.s32.totalorder %s71, %s74
      %p80 = scmp.eq.s32.totalorder %s23, 0
      %p81 = por %p79, %p80
      %p82 = scmp.ne.s32.totalorder %s71, %s74
      %p83 = scmp.eq.s32.totalorder %s28, 7
      %p84 = por %p82, %p83
      %p85 = scmp.ne.s32.totalorder %s74, %s75
      %p86 = scmp.eq.s32.totalorder %s28, 0
      %p87 = por %p85, %p86
      %p88 = scmp.ne.s32.totalorder %s74, %s75
      %p89 = scmp.eq.s32.totalorder %s29, 7
      %p90 = por %p88, %p89
      %p92 = scmp.ne.s32.totalorder %s75, %s91
      %p93 = scmp.eq.s32.totalorder %s29, 0
      %p94 = por %p92, %p93
      %s95 = ssub.s32 %s31, %s38
      %p96 = scmp.eq.s32.totalorder %s95, 0
      %s98 = sadd.s32 %s97, 1
      %s99 = scalar_select %p96, %s97, %s98
      %p102 = pneg %p96
      %p103 = scmp.eq.s32.totalorder %s23, 7
      %p104 = por %p102, %p103
      %p105 = scmp.ne.s32.totalorder %s97, %s100
      %p106 = scmp.eq.s32.totalorder %s23, 0
      %p107 = por %p105, %p106
      %p108 = scmp.ne.s32.totalorder %s97, %s100
      %p109 = scmp.eq.s32.totalorder %s28, 7
      %p110 = por %p108, %p109
      %p111 = scmp.ne.s32.totalorder %s100, %s101
      %p112 = scmp.eq.s32.totalorder %s28, 0
      %p113 = por %p111, %p112
      %p114 = scmp.ne.s32.totalorder %s100, %s101
      %p115 = scmp.eq.s32.totalorder %s29, 7
      %p116 = por %p114, %p115
      %p118 = scmp.ne.s32.totalorder %s101, %s117
      %p119 = scmp.eq.s32.totalorder %s29, 0
      %p120 = por %p118, %p119
      %s121 = ssub.s32 %s31, %s38
      %p122 = scmp.eq.s32.totalorder %s121, 0
      %s124 = sadd.s32 %s123, 1
      %s125 = scalar_select %p122, %s123, %s124
      %p128 = pneg %p122
      %p129 = scmp.eq.s32.totalorder %s23, 7
      %p130 = por %p128, %p129
      %p131 = scmp.ne.s32.totalorder %s123, %s126
      %p132 = scmp.eq.s32.totalorder %s23, 0
      %p133 = por %p131, %p132
      %p134 = scmp.ne.s32.totalorder %s123, %s126
      %p135 = scmp.eq.s32.totalorder %s28, 7
      %p136 = por %p134, %p135
      %p137 = scmp.ne.s32.totalorder %s126, %s127
      %p138 = scmp.eq.s32.totalorder %s28, 0
      %p139 = por %p137, %p138
      %p140 = scmp.ne.s32.totalorder %s126, %s127
      %p141 = scmp.eq.s32.totalorder %s29, 7
      %p142 = por %p140, %p141
      %p144 = scmp.ne.s32.totalorder %s127, %s143
      %p145 = scmp.eq.s32.totalorder %s29, 0
      %p146 = por %p144, %p145
      %s148 = sadd.s32 %s147, 1
      %p151 = scmp.eq.s32.totalorder %s23, 7
      %p152 = scmp.ne.s32.totalorder %s147, %s149
      %p153 = scmp.eq.s32.totalorder %s23, 0
      %p154 = por %p152, %p153
      %p155 = scmp.ne.s32.totalorder %s147, %s149
      %p156 = scmp.eq.s32.totalorder %s28, 7
      %p157 = por %p155, %p156
      %p158 = scmp.ne.s32.totalorder %s149, %s150
      %p159 = scmp.eq.s32.totalorder %s28, 0
      %p160 = por %p158, %p159
      %p161 = scmp.ne.s32.totalorder %s149, %s150
      %p162 = scmp.eq.s32.totalorder %s29, 7
      %p163 = por %p161, %p162
      %p165 = scmp.ne.s32.totalorder %s150, %s164
      %p166 = scmp.eq.s32.totalorder %s29, 0
      %p167 = por %p165, %p166
      %s168 = ssub.s32 %s30, %s42
      %p169 = scmp.eq.s32.totalorder %s168, 0
      %s171 = sadd.s32 %s170, 1
      %s172 = scalar_select %p169, %s170, %s171
      %p175 = pneg %p169
      %p176 = scmp.eq.s32.totalorder %s23, 7
      %p177 = por %p175, %p176
      %p178 = scmp.ne.s32.totalorder %s170, %s173
      %p179 = scmp.eq.s32.totalorder %s23, 0
      %p180 = por %p178, %p179
      %p181 = scmp.ne.s32.totalorder %s170, %s173
      %p182 = scmp.eq.s32.totalorder %s28, 7
      %p183 = por %p181, %p182
      %p184 = scmp.ne.s32.totalorder %s173, %s174
      %p185 = scmp.eq.s32.totalorder %s28, 0
      %p186 = por %p184, %p185
      %p187 = scmp.ne.s32.totalorder %s173, %s174
      %p188 = scmp.eq.s32.totalorder %s29, 7
      %p189 = por %p187, %p188
      %p191 = scmp.ne.s32.totalorder %s174, %s190
      %p192 = scmp.eq.s32.totalorder %s29, 0
      %p193 = por %p191, %p192
      %p194 = scmp.le.s32.totalorder 1, %s23
      %p195 = scmp.lt.s32.totalorder %s23, 9
      %p196 = pnand %p194, %p195
      %p197 = pneg %p196
      // Predicated region
      $region9: #{tpu_custom_call.1} parent=5 // pred_check
        _
      $region10: #{tpu_custom_call.1} parent=5 // pred_check_branch
        %199 = sbr.rel (%p196) target = $region12
      $region11: #{tpu_custom_call.1} parent=5 // pred_region
        %s200 = ssub.s32 %s23, 1
        // Predicated region
        $region13: #{tpu_custom_call.1} parent=11 // pred_check
          %p201 = pneg %p160
        $region14: #{tpu_custom_call.1} parent=11 // pred_check_branch
          %203 = sbr.rel (%p201) target = $region16
        $region15: #{tpu_custom_call.1} parent=11 // pred_region
          %205 = vsyncadd [#allocation11], 0
          %s206 = sshll.u32 %s4, 4
          %s207 = int_to_ptr.hbm [resolvable:$true] %s206
          %s208 = sshll.u32 [#allocation12], 4
          %s209 = int_to_ptr.vmem [resolvable:$true] %s208
          %214 = dma.hbm_to_vmem [thread:$0]  %s207, 1024, %s209, [#allocation11], 64, 64, 4
        $region16: #{tpu_custom_call.1} parent=11 // pred_fallthru
          _
      $region12: #{tpu_custom_call.1} parent=5 // pred_fallthru
        _
      %p215 = scmp.lt.s32.totalorder %s23, 8
      // Predicated region
      $region17: #{tpu_custom_call.1} parent=5 // pred_check
        %p216 = pneg %p215
      $region18: #{tpu_custom_call.1} parent=5 // pred_check_branch
        %218 = sbr.rel (%p216) target = $region20
      $region19: #{tpu_custom_call.1} parent=5 // pred_region
        // Predicated region
        $region21: #{tpu_custom_call.1} parent=19 // pred_check
          %p219 = pneg %p55
        $region22: #{tpu_custom_call.1} parent=19 // pred_check_branch
          %221 = sbr.rel (%p219) target = $region24
        $region23: #{tpu_custom_call.1} parent=19 // pred_region
          %s222 = sand.u32 %s45, 1
          %s223 = scalar_lea.sflag [#allocation5], %s222
          %s224 = sand.u32 %s45, 1
          %s225 = smul.addr %s224, 32
          %s226 = scalar_lea.vmem [#allocation4], %s225
          %228 = vsyncadd %s223, 0
          %s229 = smul.addr %s30, 8
          %s230 = smul.addr %s229, 4
          %s231 = scalar_lea.hbm %s0, %s230
          %s232 = sshll.u32 %s231, 4
          %s233 = int_to_ptr.hbm [resolvable:$true] %s232
          %s234 = sshll.u32 %s226, 4
          %s235 = int_to_ptr.vmem [resolvable:$true] %s234
          %240 = dma.hbm_to_vmem [thread:$0]  %s233, 512, %s235, %s223, 64, 64, 4
        $region24: #{tpu_custom_call.1} parent=19 // pred_fallthru
          _
        // Predicated region
        $region25: #{tpu_custom_call.1} parent=19 // pred_check
          %p241 = pneg %p81
        $region26: #{tpu_custom_call.1} parent=19 // pred_check_branch
          %243 = sbr.rel (%p241) target = $region28
        $region27: #{tpu_custom_call.1} parent=19 // pred_region
          %s244 = sand.u32 %s23, 1
          %s245 = scalar_lea.sflag [#allocation8], %s244
          %s246 = sand.u32 %s71, 1
          %s247 = smul.addr %s246, 576
          %s248 = scalar_lea.vmem [#allocation7], %s247
          %250 = vsyncadd %s245, 0
          %s251 = smul.addr %s31, 144
          %s252 = smul.addr %s251, 4
          %s253 = scalar_lea.hbm %s1, %s252
          %s254 = sshll.u32 %s253, 4
          %s255 = int_to_ptr.hbm [resolvable:$true] %s254
          %s256 = sshll.u32 %s248, 4
          %s257 = int_to_ptr.vmem [resolvable:$true] %s256
          %262 = dma.hbm_to_vmem [thread:$0]  %s255, 9216, %s257, %s245, 64, 64, 4
        $region28: #{tpu_custom_call.1} parent=19 // pred_fallthru
          _
        // Predicated region
        $region29: #{tpu_custom_call.1} parent=19 // pred_check
          %p263 = pneg %p107
        $region30: #{tpu_custom_call.1} parent=19 // pred_check_branch
          %265 = sbr.rel (%p263) target = $region32
        $region31: #{tpu_custom_call.1} parent=19 // pred_region
          %s266 = sand.u32 %s23, 1
          %s267 = scalar_lea.sflag [#allocation8], %s266
          %s268 = sand.u32 %s97, 1
          %s269 = scalar_lea.vmem [#allocation9], %s268
          %271 = vsyncadd %s267, 0
          %s272 = scalar_lea.hbm %s2, %s31
          %s274 = sshll.u32 %s272, 4
          %s275 = int_to_ptr.hbm [resolvable:$true] %s274
          %s276 = sshll.u32 %s269, 4
          %s277 = int_to_ptr.vmem [resolvable:$true] %s276
          %279 = dma.hbm_to_vmem [thread:$0]  %s275, 16, %s277, %s267
        $region32: #{tpu_custom_call.1} parent=19 // pred_fallthru
          _
        // Predicated region
        $region33: #{tpu_custom_call.1} parent=19 // pred_check
          %p280 = pneg %p133
        $region34: #{tpu_custom_call.1} parent=19 // pred_check_branch
          %282 = sbr.rel (%p280) target = $region36
        $region35: #{tpu_custom_call.1} parent=19 // pred_region
          %s283 = sand.u32 %s23, 1
          %s284 = scalar_lea.sflag [#allocation11], %s283
          %s285 = sand.u32 %s123, 1
          %s286 = scalar_lea.vmem [#allocation10], %s285
          %288 = vsyncadd %s284, 0
          %s289 = scalar_lea.hbm %s3, %s31
          %s291 = sshll.u32 %s289, 4
          %s292 = int_to_ptr.hbm [resolvable:$true] %s291
          %s293 = sshll.u32 %s286, 4
          %s294 = int_to_ptr.vmem [resolvable:$true] %s293
          %296 = dma.hbm_to_vmem [thread:$0]  %s292, 16, %s294, %s284
        $region36: #{tpu_custom_call.1} parent=19 // pred_fallthru
          _
      $region20: #{tpu_custom_call.1} parent=5 // pred_fallthru
        _
      %p297 = scmp.le.s32.totalorder 1, %s23
      %p298 = scmp.lt.s32.totalorder %s23, 9
      %p299 = pnand %p297, %p298
      %p300 = pneg %p299
      // Predicated region
      $region37: #{tpu_custom_call.1} parent=5 // pred_check
        _
      $region38: #{tpu_custom_call.1} parent=5 // pred_check_branch
        %302 = sbr.rel (%p299) target = $region40
      $region39: #{tpu_custom_call.1} parent=5 // pred_region
        %s303 = ssub.s32 %s23, 1
        %s304 = sand.u32 %s48, 1
        %s305 = scalar_lea.sflag [#allocation5], %s304
        %s306 = sand.u32 %s48, 1
        %s307 = smul.addr %s306, 32
        %s308 = scalar_lea.vmem [#allocation4], %s307
        // Predicated region
        $region41: #{tpu_custom_call.1} parent=39 // pred_check
          %p309 = pneg %p61
        $region42: #{tpu_custom_call.1} parent=39 // pred_check_branch
          %311 = sbr.rel (%p309) target = $region44
        $region43: #{tpu_custom_call.1} parent=39 // pred_region
          %313 = dma.done %s305, 512
        $region44: #{tpu_custom_call.1} parent=39 // pred_fallthru
          _
        %s314 = sand.u32 %s28, 1
        %s315 = scalar_lea.sflag [#allocation8], %s314
        %s316 = sand.u32 %s74, 1
        %s317 = smul.addr %s316, 576
        %s318 = scalar_lea.vmem [#allocation7], %s317
        // Predicated region
        $region45: #{tpu_custom_call.1} parent=39 // pred_check
          %p319 = pneg %p87
        $region46: #{tpu_custom_call.1} parent=39 // pred_check_branch
          %321 = sbr.rel (%p319) target = $region48
        $region47: #{tpu_custom_call.1} parent=39 // pred_region
          %323 = dma.done %s315, 9216
        $region48: #{tpu_custom_call.1} parent=39 // pred_fallthru
          _
        %s324 = sand.u32 %s28, 1
        %s325 = scalar_lea.sflag [#allocation8], %s324
        %s326 = sand.u32 %s100, 1
        %s327 = scalar_lea.vmem [#allocation9], %s326
        // Predicated region
        $region49: #{tpu_custom_call.1} parent=39 // pred_check
          %p328 = pneg %p113
        $region50: #{tpu_custom_call.1} parent=39 // pred_check_branch
          %330 = sbr.rel (%p328) target = $region52
        $region51: #{tpu_custom_call.1} parent=39 // pred_region
          %332 = dma.done %s325, 16
        $region52: #{tpu_custom_call.1} parent=39 // pred_fallthru
          _
        %s333 = sand.u32 %s28, 1
        %s334 = scalar_lea.sflag [#allocation11], %s333
        %s335 = sand.u32 %s126, 1
        %s336 = scalar_lea.vmem [#allocation10], %s335
        // Predicated region
        $region53: #{tpu_custom_call.1} parent=39 // pred_check
          %p337 = pneg %p139
        $region54: #{tpu_custom_call.1} parent=39 // pred_check_branch
          %339 = sbr.rel (%p337) target = $region56
        $region55: #{tpu_custom_call.1} parent=39 // pred_region
          %341 = dma.done %s334, 16
        $region56: #{tpu_custom_call.1} parent=39 // pred_fallthru
          _
        // Predicated region
        $region57: #{tpu_custom_call.1} parent=39 // pred_check
          %p342 = pneg %p160
        $region58: #{tpu_custom_call.1} parent=39 // pred_check_branch
          %344 = sbr.rel (%p342) target = $region60
        $region59: #{tpu_custom_call.1} parent=39 // pred_region
          %346 = dma.done [#allocation11], 1024
        $region60: #{tpu_custom_call.1} parent=39 // pred_fallthru
          _
        %s347 = sand.u32 %s48, 1
        %s348 = scalar_lea.sflag [#allocation5], %s347
        %s349 = sand.u32 %s48, 1
        %s350 = smul.addr %s349, 32
        %s351 = scalar_lea.vmem [#allocation4], %s350
        %p352 = pneg %p61
        %p353 = pneg %p58
        %s354 = sand.u32 %s28, 1
        %s355 = scalar_lea.sflag [#allocation8], %s354
        %s356 = sand.u32 %s74, 1
        %s357 = smul.addr %s356, 576
        %s358 = scalar_lea.vmem [#allocation7], %s357
        %p359 = pneg %p87
        %p360 = pneg %p84
        %s361 = sand.u32 %s28, 1
        %s362 = scalar_lea.sflag [#allocation8], %s361
        %s363 = sand.u32 %s100, 1
        %s364 = scalar_lea.vmem [#allocation9], %s363
        %p365 = pneg %p113
        %p366 = pneg %p110
        %s367 = sand.u32 %s28, 1
        %s368 = scalar_lea.sflag [#allocation11], %s367
        %s369 = sand.u32 %s126, 1
        %s370 = scalar_lea.vmem [#allocation10], %s369
        %p371 = pneg %p139
        %p372 = pneg %p136
        %p373 = pneg %p160
        %p374 = pneg %p157
        %p375 = pneg %p186
        %p376 = pneg %p183
        %s377 = sand.u32 %s173, 1
        %s378 = scalar_lea.sflag [#allocation6], %s377
        %s379 = sand.u32 %s173, 1
        %s380 = smul.addr %s379, 32
        %s381 = scalar_lea.vmem [#allocation13], %s380
        %p383 = scmp.eq.s32.totalorder %s33, 0
        // Predicated region
        $region61: #{tpu_custom_call.1} parent=39 // pred_check
          %p384 = pneg %p383
        $region62: #{tpu_custom_call.1} parent=39 // pred_check_branch
          %386 = sbr.rel (%p384) target = $region64
        $region63: #{tpu_custom_call.1} parent=39 // pred_region
          %387 = vst [vmem:[#allocation2] sm:$0xf] 0
          %388 = vst [vmem:[#allocation2 + $0x4] sm:$0x3] 0
          %389 = vst [vmem:[#allocation2 + $0x8] sm:$0xf] 0
          %390 = vst [vmem:[#allocation2 + $0xc] sm:$0x3] 0
          %s391 = scalar_lea.vmem [#allocation2], 80
          %392 = vst [vmem:[%s391] sm:$0xf] 0
          %393 = vst [vmem:[%s391 + $0x4] sm:$0x3] 0
          %394 = vst [vmem:[%s391 + $0x8] sm:$0xf] 0
          %395 = vst [vmem:[%s391 + $0xc] sm:$0x3] 0
          %396 = vst [vmem:[#allocation2] sm:$0x1] 0
          %397 = vst [vmem:[#allocation2 + $0x8] sm:$0x1] 0
          %398 = vst [vmem:[#allocation2 + $0x10] sm:$0x1] 0
          %399 = vst [vmem:[#allocation2 + $0x18] sm:$0x1] 0
          %400 = vst [vmem:[#allocation2 + $0x20] sm:$0x1] 0
          %401 = vst [vmem:[#allocation2 + $0x28] sm:$0x1] 0
          %402 = vst [vmem:[#allocation2 + $0x30] sm:$0x1] 0
          %403 = vst [vmem:[#allocation2 + $0x38] sm:$0x1] 0
          %404 = vst [vmem:[#allocation2 + $0x40] sm:$0x1] 0
          %405 = vst [vmem:[#allocation2 + $0x48] sm:$0x1] 0
          %406 = vst [vmem:[#allocation2 + $0x50] sm:$0x1] 0
          %407 = vst [vmem:[#allocation2 + $0x58] sm:$0x1] 0
          %408 = vst [vmem:[#allocation2 + $0x4] sm:$0x2] 0
          %409 = vst [vmem:[#allocation2 + $0xc] sm:$0x2] 0
          %410 = vst [vmem:[#allocation2 + $0x14] sm:$0x2] 0
          %411 = vst [vmem:[#allocation2 + $0x1c] sm:$0x2] 0
          %412 = vst [vmem:[#allocation2 + $0x24] sm:$0x2] 0
          %413 = vst [vmem:[#allocation2 + $0x2c] sm:$0x2] 0
          %414 = vst [vmem:[#allocation2 + $0x34] sm:$0x2] 0
          %415 = vst [vmem:[#allocation2 + $0x3c] sm:$0x2] 0
          %416 = vst [vmem:[#allocation2 + $0x44] sm:$0x2] 0
          %417 = vst [vmem:[#allocation2 + $0x4c] sm:$0x2] 0
          %418 = vst [vmem:[#allocation2 + $0x54] sm:$0x2] 0
          %419 = vst [vmem:[#allocation2 + $0x5c] sm:$0x2] 0
          %v420 = vld [vmem:[%s308] sm:$0xf]
          %v421 = vld [vmem:[%s308 + $0x4] sm:$0xf]
          %v422 = vld [vmem:[%s308 + $0x8] sm:$0xf]
          %v423 = vld [vmem:[%s308 + $0xc] sm:$0xf]
          %v424 = vld [vmem:[%s308 + $0x10] sm:$0xf]
          %v425 = vld [vmem:[%s308 + $0x14] sm:$0xf]
          %v426 = vld [vmem:[%s308 + $0x18] sm:$0xf]
          %v427 = vld [vmem:[%s308 + $0x1c] sm:$0xf]
          %v436 = vrot.slane %v420, 7
          %v437 = vrot.slane %v436, 4
          %v438 = vrot.slane %v421, 7
          %v439 = vrot.slane %v438, 4
          %v440 = vrot.slane %v422, 7
          %v441 = vrot.slane %v440, 4
          %v442 = vrot.slane %v423, 7
          %v443 = vrot.slane %v442, 4
          %v444 = vrot.slane %v424, 7
          %v445 = vrot.slane %v444, 4
          %v446 = vrot.slane %v425, 7
          %v447 = vrot.slane %v446, 4
          %v448 = vrot.slane %v426, 7
          %v449 = vrot.slane %v448, 4
          %v450 = vrot.slane %v427, 7
          %v451 = vrot.slane %v450, 4
          %s468 = scalar_lea.vmem [#allocation2], 16
          %469 = vst [vmem:[%s468] sm:$0xe] %v436
          %470 = vst [vmem:[%s468 + $0x4] sm:$0x1] %v437
          %471 = vst [vmem:[%s468 + $0x8] sm:$0xe] %v438
          %472 = vst [vmem:[%s468 + $0xc] sm:$0x1] %v439
          %473 = vst [vmem:[%s468 + $0x10] sm:$0xe] %v440
          %474 = vst [vmem:[%s468 + $0x14] sm:$0x1] %v441
          %475 = vst [vmem:[%s468 + $0x18] sm:$0xe] %v442
          %476 = vst [vmem:[%s468 + $0x1c] sm:$0x1] %v443
          %477 = vst [vmem:[%s468 + $0x20] sm:$0xe] %v444
          %478 = vst [vmem:[%s468 + $0x24] sm:$0x1] %v445
          %479 = vst [vmem:[%s468 + $0x28] sm:$0xe] %v446
          %480 = vst [vmem:[%s468 + $0x2c] sm:$0x1] %v447
          %481 = vst [vmem:[%s468 + $0x30] sm:$0xe] %v448
          %482 = vst [vmem:[%s468 + $0x34] sm:$0x1] %v449
          %483 = vst [vmem:[%s468 + $0x38] sm:$0xe] %v450
          %484 = vst [vmem:[%s468 + $0x3c] sm:$0x1] %v451
        $region64: #{tpu_custom_call.1} parent=39 // pred_fallthru
          _
        %p485 = scmp.lt.s32.totalorder %s33, 2
        // Predicated region
        $region65: #{tpu_custom_call.1} parent=39 // pred_check
          %p486 = pneg %p485
        $region66: #{tpu_custom_call.1} parent=39 // pred_check_branch
          %488 = sbr.rel (%p486) target = $region68
        $region67: #{tpu_custom_call.1} parent=39 // pred_region
          %v489 = vld [vmem:[#allocation2] sm:$0xf]
          %v490 = vld [vmem:[#allocation2 + $0x8] sm:$0xf]
          %v491 = vld [vmem:[#allocation2 + $0x10] sm:$0xf]
          %v492 = vld [vmem:[#allocation2 + $0x18] sm:$0xf]
          %v493 = vld [vmem:[#allocation2 + $0x20] sm:$0xf]
          %v494 = vld [vmem:[#allocation2 + $0x28] sm:$0xf]
          %v495 = vld [vmem:[#allocation2 + $0x30] sm:$0xf]
          %v496 = vld [vmem:[#allocation2 + $0x38] sm:$0xf]
          %v497 = vld [vmem:[%s318] sm:$0xf]
          %v498 = vld [vmem:[%s318 + $0x4] sm:$0xf]
          %v499 = vld [vmem:[%s318 + $0x8] sm:$0xf]
          %v500 = vld [vmem:[%s318 + $0xc] sm:$0xf]
          %v501 = vld [vmem:[%s318 + $0x10] sm:$0xf]
          %v502 = vld [vmem:[%s318 + $0x14] sm:$0xf]
          %v503 = vld [vmem:[%s318 + $0x18] sm:$0xf]
          %v504 = vld [vmem:[%s318 + $0x1c] sm:$0xf]
          %v505 = vld [vmem:[%s318 + $0x20] sm:$0xf]
          %v506 = vld [vmem:[%s318 + $0x24] sm:$0xf]
          %v507 = vld [vmem:[%s318 + $0x28] sm:$0xf]
          %v508 = vld [vmem:[%s318 + $0x2c] sm:$0xf]
          %v509 = vld [vmem:[%s318 + $0x30] sm:$0xf]
          %v510 = vld [vmem:[%s318 + $0x34] sm:$0xf]
          %v511 = vld [vmem:[%s318 + $0x38] sm:$0xf]
          %v512 = vld [vmem:[%s318 + $0x3c] sm:$0xf]
          %v521 = vunpack.c.l.b16 %v489
          %v522 = vunpack.c.l.b16 %v490
          %v523 = vunpack.c.l.b16 %v491
          %v524 = vunpack.c.l.b16 %v492
          %v525 = vunpack.c.l.b16 %v493
          %v526 = vunpack.c.l.b16 %v494
          %v527 = vunpack.c.l.b16 %v495
          %v528 = vunpack.c.l.b16 %v496
          %v529 = vpack.c.b16 %v522, %v521
          %v530 = vpack.c.b16 %v524, %v523
          %v531 = vpack.c.b16 %v526, %v525
          %v532 = vpack.c.b16 %v528, %v527
          %v553 = vunpack.c.l.b16 %v497
          %v554 = vunpack.c.l.b16 %v498
          %v555 = vunpack.c.l.b16 %v499
          %v556 = vunpack.c.l.b16 %v500
          %v557 = vunpack.c.l.b16 %v501
          %v558 = vunpack.c.l.b16 %v502
          %v559 = vunpack.c.l.b16 %v503
          %v560 = vunpack.c.l.b16 %v504
          %v561 = vunpack.c.l.b16 %v505
          %v562 = vunpack.c.l.b16 %v506
          %v563 = vunpack.c.l.b16 %v507
          %v564 = vunpack.c.l.b16 %v508
          %v565 = vunpack.c.l.b16 %v509
          %v566 = vunpack.c.l.b16 %v510
          %v567 = vunpack.c.l.b16 %v511
          %v568 = vunpack.c.l.b16 %v512
          %v569 = vpack.c.b16 %v554, %v553
          %v570 = vpack.c.b16 %v556, %v555
          %v571 = vpack.c.b16 %v558, %v557
          %v572 = vpack.c.b16 %v560, %v559
          %v573 = vpack.c.b16 %v562, %v561
          %v574 = vpack.c.b16 %v564, %v563
          %v575 = vpack.c.b16 %v566, %v565
          %v576 = vpack.c.b16 %v568, %v567
          %585 = vmatpush.bf16.msra.mxu0 %v576
          %586 = vmatpush.bf16.msra.mxu0 %v575
          %587 = vmatpush.bf16.msra.mxu0 %v574
          %588 = vmatpush.bf16.msra.mxu0 %v573
          %589 = vmatpush.bf16.msra.mxu0 %v572
          %590 = vmatpush.bf16.msra.mxu0 %v571
          %591 = vmatpush.bf16.msra.mxu0 %v570
          %592 = vmatpush.bf16.msra.mxu0 %v569
          %593 = vmatmul.bf16.gmra.mxu0 %v529
          %v594 = vpop.f32.mrf.mxu0
          %v595 = vadd.f32 0.0, %v594
          %v596 = vpop.f32.mrf.mxu0
          %v597 = vadd.f32 0.0, %v596
          %598 = vmatmul.bf16.gmra.mxu0 %v530
          %v599 = vpop.f32.mrf.mxu0
          %v600 = vadd.f32 0.0, %v599
          %v601 = vpop.f32.mrf.mxu0
          %v602 = vadd.f32 0.0, %v601
          %603 = vmatmul.bf16.gmra.mxu0 %v531
          %v604 = vpop.f32.mrf.mxu0
          %v605 = vadd.f32 0.0, %v604
          %v606 = vpop.f32.mrf.mxu0
          %v607 = vadd.f32 0.0, %v606
          %608 = vmatmul.bf16.gmra.mxu0 %v532
          %v609 = vpop.f32.mrf.mxu0
          %v610 = vadd.f32 0.0, %v609
          %v611 = vpop.f32.mrf.mxu0
          %v612 = vadd.f32 0.0, %v611
          %613 = vdwg.mxu0
          %614 = vst [vmem:[#allocation3] sm:$0xff] %v595
          %615 = vst [vmem:[#allocation3 + $0x8] sm:$0xff] %v597
          %616 = vst [vmem:[#allocation3 + $0x10] sm:$0xff] %v600
          %617 = vst [vmem:[#allocation3 + $0x18] sm:$0xff] %v602
          %618 = vst [vmem:[#allocation3 + $0x20] sm:$0xff] %v605
          %619 = vst [vmem:[#allocation3 + $0x28] sm:$0xff] %v607
          %620 = vst [vmem:[#allocation3 + $0x30] sm:$0xff] %v610
          %621 = vst [vmem:[#allocation3 + $0x38] sm:$0xff] %v612
          %v622 = vld [vmem:[#allocation2] sm:$0xe]
          %v623 = vld [vmem:[#allocation2 + $0x4] sm:$0x1]
          %v624 = vld [vmem:[#allocation2 + $0x8] sm:$0xe]
          %v625 = vld [vmem:[#allocation2 + $0xc] sm:$0x1]
          %v626 = vld [vmem:[#allocation2 + $0x10] sm:$0xe]
          %v627 = vld [vmem:[#allocation2 + $0x14] sm:$0x1]
          %v628 = vld [vmem:[#allocation2 + $0x18] sm:$0xe]
          %v629 = vld [vmem:[#allocation2 + $0x1c] sm:$0x1]
          %v630 = vld [vmem:[#allocation2 + $0x20] sm:$0xe]
          %v631 = vld [vmem:[#allocation2 + $0x24] sm:$0x1]
          %v632 = vld [vmem:[#allocation2 + $0x28] sm:$0xe]
          %v633 = vld [vmem:[#allocation2 + $0x2c] sm:$0x1]
          %v634 = vld [vmem:[#allocation2 + $0x30] sm:$0xe]
          %v635 = vld [vmem:[#allocation2 + $0x34] sm:$0x1]
          %v636 = vld [vmem:[#allocation2 + $0x38] sm:$0xe]
          %v637 = vld [vmem:[#allocation2 + $0x3c] sm:$0x1]
          %vm654 = vcmask 1042432
          %vm655 = vcmask 1046532
          %vm656 = vmor %vm654, %vm655
          %v657 = vrot.slane %v622, 5
          %v658 = vrot.slane %v657, 4
          %v659 = vrot.slane %v623, 5
          %v660 = vsel %vm656, %v658, %v659
          %v661 = vrot.slane %v624, 5
          %v662 = vrot.slane %v661, 4
          %v663 = vrot.slane %v625, 5
          %v664 = vsel %vm656, %v662, %v663
          %v665 = vrot.slane %v626, 5
          %v666 = vrot.slane %v665, 4
          %v667 = vrot.slane %v627, 5
          %v668 = vsel %vm656, %v666, %v667
          %v669 = vrot.slane %v628, 5
          %v670 = vrot.slane %v669, 4
          %v671 = vrot.slane %v629, 5
          %v672 = vsel %vm656, %v670, %v671
          %v673 = vrot.slane %v630, 5
          %v674 = vrot.slane %v673, 4
          %v675 = vrot.slane %v631, 5
          %v676 = vsel %vm656, %v674, %v675
          %v677 = vrot.slane %v632, 5
          %v678 = vrot.slane %v677, 4
          %v679 = vrot.slane %v633, 5
          %v680 = vsel %vm656, %v678, %v679
          %v681 = vrot.slane %v634, 5
          %v682 = vrot.slane %v681, 4
          %v683 = vrot.slane %v635, 5
          %v684 = vsel %vm656, %v682, %v683
          %v685 = vrot.slane %v636, 5
          %v686 = vrot.slane %v685, 4
          %v687 = vrot.slane %v637, 5
          %v688 = vsel %vm656, %v686, %v687
          %s689 = scalar_lea.vmem %s318, 64 [#allocation7]
          %v690 = vld [vmem:[%s689] sm:$0xf]
          %v691 = vld [vmem:[%s689 + $0x4] sm:$0xf]
          %v692 = vld [vmem:[%s689 + $0x8] sm:$0xf]
          %v693 = vld [vmem:[%s689 + $0xc] sm:$0xf]
          %v694 = vld [vmem:[%s689 + $0x10] sm:$0xf]
          %v695 = vld [vmem:[%s689 + $0x14] sm:$0xf]
          %v696 = vld [vmem:[%s689 + $0x18] sm:$0xf]
          %v697 = vld [vmem:[%s689 + $0x1c] sm:$0xf]
          %v698 = vld [vmem:[%s689 + $0x20] sm:$0xf]
          %v699 = vld [vmem:[%s689 + $0x24] sm:$0xf]
          %v700 = vld [vmem:[%s689 + $0x28] sm:$0xf]
          %v701 = vld [vmem:[%s689 + $0x2c] sm:$0xf]
          %v702 = vld [vmem:[%s689 + $0x30] sm:$0xf]
          %v703 = vld [vmem:[%s689 + $0x34] sm:$0xf]
          %v704 = vld [vmem:[%s689 + $0x38] sm:$0xf]
          %v705 = vld [vmem:[%s689 + $0x3c] sm:$0xf]
          %v706 = vunpack.c.l.b16 %v660
          %v707 = vunpack.c.l.b16 %v664
          %v708 = vunpack.c.l.b16 %v668
          %v709 = vunpack.c.l.b16 %v672
          %v710 = vunpack.c.l.b16 %v676
          %v711 = vunpack.c.l.b16 %v680
          %v712 = vunpack.c.l.b16 %v684
          %v713 = vunpack.c.l.b16 %v688
          %v714 = vpack.c.b16 %v707, %v706
          %v715 = vpack.c.b16 %v709, %v708
          %v716 = vpack.c.b16 %v711, %v710
          %v717 = vpack.c.b16 %v713, %v712
          %v738 = vunpack.c.l.b16 %v690
          %v739 = vunpack.c.l.b16 %v691
          %v740 = vunpack.c.l.b16 %v692
          %v741 = vunpack.c.l.b16 %v693
          %v742 = vunpack.c.l.b16 %v694
          %v743 = vunpack.c.l.b16 %v695
          %v744 = vunpack.c.l.b16 %v696
          %v745 = vunpack.c.l.b16 %v697
          %v746 = vunpack.c.l.b16 %v698
          %v747 = vunpack.c.l.b16 %v699
          %v748 = vunpack.c.l.b16 %v700
          %v749 = vunpack.c.l.b16 %v701
          %v750 = vunpack.c.l.b16 %v702
          %v751 = vunpack.c.l.b16 %v703
          %v752 = vunpack.c.l.b16 %v704
          %v753 = vunpack.c.l.b16 %v705
          %v754 = vpack.c.b16 %v739, %v738
          %v755 = vpack.c.b16 %v741, %v740
          %v756 = vpack.c.b16 %v743, %v742
          %v757 = vpack.c.b16 %v745, %v744
          %v758 = vpack.c.b16 %v747, %v746
          %v759 = vpack.c.b16 %v749, %v748
          %v760 = vpack.c.b16 %v751, %v750
          %v761 = vpack.c.b16 %v753, %v752
          %770 = vmatpush.bf16.msra.mxu0 %v761
          %771 = vmatpush.bf16.msra.mxu0 %v760
          %772 = vmatpush.bf16.msra.mxu0 %v759
          %773 = vmatpush.bf16.msra.mxu0 %v758
          %774 = vmatpush.bf16.msra.mxu0 %v757
          %775 = vmatpush.bf16.msra.mxu0 %v756
          %776 = vmatpush.bf16.msra.mxu0 %v755
          %777 = vmatpush.bf16.msra.mxu0 %v754
          %778 = vmatmul.bf16.gmra.mxu0 %v714
          %v779 = vpop.f32.mrf.mxu0
          %v780 = vadd.f32 0.0, %v779
          %v781 = vpop.f32.mrf.mxu0
          %v782 = vadd.f32 0.0, %v781
          %783 = vmatmul.bf16.gmra.mxu0 %v715
          %v784 = vpop.f32.mrf.mxu0
          %v785 = vadd.f32 0.0, %v784
          %v786 = vpop.f32.mrf.mxu0
          %v787 = vadd.f32 0.0, %v786
          %788 = vmatmul.bf16.gmra.mxu0 %v716
          %v789 = vpop.f32.mrf.mxu0
          %v790 = vadd.f32 0.0, %v789
          %v791 = vpop.f32.mrf.mxu0
          %v792 = vadd.f32 0.0, %v791
          %793 = vmatmul.bf16.gmra.mxu0 %v717
          %v794 = vpop.f32.mrf.mxu0
          %v795 = vadd.f32 0.0, %v794
          %v796 = vpop.f32.mrf.mxu0
          %v797 = vadd.f32 0.0, %v796
          %798 = vdwg.mxu0
          %v799 = vld [vmem:[#allocation3] sm:$0xff]
          %v800 = vld [vmem:[#allocation3 + $0x8] sm:$0xff]
          %v801 = vld [vmem:[#allocation3 + $0x10] sm:$0xff]
          %v802 = vld [vmem:[#allocation3 + $0x18] sm:$0xff]
          %v803 = vld [vmem:[#allocation3 + $0x20] sm:$0xff]
          %v804 = vld [vmem:[#allocation3 + $0x28] sm:$0xff]
          %v805 = vld [vmem:[#allocation3 + $0x30] sm:$0xff]
          %v806 = vld [vmem:[#allocation3 + $0x38] sm:$0xff]
          %v807 = vadd.f32 %v799, %v780
          %v808 = vadd.f32 %v800, %v782
          %v809 = vadd.f32 %v801, %v785
          %v810 = vadd.f32 %v802, %v787
          %v811 = vadd.f32 %v803, %v790
          %v812 = vadd.f32 %v804, %v792
          %v813 = vadd.f32 %v805, %v795
          %v814 = vadd.f32 %v806, %v797
          %815 = vst [vmem:[#allocation3] sm:$0xff] %v807
          %816 = vst [vmem:[#allocation3 + $0x8] sm:$0xff] %v808
          %817 = vst [vmem:[#allocation3 + $0x10] sm:$0xff] %v809
          %818 = vst [vmem:[#allocation3 + $0x18] sm:$0xff] %v810
          %819 = vst [vmem:[#allocation3 + $0x20] sm:$0xff] %v811
          %820 = vst [vmem:[#allocation3 + $0x28] sm:$0xff] %v812
          %821 = vst [vmem:[#allocation3 + $0x30] sm:$0xff] %v813
          %822 = vst [vmem:[#allocation3 + $0x38] sm:$0xff] %v814
          %v823 = vld [vmem:[#allocation2] sm:$0xc]
          %v824 = vld [vmem:[#allocation2 + $0x4] sm:$0x3]
          %v825 = vld [vmem:[#allocation2 + $0x8] sm:$0xc]
          %v826 = vld [vmem:[#allocation2 + $0xc] sm:$0x3]
          %v827 = vld [vmem:[#allocation2 + $0x10] sm:$0xc]
          %v828 = vld [vmem:[#allocation2 + $0x14] sm:$0x3]
          %v829 = vld [vmem:[#allocation2 + $0x18] sm:$0xc]
          %v830 = vld [vmem:[#allocation2 + $0x1c] sm:$0x3]
          %v831 = vld [vmem:[#allocation2 + $0x20] sm:$0xc]
          %v832 = vld [vmem:[#allocation2 + $0x24] sm:$0x3]
          %v833 = vld [vmem:[#allocation2 + $0x28] sm:$0xc]
          %v834 = vld [vmem:[#allocation2 + $0x2c] sm:$0x3]
          %v835 = vld [vmem:[#allocation2 + $0x30] sm:$0xc]
          %v836 = vld [vmem:[#allocation2 + $0x34] sm:$0x3]
          %v837 = vld [vmem:[#allocation2 + $0x38] sm:$0xc]
          %v838 = vld [vmem:[#allocation2 + $0x3c] sm:$0x3]
          %vm855 = vcmask 1041408
          %vm856 = vcmask 1045508
          %vm857 = vmor %vm855, %vm856
          %v858 = vrot.slane %v823, 6
          %v859 = vrot.slane %v858, 4
          %v860 = vrot.slane %v824, 6
          %v861 = vsel %vm857, %v859, %v860
          %v862 = vrot.slane %v825, 6
          %v863 = vrot.slane %v862, 4
          %v864 = vrot.slane %v826, 6
          %v865 = vsel %vm857, %v863, %v864
          %v866 = vrot.slane %v827, 6
          %v867 = vrot.slane %v866, 4
          %v868 = vrot.slane %v828, 6
          %v869 = vsel %vm857, %v867, %v868
          %v870 = vrot.slane %v829, 6
          %v871 = vrot.slane %v870, 4
          %v872 = vrot.slane %v830, 6
          %v873 = vsel %vm857, %v871, %v872
          %v874 = vrot.slane %v831, 6
          %v875 = vrot.slane %v874, 4
          %v876 = vrot.slane %v832, 6
          %v877 = vsel %vm857, %v875, %v876
          %v878 = vrot.slane %v833, 6
          %v879 = vrot.slane %v878, 4
          %v880 = vrot.slane %v834, 6
          %v881 = vsel %vm857, %v879, %v880
          %v882 = vrot.slane %v835, 6
          %v883 = vrot.slane %v882, 4
          %v884 = vrot.slane %v836, 6
          %v885 = vsel %vm857, %v883, %v884
          %v886 = vrot.slane %v837, 6
          %v887 = vrot.slane %v886, 4
          %v888 = vrot.slane %v838, 6
          %v889 = vsel %vm857, %v887, %v888
          %s890 = scalar_lea.vmem %s318, 128 [#allocation7]
          %v891 = vld [vmem:[%s890] sm:$0xf]
          %v892 = vld [vmem:[%s890 + $0x4] sm:$0xf]
          %v893 = vld [vmem:[%s890 + $0x8] sm:$0xf]
          %v894 = vld [vmem:[%s890 + $0xc] sm:$0xf]
          %v895 = vld [vmem:[%s890 + $0x10] sm:$0xf]
          %v896 = vld [vmem:[%s890 + $0x14] sm:$0xf]
          %v897 = vld [vmem:[%s890 + $0x18] sm:$0xf]
          %v898 = vld [vmem:[%s890 + $0x1c] sm:$0xf]
          %v899 = vld [vmem:[%s890 + $0x20] sm:$0xf]
          %v900 = vld [vmem:[%s890 + $0x24] sm:$0xf]
          %v901 = vld [vmem:[%s890 + $0x28] sm:$0xf]
          %v902 = vld [vmem:[%s890 + $0x2c] sm:$0xf]
          %v903 = vld [vmem:[%s890 + $0x30] sm:$0xf]
          %v904 = vld [vmem:[%s890 + $0x34] sm:$0xf]
          %v905 = vld [vmem:[%s890 + $0x38] sm:$0xf]
          %v906 = vld [vmem:[%s890 + $0x3c] sm:$0xf]
          %v907 = vunpack.c.l.b16 %v861
          %v908 = vunpack.c.l.b16 %v865
          %v909 = vunpack.c.l.b16 %v869
          %v910 = vunpack.c.l.b16 %v873
          %v911 = vunpack.c.l.b16 %v877
          %v912 = vunpack.c.l.b16 %v881
          %v913 = vunpack.c.l.b16 %v885
          %v914 = vunpack.c.l.b16 %v889
          %v915 = vpack.c.b16 %v908, %v907
          %v916 = vpack.c.b16 %v910, %v909
          %v917 = vpack.c.b16 %v912, %v911
          %v918 = vpack.c.b16 %v914, %v913
          %v939 = vunpack.c.l.b16 %v891
          %v940 = vunpack.c.l.b16 %v892
          %v941 = vunpack.c.l.b16 %v893
          %v942 = vunpack.c.l.b16 %v894
          %v943 = vunpack.c.l.b16 %v895
          %v944 = vunpack.c.l.b16 %v896
          %v945 = vunpack.c.l.b16 %v897
          %v946 = vunpack.c.l.b16 %v898
          %v947 = vunpack.c.l.b16 %v899
          %v948 = vunpack.c.l.b16 %v900
          %v949 = vunpack.c.l.b16 %v901
          %v950 = vunpack.c.l.b16 %v902
          %v951 = vunpack.c.l.b16 %v903
          %v952 = vunpack.c.l.b16 %v904
          %v953 = vunpack.c.l.b16 %v905
          %v954 = vunpack.c.l.b16 %v906
          %v955 = vpack.c.b16 %v940, %v939
          %v956 = vpack.c.b16 %v942, %v941
          %v957 = vpack.c.b16 %v944, %v943
          %v958 = vpack.c.b16 %v946, %v945
          %v959 = vpack.c.b16 %v948, %v947
          %v960 = vpack.c.b16 %v950, %v949
          %v961 = vpack.c.b16 %v952, %v951
          %v962 = vpack.c.b16 %v954, %v953
          %971 = vmatpush.bf16.msra.mxu0 %v962
          %972 = vmatpush.bf16.msra.mxu0 %v961
          %973 = vmatpush.bf16.msra.mxu0 %v960
          %974 = vmatpush.bf16.msra.mxu0 %v959
          %975 = vmatpush.bf16.msra.mxu0 %v958
          %976 = vmatpush.bf16.msra.mxu0 %v957
          %977 = vmatpush.bf16.msra.mxu0 %v956
          %978 = vmatpush.bf16.msra.mxu0 %v955
          %979 = vmatmul.bf16.gmra.mxu0 %v915
          %v980 = vpop.f32.mrf.mxu0
          %v981 = vadd.f32 0.0, %v980
          %v982 = vpop.f32.mrf.mxu0
          %v983 = vadd.f32 0.0, %v982
          %984 = vmatmul.bf16.gmra.mxu0 %v916
          %v985 = vpop.f32.mrf.mxu0
          %v986 = vadd.f32 0.0, %v985
          %v987 = vpop.f32.mrf.mxu0
          %v988 = vadd.f32 0.0, %v987
          %989 = vmatmul.bf16.gmra.mxu0 %v917
          %v990 = vpop.f32.mrf.mxu0
          %v991 = vadd.f32 0.0, %v990
          %v992 = vpop.f32.mrf.mxu0
          %v993 = vadd.f32 0.0, %v992
          %994 = vmatmul.bf16.gmra.mxu0 %v918
          %v995 = vpop.f32.mrf.mxu0
          %v996 = vadd.f32 0.0, %v995
          %v997 = vpop.f32.mrf.mxu0
          %v998 = vadd.f32 0.0, %v997
          %999 = vdwg.mxu0
          %v1000 = vld [vmem:[#allocation3] sm:$0xff]
          %v1001 = vld [vmem:[#allocation3 + $0x8] sm:$0xff]
          %v1002 = vld [vmem:[#allocation3 + $0x10] sm:$0xff]
          %v1003 = vld [vmem:[#allocation3 + $0x18] sm:$0xff]
          %v1004 = vld [vmem:[#allocation3 + $0x20] sm:$0xff]
          %v1005 = vld [vmem:[#allocation3 + $0x28] sm:$0xff]
          %v1006 = vld [vmem:[#allocation3 + $0x30] sm:$0xff]
          %v1007 = vld [vmem:[#allocation3 + $0x38] sm:$0xff]
          %v1008 = vadd.f32 %v1000, %v981
          %v1009 = vadd.f32 %v1001, %v983
          %v1010 = vadd.f32 %v1002, %v986
          %v1011 = vadd.f32 %v1003, %v988
          %v1012 = vadd.f32 %v1004, %v991
          %v1013 = vadd.f32 %v1005, %v993
          %v1014 = vadd.f32 %v1006, %v996
          %v1015 = vadd.f32 %v1007, %v998
          %1016 = vst [vmem:[#allocation3] sm:$0xff] %v1008
          %1017 = vst [vmem:[#allocation3 + $0x8] sm:$0xff] %v1009
          %1018 = vst [vmem:[#allocation3 + $0x10] sm:$0xff] %v1010
          %1019 = vst [vmem:[#allocation3 + $0x18] sm:$0xff] %v1011
          %1020 = vst [vmem:[#allocation3 + $0x20] sm:$0xff] %v1012
          %1021 = vst [vmem:[#allocation3 + $0x28] sm:$0xff] %v1013
          %1022 = vst [vmem:[#allocation3 + $0x30] sm:$0xff] %v1014
          %1023 = vst [vmem:[#allocation3 + $0x38] sm:$0xff] %v1015
          %s1024 = scalar_lea.vmem [#allocation2], 16
          %v1025 = vld [vmem:[%s1024] sm:$0xf]
          %v1026 = vld [vmem:[%s1024 + $0x8] sm:$0xf]
          %v1027 = vld [vmem:[%s1024 + $0x10] sm:$0xf]
          %v1028 = vld [vmem:[%s1024 + $0x18] sm:$0xf]
          %v1029 = vld [vmem:[%s1024 + $0x20] sm:$0xf]
          %v1030 = vld [vmem:[%s1024 + $0x28] sm:$0xf]
          %v1031 = vld [vmem:[%s1024 + $0x30] sm:$0xf]
          %v1032 = vld [vmem:[%s1024 + $0x38] sm:$0xf]
          %s1033 = scalar_lea.vmem %s318, 192 [#allocation7]
          %v1034 = vld [vmem:[%s1033] sm:$0xf]
          %v1035 = vld [vmem:[%s1033 + $0x4] sm:$0xf]
          %v1036 = vld [vmem:[%s1033 + $0x8] sm:$0xf]
          %v1037 = vld [vmem:[%s1033 + $0xc] sm:$0xf]
          %v1038 = vld [vmem:[%s1033 + $0x10] sm:$0xf]
          %v1039 = vld [vmem:[%s1033 + $0x14] sm:$0xf]
          %v1040 = vld [vmem:[%s1033 + $0x18] sm:$0xf]
          %v1041 = vld [vmem:[%s1033 + $0x1c] sm:$0xf]
          %v1042 = vld [vmem:[%s1033 + $0x20] sm:$0xf]
          %v1043 = vld [vmem:[%s1033 + $0x24] sm:$0xf]
          %v1044 = vld [vmem:[%s1033 + $0x28] sm:$0xf]
          %v1045 = vld [vmem:[%s1033 + $0x2c] sm:$0xf]
          %v1046 = vld [vmem:[%s1033 + $0x30] sm:$0xf]
          %v1047 = vld [vmem:[%s1033 + $0x34] sm:$0xf]
          %v1048 = vld [vmem:[%s1033 + $0x38] sm:$0xf]
          %v1049 = vld [vmem:[%s1033 + $0x3c] sm:$0xf]
          %v1058 = vunpack.c.l.b16 %v1025
          %v1059 = vunpack.c.l.b16 %v1026
          %v1060 = vunpack.c.l.b16 %v1027
          %v1061 = vunpack.c.l.b16 %v1028
          %v1062 = vunpack.c.l.b16 %v1029
          %v1063 = vunpack.c.l.b16 %v1030
          %v1064 = vunpack.c.l.b16 %v1031
          %v1065 = vunpack.c.l.b16 %v1032
          %v1066 = vpack.c.b16 %v1059, %v1058
          %v1067 = vpack.c.b16 %v1061, %v1060
          %v1068 = vpack.c.b16 %v1063, %v1062
          %v1069 = vpack.c.b16 %v1065, %v1064
          %v1090 = vunpack.c.l.b16 %v1034
          %v1091 = vunpack.c.l.b16 %v1035
          %v1092 = vunpack.c.l.b16 %v1036
          %v1093 = vunpack.c.l.b16 %v1037
          %v1094 = vunpack.c.l.b16 %v1038
          %v1095 = vunpack.c.l.b16 %v1039
          %v1096 = vunpack.c.l.b16 %v1040
          %v1097 = vunpack.c.l.b16 %v1041
          %v1098 = vunpack.c.l.b16 %v1042
          %v1099 = vunpack.c.l.b16 %v1043
          %v1100 = vunpack.c.l.b16 %v1044
          %v1101 = vunpack.c.l.b16 %v1045
          %v1102 = vunpack.c.l.b16 %v1046
          %v1103 = vunpack.c.l.b16 %v1047
          %v1104 = vunpack.c.l.b16 %v1048
          %v1105 = vunpack.c.l.b16 %v1049
          %v1106 = vpack.c.b16 %v1091, %v1090
          %v1107 = vpack.c.b16 %v1093, %v1092
          %v1108 = vpack.c.b16 %v1095, %v1094
          %v1109 = vpack.c.b16 %v1097, %v1096
          %v1110 = vpack.c.b16 %v1099, %v1098
          %v1111 = vpack.c.b16 %v1101, %v1100
          %v1112 = vpack.c.b16 %v1103, %v1102
          %v1113 = vpack.c.b16 %v1105, %v1104
          %1122 = vmatpush.bf16.msra.mxu0 %v1113
          %1123 = vmatpush.bf16.msra.mxu0 %v1112
          %1124 = vmatpush.bf16.msra.mxu0 %v1111
          %1125 = vmatpush.bf16.msra.mxu0 %v1110
          %1126 = vmatpush.bf16.msra.mxu0 %v1109
          %1127 = vmatpush.bf16.msra.mxu0 %v1108
          %1128 = vmatpush.bf16.msra.mxu0 %v1107
          %1129 = vmatpush.bf16.msra.mxu0 %v1106
          %1130 = vmatmul.bf16.gmra.mxu0 %v1066
          %v1131 = vpop.f32.mrf.mxu0
          %v1132 = vadd.f32 0.0, %v1131
          %v1133 = vpop.f32.mrf.mxu0
          %v1134 = vadd.f32 0.0, %v1133
          %1135 = vmatmul.bf16.gmra.mxu0 %v1067
          %v1136 = vpop.f32.mrf.mxu0
          %v1137 = vadd.f32 0.0, %v1136
          %v1138 = vpop.f32.mrf.mxu0
          %v1139 = vadd.f32 0.0, %v1138
          %1140 = vmatmul.bf16.gmra.mxu0 %v1068
          %v1141 = vpop.f32.mrf.mxu0
          %v1142 = vadd.f32 0.0, %v1141
          %v1143 = vpop.f32.mrf.mxu0
          %v1144 = vadd.f32 0.0, %v1143
          %1145 = vmatmul.bf16.gmra.mxu0 %v1069
          %v1146 = vpop.f32.mrf.mxu0
          %v1147 = vadd.f32 0.0, %v1146
          %v1148 = vpop.f32.mrf.mxu0
          %v1149 = vadd.f32 0.0, %v1148
          %1150 = vdwg.mxu0
          %v1151 = vld [vmem:[#allocation3] sm:$0xff]
          %v1152 = vld [vmem:[#allocation3 + $0x8] sm:$0xff]
          %v1153 = vld [vmem:[#allocation3 + $0x10] sm:$0xff]
          %v1154 = vld [vmem:[#allocation3 + $0x18] sm:$0xff]
          %v1155 = vld [vmem:[#allocation3 + $0x20] sm:$0xff]
          %v1156 = vld [vmem:[#allocation3 + $0x28] sm:$0xff]
          %v1157 = vld [vmem:[#allocation3 + $0x30] sm:$0xff]
          %v1158 = vld [vmem:[#allocation3 + $0x38] sm:$0xff]
          %v1159 = vadd.f32 %v1151, %v1132
          %v1160 = vadd.f32 %v1152, %v1134
          %v1161 = vadd.f32 %v1153, %v1137
          %v1162 = vadd.f32 %v1154, %v1139
          %v1163 = vadd.f32 %v1155, %v1142
          %v1164 = vadd.f32 %v1156, %v1144
          %v1165 = vadd.f32 %v1157, %v1147
          %v1166 = vadd.f32 %v1158, %v1149
          %1167 = vst [vmem:[#allocation3] sm:$0xff] %v1159
          %1168 = vst [vmem:[#allocation3 + $0x8] sm:$0xff] %v1160
          %1169 = vst [vmem:[#allocation3 + $0x10] sm:$0xff] %v1161
          %1170 = vst [vmem:[#allocation3 + $0x18] sm:$0xff] %v1162
          %1171 = vst [vmem:[#allocation3 + $0x20] sm:$0xff] %v1163
          %1172 = vst [vmem:[#allocation3 + $0x28] sm:$0xff] %v1164
          %1173 = vst [vmem:[#allocation3 + $0x30] sm:$0xff] %v1165
          %1174 = vst [vmem:[#allocation3 + $0x38] sm:$0xff] %v1166
          %v1175 = vld [vmem:[%s1024] sm:$0xe]
          %v1176 = vld [vmem:[%s1024 + $0x4] sm:$0x1]
          %v1177 = vld [vmem:[%s1024 + $0x8] sm:$0xe]
          %v1178 = vld [vmem:[%s1024 + $0xc] sm:$0x1]
          %v1179 = vld [vmem:[%s1024 + $0x10] sm:$0xe]
          %v1180 = vld [vmem:[%s1024 + $0x14] sm:$0x1]
          %v1181 = vld [vmem:[%s1024 + $0x18] sm:$0xe]
          %v1182 = vld [vmem:[%s1024 + $0x1c] sm:$0x1]
          %v1183 = vld [vmem:[%s1024 + $0x20] sm:$0xe]
          %v1184 = vld [vmem:[%s1024 + $0x24] sm:$0x1]
          %v1185 = vld [vmem:[%s1024 + $0x28] sm:$0xe]
          %v1186 = vld [vmem:[%s1024 + $0x2c] sm:$0x1]
          %v1187 = vld [vmem:[%s1024 + $0x30] sm:$0xe]
          %v1188 = vld [vmem:[%s1024 + $0x34] sm:$0x1]
          %v1189 = vld [vmem:[%s1024 + $0x38] sm:$0xe]
          %v1190 = vld [vmem:[%s1024 + $0x3c] sm:$0x1]
          %v1207 = vrot.slane %v1175, 5
          %v1208 = vrot.slane %v1207, 4
          %v1209 = vrot.slane %v1176, 5
          %v1210 = vsel %vm656, %v1208, %v1209
          %v1211 = vrot.slane %v1177, 5
          %v1212 = vrot.slane %v1211, 4
          %v1213 = vrot.slane %v1178, 5
          %v1214 = vsel %vm656, %v1212, %v1213
          %v1215 = vrot.slane %v1179, 5
          %v1216 = vrot.slane %v1215, 4
          %v1217 = vrot.slane %v1180, 5
          %v1218 = vsel %vm656, %v1216, %v1217
          %v1219 = vrot.slane %v1181, 5
          %v1220 = vrot.slane %v1219, 4
          %v1221 = vrot.slane %v1182, 5
          %v1222 = vsel %vm656, %v1220, %v1221
          %v1223 = vrot.slane %v1183, 5
          %v1224 = vrot.slane %v1223, 4
          %v1225 = vrot.slane %v1184, 5
          %v1226 = vsel %vm656, %v1224, %v1225
          %v1227 = vrot.slane %v1185, 5
          %v1228 = vrot.slane %v1227, 4
          %v1229 = vrot.slane %v1186, 5
          %v1230 = vsel %vm656, %v1228, %v1229
          %v1231 = vrot.slane %v1187, 5
          %v1232 = vrot.slane %v1231, 4
          %v1233 = vrot.slane %v1188, 5
          %v1234 = vsel %vm656, %v1232, %v1233
          %v1235 = vrot.slane %v1189, 5
          %v1236 = vrot.slane %v1235, 4
          %v1237 = vrot.slane %v1190, 5
          %v1238 = vsel %vm656, %v1236, %v1237
          %s1239 = scalar_lea.vmem %s318, 256 [#allocation7]
          %v1240 = vld [vmem:[%s1239] sm:$0xf]
          %v1241 = vld [vmem:[%s1239 + $0x4] sm:$0xf]
          %v1242 = vld [vmem:[%s1239 + $0x8] sm:$0xf]
          %v1243 = vld [vmem:[%s1239 + $0xc] sm:$0xf]
          %v1244 = vld [vmem:[%s1239 + $0x10] sm:$0xf]
          %v1245 = vld [vmem:[%s1239 + $0x14] sm:$0xf]
          %v1246 = vld [vmem:[%s1239 + $0x18] sm:$0xf]
          %v1247 = vld [vmem:[%s1239 + $0x1c] sm:$0xf]
          %v1248 = vld [vmem:[%s1239 + $0x20] sm:$0xf]
          %v1249 = vld [vmem:[%s1239 + $0x24] sm:$0xf]
          %v1250 = vld [vmem:[%s1239 + $0x28] sm:$0xf]
          %v1251 = vld [vmem:[%s1239 + $0x2c] sm:$0xf]
          %v1252 = vld [vmem:[%s1239 + $0x30] sm:$0xf]
          %v1253 = vld [vmem:[%s1239 + $0x34] sm:$0xf]
          %v1254 = vld [vmem:[%s1239 + $0x38] sm:$0xf]
          %v1255 = vld [vmem:[%s1239 + $0x3c] sm:$0xf]
          %v1256 = vunpack.c.l.b16 %v1210
          %v1257 = vunpack.c.l.b16 %v1214
          %v1258 = vunpack.c.l.b16 %v1218
          %v1259 = vunpack.c.l.b16 %v1222
          %v1260 = vunpack.c.l.b16 %v1226
          %v1261 = vunpack.c.l.b16 %v1230
          %v1262 = vunpack.c.l.b16 %v1234
          %v1263 = vunpack.c.l.b16 %v1238
          %v1264 = vpack.c.b16 %v1257, %v1256
          %v1265 = vpack.c.b16 %v1259, %v1258
          %v1266 = vpack.c.b16 %v1261, %v1260
          %v1267 = vpack.c.b16 %v1263, %v1262
          %v1288 = vunpack.c.l.b16 %v1240
          %v1289 = vunpack.c.l.b16 %v1241
          %v1290 = vunpack.c.l.b16 %v1242
          %v1291 = vunpack.c.l.b16 %v1243
          %v1292 = vunpack.c.l.b16 %v1244
          %v1293 = vunpack.c.l.b16 %v1245
          %v1294 = vunpack.c.l.b16 %v1246
          %v1295 = vunpack.c.l.b16 %v1247
          %v1296 = vunpack.c.l.b16 %v1248
          %v1297 = vunpack.c.l.b16 %v1249
          %v1298 = vunpack.c.l.b16 %v1250
          %v1299 = vunpack.c.l.b16 %v1251
          %v1300 = vunpack.c.l.b16 %v1252
          %v1301 = vunpack.c.l.b16 %v1253
          %v1302 = vunpack.c.l.b16 %v1254
          %v1303 = vunpack.c.l.b16 %v1255
          %v1304 = vpack.c.b16 %v1289, %v1288
          %v1305 = vpack.c.b16 %v1291, %v1290
          %v1306 = vpack.c.b16 %v1293, %v1292
          %v1307 = vpack.c.b16 %v1295, %v1294
          %v1308 = vpack.c.b16 %v1297, %v1296
          %v1309 = vpack.c.b16 %v1299, %v1298
          %v1310 = vpack.c.b16 %v1301, %v1300
          %v1311 = vpack.c.b16 %v1303, %v1302
          %1320 = vmatpush.bf16.msra.mxu0 %v1311
          %1321 = vmatpush.bf16.msra.mxu0 %v1310
          %1322 = vmatpush.bf16.msra.mxu0 %v1309
          %1323 = vmatpush.bf16.msra.mxu0 %v1308
          %1324 = vmatpush.bf16.msra.mxu0 %v1307
          %1325 = vmatpush.bf16.msra.mxu0 %v1306
          %1326 = vmatpush.bf16.msra.mxu0 %v1305
          %1327 = vmatpush.bf16.msra.mxu0 %v1304
          %1328 = vmatmul.bf16.gmra.mxu0 %v1264
          %v1329 = vpop.f32.mrf.mxu0
          %v1330 = vadd.f32 0.0, %v1329
          %v1331 = vpop.f32.mrf.mxu0
          %v1332 = vadd.f32 0.0, %v1331
          %1333 = vmatmul.bf16.gmra.mxu0 %v1265
          %v1334 = vpop.f32.mrf.mxu0
          %v1335 = vadd.f32 0.0, %v1334
          %v1336 = vpop.f32.mrf.mxu0
          %v1337 = vadd.f32 0.0, %v1336
          %1338 = vmatmul.bf16.gmra.mxu0 %v1266
          %v1339 = vpop.f32.mrf.mxu0
          %v1340 = vadd.f32 0.0, %v1339
          %v1341 = vpop.f32.mrf.mxu0
          %v1342 = vadd.f32 0.0, %v1341
          %1343 = vmatmul.bf16.gmra.mxu0 %v1267
          %v1344 = vpop.f32.mrf.mxu0
          %v1345 = vadd.f32 0.0, %v1344
          %v1346 = vpop.f32.mrf.mxu0
          %v1347 = vadd.f32 0.0, %v1346
          %1348 = vdwg.mxu0
          %v1349 = vld [vmem:[#allocation3] sm:$0xff]
          %v1350 = vld [vmem:[#allocation3 + $0x8] sm:$0xff]
          %v1351 = vld [vmem:[#allocation3 + $0x10] sm:$0xff]
          %v1352 = vld [vmem:[#allocation3 + $0x18] sm:$0xff]
          %v1353 = vld [vmem:[#allocation3 + $0x20] sm:$0xff]
          %v1354 = vld [vmem:[#allocation3 + $0x28] sm:$0xff]
          %v1355 = vld [vmem:[#allocation3 + $0x30] sm:$0xff]
          %v1356 = vld [vmem:[#allocation3 + $0x38] sm:$0xff]
          %v1357 = vadd.f32 %v1349, %v1330
          %v1358 = vadd.f32 %v1350, %v1332
          %v1359 = vadd.f32 %v1351, %v1335
          %v1360 = vadd.f32 %v1352, %v1337
          %v1361 = vadd.f32 %v1353, %v1340
          %v1362 = vadd.f32 %v1354, %v1342
          %v1363 = vadd.f32 %v1355, %v1345
          %v1364 = vadd.f32 %v1356, %v1347
          %1365 = vst [vmem:[#allocation3] sm:$0xff] %v1357
          %1366 = vst [vmem:[#allocation3 + $0x8] sm:$0xff] %v1358
          %1367 = vst [vmem:[#allocation3 + $0x10] sm:$0xff] %v1359
          %1368 = vst [vmem:[#allocation3 + $0x18] sm:$0xff] %v1360
          %1369 = vst [vmem:[#allocation3 + $0x20] sm:$0xff] %v1361
          %1370 = vst [vmem:[#allocation3 + $0x28] sm:$0xff] %v1362
          %1371 = vst [vmem:[#allocation3 + $0x30] sm:$0xff] %v1363
          %1372 = vst [vmem:[#allocation3 + $0x38] sm:$0xff] %v1364
          %v1373 = vld [vmem:[%s1024] sm:$0xc]
          %v1374 = vld [vmem:[%s1024 + $0x4] sm:$0x3]
          %v1375 = vld [vmem:[%s1024 + $0x8] sm:$0xc]
          %v1376 = vld [vmem:[%s1024 + $0xc] sm:$0x3]
          %v1377 = vld [vmem:[%s1024 + $0x10] sm:$0xc]
          %v1378 = vld [vmem:[%s1024 + $0x14] sm:$0x3]
          %v1379 = vld [vmem:[%s1024 + $0x18] sm:$0xc]
          %v1380 = vld [vmem:[%s1024 + $0x1c] sm:$0x3]
          %v1381 = vld [vmem:[%s1024 + $0x20] sm:$0xc]
          %v1382 = vld [vmem:[%s1024 + $0x24] sm:$0x3]
          %v1383 = vld [vmem:[%s1024 + $0x28] sm:$0xc]
          %v1384 = vld [vmem:[%s1024 + $0x2c] sm:$0x3]
          %v1385 = vld [vmem:[%s1024 + $0x30] sm:$0xc]
          %v1386 = vld [vmem:[%s1024 + $0x34] sm:$0x3]
          %v1387 = vld [vmem:[%s1024 + $0x38] sm:$0xc]
          %v1388 = vld [vmem:[%s1024 + $0x3c] sm:$0x3]
          %v1405 = vrot.slane %v1373, 6
          %v1406 = vrot.slane %v1405, 4
          %v1407 = vrot.slane %v1374, 6
          %v1408 = vsel %vm857, %v1406, %v1407
          %v1409 = vrot.slane %v1375, 6
          %v1410 = vrot.slane %v1409, 4
          %v1411 = vrot.slane %v1376, 6
          %v1412 = vsel %vm857, %v1410, %v1411
          %v1413 = vrot.slane %v1377, 6
          %v1414 = vrot.slane %v1413, 4
          %v1415 = vrot.slane %v1378, 6
          %v1416 = vsel %vm857, %v1414, %v1415
          %v1417 = vrot.slane %v1379, 6
          %v1418 = vrot.slane %v1417, 4
          %v1419 = vrot.slane %v1380, 6
          %v1420 = vsel %vm857, %v1418, %v1419
          %v1421 = vrot.slane %v1381, 6
          %v1422 = vrot.slane %v1421, 4
          %v1423 = vrot.slane %v1382, 6
          %v1424 = vsel %vm857, %v1422, %v1423
          %v1425 = vrot.slane %v1383, 6
          %v1426 = vrot.slane %v1425, 4
          %v1427 = vrot.slane %v1384, 6
          %v1428 = vsel %vm857, %v1426, %v1427
          %v1429 = vrot.slane %v1385, 6
          %v1430 = vrot.slane %v1429, 4
          %v1431 = vrot.slane %v1386, 6
          %v1432 = vsel %vm857, %v1430, %v1431
          %v1433 = vrot.slane %v1387, 6
          %v1434 = vrot.slane %v1433, 4
          %v1435 = vrot.slane %v1388, 6
          %v1436 = vsel %vm857, %v1434, %v1435
          %s1437 = scalar_lea.vmem %s318, 320 [#allocation7]
          %v1438 = vld [vmem:[%s1437] sm:$0xf]
          %v1439 = vld [vmem:[%s1437 + $0x4] sm:$0xf]
          %v1440 = vld [vmem:[%s1437 + $0x8] sm:$0xf]
          %v1441 = vld [vmem:[%s1437 + $0xc] sm:$0xf]
          %v1442 = vld [vmem:[%s1437 + $0x10] sm:$0xf]
          %v1443 = vld [vmem:[%s1437 + $0x14] sm:$0xf]
          %v1444 = vld [vmem:[%s1437 + $0x18] sm:$0xf]
          %v1445 = vld [vmem:[%s1437 + $0x1c] sm:$0xf]
          %v1446 = vld [vmem:[%s1437 + $0x20] sm:$0xf]
          %v1447 = vld [vmem:[%s1437 + $0x24] sm:$0xf]
          %v1448 = vld [vmem:[%s1437 + $0x28] sm:$0xf]
          %v1449 = vld [vmem:[%s1437 + $0x2c] sm:$0xf]
          %v1450 = vld [vmem:[%s1437 + $0x30] sm:$0xf]
          %v1451 = vld [vmem:[%s1437 + $0x34] sm:$0xf]
          %v1452 = vld [vmem:[%s1437 + $0x38] sm:$0xf]
          %v1453 = vld [vmem:[%s1437 + $0x3c] sm:$0xf]
          %v1454 = vunpack.c.l.b16 %v1408
          %v1455 = vunpack.c.l.b16 %v1412
          %v1456 = vunpack.c.l.b16 %v1416
          %v1457 = vunpack.c.l.b16 %v1420
          %v1458 = vunpack.c.l.b16 %v1424
          %v1459 = vunpack.c.l.b16 %v1428
          %v1460 = vunpack.c.l.b16 %v1432
          %v1461 = vunpack.c.l.b16 %v1436
          %v1462 = vpack.c.b16 %v1455, %v1454
          %v1463 = vpack.c.b16 %v1457, %v1456
          %v1464 = vpack.c.b16 %v1459, %v1458
          %v1465 = vpack.c.b16 %v1461, %v1460
          %v1486 = vunpack.c.l.b16 %v1438
          %v1487 = vunpack.c.l.b16 %v1439
          %v1488 = vunpack.c.l.b16 %v1440
          %v1489 = vunpack.c.l.b16 %v1441
          %v1490 = vunpack.c.l.b16 %v1442
          %v1491 = vunpack.c.l.b16 %v1443
          %v1492 = vunpack.c.l.b16 %v1444
          %v1493 = vunpack.c.l.b16 %v1445
          %v1494 = vunpack.c.l.b16 %v1446
          %v1495 = vunpack.c.l.b16 %v1447
          %v1496 = vunpack.c.l.b16 %v1448
          %v1497 = vunpack.c.l.b16 %v1449
          %v1498 = vunpack.c.l.b16 %v1450
          %v1499 = vunpack.c.l.b16 %v1451
          %v1500 = vunpack.c.l.b16 %v1452
          %v1501 = vunpack.c.l.b16 %v1453
          %v1502 = vpack.c.b16 %v1487, %v1486
          %v1503 = vpack.c.b16 %v1489, %v1488
          %v1504 = vpack.c.b16 %v1491, %v1490
          %v1505 = vpack.c.b16 %v1493, %v1492
          %v1506 = vpack.c.b16 %v1495, %v1494
          %v1507 = vpack.c.b16 %v1497, %v1496
          %v1508 = vpack.c.b16 %v1499, %v1498
          %v1509 = vpack.c.b16 %v1501, %v1500
          %1518 = vmatpush.bf16.msra.mxu0 %v1509
          %1519 = vmatpush.bf16.msra.mxu0 %v1508
          %1520 = vmatpush.bf16.msra.mxu0 %v1507
          %1521 = vmatpush.bf16.msra.mxu0 %v1506
          %1522 = vmatpush.bf16.msra.mxu0 %v1505
          %1523 = vmatpush.bf16.msra.mxu0 %v1504
          %1524 = vmatpush.bf16.msra.mxu0 %v1503
          %1525 = vmatpush.bf16.msra.mxu0 %v1502
          %1526 = vmatmul.bf16.gmra.mxu0 %v1462
          %v1527 = vpop.f32.mrf.mxu0
          %v1528 = vadd.f32 0.0, %v1527
          %v1529 = vpop.f32.mrf.mxu0
          %v1530 = vadd.f32 0.0, %v1529
          %1531 = vmatmul.bf16.gmra.mxu0 %v1463
          %v1532 = vpop.f32.mrf.mxu0
          %v1533 = vadd.f32 0.0, %v1532
          %v1534 = vpop.f32.mrf.mxu0
          %v1535 = vadd.f32 0.0, %v1534
          %1536 = vmatmul.bf16.gmra.mxu0 %v1464
          %v1537 = vpop.f32.mrf.mxu0
          %v1538 = vadd.f32 0.0, %v1537
          %v1539 = vpop.f32.mrf.mxu0
          %v1540 = vadd.f32 0.0, %v1539
          %1541 = vmatmul.bf16.gmra.mxu0 %v1465
          %v1542 = vpop.f32.mrf.mxu0
          %v1543 = vadd.f32 0.0, %v1542
          %v1544 = vpop.f32.mrf.mxu0
          %v1545 = vadd.f32 0.0, %v1544
          %1546 = vdwg.mxu0
          %v1547 = vld [vmem:[#allocation3] sm:$0xff]
          %v1548 = vld [vmem:[#allocation3 + $0x8] sm:$0xff]
          %v1549 = vld [vmem:[#allocation3 + $0x10] sm:$0xff]
          %v1550 = vld [vmem:[#allocation3 + $0x18] sm:$0xff]
          %v1551 = vld [vmem:[#allocation3 + $0x20] sm:$0xff]
          %v1552 = vld [vmem:[#allocation3 + $0x28] sm:$0xff]
          %v1553 = vld [vmem:[#allocation3 + $0x30] sm:$0xff]
          %v1554 = vld [vmem:[#allocation3 + $0x38] sm:$0xff]
          %v1555 = vadd.f32 %v1547, %v1528
          %v1556 = vadd.f32 %v1548, %v1530
          %v1557 = vadd.f32 %v1549, %v1533
          %v1558 = vadd.f32 %v1550, %v1535
          %v1559 = vadd.f32 %v1551, %v1538
          %v1560 = vadd.f32 %v1552, %v1540
          %v1561 = vadd.f32 %v1553, %v1543
          %v1562 = vadd.f32 %v1554, %v1545
          %1563 = vst [vmem:[#allocation3] sm:$0xff] %v1555
          %1564 = vst [vmem:[#allocation3 + $0x8] sm:$0xff] %v1556
          %1565 = vst [vmem:[#allocation3 + $0x10] sm:$0xff] %v1557
          %1566 = vst [vmem:[#allocation3 + $0x18] sm:$0xff] %v1558
          %1567 = vst [vmem:[#allocation3 + $0x20] sm:$0xff] %v1559
          %1568 = vst [vmem:[#allocation3 + $0x28] sm:$0xff] %v1560
          %1569 = vst [vmem:[#allocation3 + $0x30] sm:$0xff] %v1561
          %1570 = vst [vmem:[#allocation3 + $0x38] sm:$0xff] %v1562
          %s1571 = scalar_lea.vmem [#allocation2], 32
          %v1572 = vld [vmem:[%s1571] sm:$0xf]
          %v1573 = vld [vmem:[%s1571 + $0x8] sm:$0xf]
          %v1574 = vld [vmem:[%s1571 + $0x10] sm:$0xf]
          %v1575 = vld [vmem:[%s1571 + $0x18] sm:$0xf]
          %v1576 = vld [vmem:[%s1571 + $0x20] sm:$0xf]
          %v1577 = vld [vmem:[%s1571 + $0x28] sm:$0xf]
          %v1578 = vld [vmem:[%s1571 + $0x30] sm:$0xf]
          %v1579 = vld [vmem:[%s1571 + $0x38] sm:$0xf]
          %s1580 = scalar_lea.vmem %s318, 384 [#allocation7]
          %v1581 = vld [vmem:[%s1580] sm:$0xf]
          %v1582 = vld [vmem:[%s1580 + $0x4] sm:$0xf]
          %v1583 = vld [vmem:[%s1580 + $0x8] sm:$0xf]
          %v1584 = vld [vmem:[%s1580 + $0xc] sm:$0xf]
          %v1585 = vld [vmem:[%s1580 + $0x10] sm:$0xf]
          %v1586 = vld [vmem:[%s1580 + $0x14] sm:$0xf]
          %v1587 = vld [vmem:[%s1580 + $0x18] sm:$0xf]
          %v1588 = vld [vmem:[%s1580 + $0x1c] sm:$0xf]
          %v1589 = vld [vmem:[%s1580 + $0x20] sm:$0xf]
          %v1590 = vld [vmem:[%s1580 + $0x24] sm:$0xf]
          %v1591 = vld [vmem:[%s1580 + $0x28] sm:$0xf]
          %v1592 = vld [vmem:[%s1580 + $0x2c] sm:$0xf]
          %v1593 = vld [vmem:[%s1580 + $0x30] sm:$0xf]
          %v1594 = vld [vmem:[%s1580 + $0x34] sm:$0xf]
          %v1595 = vld [vmem:[%s1580 + $0x38] sm:$0xf]
          %v1596 = vld [vmem:[%s1580 + $0x3c] sm:$0xf]
          %v1605 = vunpack.c.l.b16 %v1572
          %v1606 = vunpack.c.l.b16 %v1573
          %v1607 = vunpack.c.l.b16 %v1574
          %v1608 = vunpack.c.l.b16 %v1575
          %v1609 = vunpack.c.l.b16 %v1576
          %v1610 = vunpack.c.l.b16 %v1577
          %v1611 = vunpack.c.l.b16 %v1578
          %v1612 = vunpack.c.l.b16 %v1579
          %v1613 = vpack.c.b16 %v1606, %v1605
          %v1614 = vpack.c.b16 %v1608, %v1607
          %v1615 = vpack.c.b16 %v1610, %v1609
          %v1616 = vpack.c.b16 %v1612, %v1611
          %v1637 = vunpack.c.l.b16 %v1581
          %v1638 = vunpack.c.l.b16 %v1582
          %v1639 = vunpack.c.l.b16 %v1583
          %v1640 = vunpack.c.l.b16 %v1584
          %v1641 = vunpack.c.l.b16 %v1585
          %v1642 = vunpack.c.l.b16 %v1586
          %v1643 = vunpack.c.l.b16 %v1587
          %v1644 = vunpack.c.l.b16 %v1588
          %v1645 = vunpack.c.l.b16 %v1589
          %v1646 = vunpack.c.l.b16 %v1590
          %v1647 = vunpack.c.l.b16 %v1591
          %v1648 = vunpack.c.l.b16 %v1592
          %v1649 = vunpack.c.l.b16 %v1593
          %v1650 = vunpack.c.l.b16 %v1594
          %v1651 = vunpack.c.l.b16 %v1595
          %v1652 = vunpack.c.l.b16 %v1596
          %v1653 = vpack.c.b16 %v1638, %v1637
          %v1654 = vpack.c.b16 %v1640, %v1639
          %v1655 = vpack.c.b16 %v1642, %v1641
          %v1656 = vpack.c.b16 %v1644, %v1643
          %v1657 = vpack.c.b16 %v1646, %v1645
          %v1658 = vpack.c.b16 %v1648, %v1647
          %v1659 = vpack.c.b16 %v1650, %v1649
          %v1660 = vpack.c.b16 %v1652, %v1651
          %1669 = vmatpush.bf16.msra.mxu0 %v1660
          %1670 = vmatpush.bf16.msra.mxu0 %v1659
          %1671 = vmatpush.bf16.msra.mxu0 %v1658
          %1672 = vmatpush.bf16.msra.mxu0 %v1657
          %1673 = vmatpush.bf16.msra.mxu0 %v1656
          %1674 = vmatpush.bf16.msra.mxu0 %v1655
          %1675 = vmatpush.bf16.msra.mxu0 %v1654
          %1676 = vmatpush.bf16.msra.mxu0 %v1653
          %1677 = vmatmul.bf16.gmra.mxu0 %v1613
          %v1678 = vpop.f32.mrf.mxu0
          %v1679 = vadd.f32 0.0, %v1678
          %v1680 = vpop.f32.mrf.mxu0
          %v1681 = vadd.f32 0.0, %v1680
          %1682 = vmatmul.bf16.gmra.mxu0 %v1614
          %v1683 = vpop.f32.mrf.mxu0
          %v1684 = vadd.f32 0.0, %v1683
          %v1685 = vpop.f32.mrf.mxu0
          %v1686 = vadd.f32 0.0, %v1685
          %1687 = vmatmul.bf16.gmra.mxu0 %v1615
          %v1688 = vpop.f32.mrf.mxu0
          %v1689 = vadd.f32 0.0, %v1688
          %v1690 = vpop.f32.mrf.mxu0
          %v1691 = vadd.f32 0.0, %v1690
          %1692 = vmatmul.bf16.gmra.mxu0 %v1616
          %v1693 = vpop.f32.mrf.mxu0
          %v1694 = vadd.f32 0.0, %v1693
          %v1695 = vpop.f32.mrf.mxu0
          %v1696 = vadd.f32 0.0, %v1695
          %1697 = vdwg.mxu0
          %v1698 = vld [vmem:[#allocation3] sm:$0xff]
          %v1699 = vld [vmem:[#allocation3 + $0x8] sm:$0xff]
          %v1700 = vld [vmem:[#allocation3 + $0x10] sm:$0xff]
          %v1701 = vld [vmem:[#allocation3 + $0x18] sm:$0xff]
          %v1702 = vld [vmem:[#allocation3 + $0x20] sm:$0xff]
          %v1703 = vld [vmem:[#allocation3 + $0x28] sm:$0xff]
          %v1704 = vld [vmem:[#allocation3 + $0x30] sm:$0xff]
          %v1705 = vld [vmem:[#allocation3 + $0x38] sm:$0xff]
          %v1706 = vadd.f32 %v1698, %v1679
          %v1707 = vadd.f32 %v1699, %v1681
          %v1708 = vadd.f32 %v1700, %v1684
          %v1709 = vadd.f32 %v1701, %v1686
          %v1710 = vadd.f32 %v1702, %v1689
          %v1711 = vadd.f32 %v1703, %v1691
          %v1712 = vadd.f32 %v1704, %v1694
          %v1713 = vadd.f32 %v1705, %v1696
          %1714 = vst [vmem:[#allocation3] sm:$0xff] %v1706
          %1715 = vst [vmem:[#allocation3 + $0x8] sm:$0xff] %v1707
          %1716 = vst [vmem:[#allocation3 + $0x10] sm:$0xff] %v1708
          %1717 = vst [vmem:[#allocation3 + $0x18] sm:$0xff] %v1709
          %1718 = vst [vmem:[#allocation3 + $0x20] sm:$0xff] %v1710
          %1719 = vst [vmem:[#allocation3 + $0x28] sm:$0xff] %v1711
          %1720 = vst [vmem:[#allocation3 + $0x30] sm:$0xff] %v1712
          %1721 = vst [vmem:[#allocation3 + $0x38] sm:$0xff] %v1713
          %v1722 = vld [vmem:[%s1571] sm:$0xe]
          %v1723 = vld [vmem:[%s1571 + $0x4] sm:$0x1]
          %v1724 = vld [vmem:[%s1571 + $0x8] sm:$0xe]
          %v1725 = vld [vmem:[%s1571 + $0xc] sm:$0x1]
          %v1726 = vld [vmem:[%s1571 + $0x10] sm:$0xe]
          %v1727 = vld [vmem:[%s1571 + $0x14] sm:$0x1]
          %v1728 = vld [vmem:[%s1571 + $0x18] sm:$0xe]
          %v1729 = vld [vmem:[%s1571 + $0x1c] sm:$0x1]
          %v1730 = vld [vmem:[%s1571 + $0x20] sm:$0xe]
          %v1731 = vld [vmem:[%s1571 + $0x24] sm:$0x1]
          %v1732 = vld [vmem:[%s1571 + $0x28] sm:$0xe]
          %v1733 = vld [vmem:[%s1571 + $0x2c] sm:$0x1]
          %v1734 = vld [vmem:[%s1571 + $0x30] sm:$0xe]
          %v1735 = vld [vmem:[%s1571 + $0x34] sm:$0x1]
          %v1736 = vld [vmem:[%s1571 + $0x38] sm:$0xe]
          %v1737 = vld [vmem:[%s1571 + $0x3c] sm:$0x1]
          %v1754 = vrot.slane %v1722, 5
          %v1755 = vrot.slane %v1754, 4
          %v1756 = vrot.slane %v1723, 5
          %v1757 = vsel %vm656, %v1755, %v1756
          %v1758 = vrot.slane %v1724, 5
          %v1759 = vrot.slane %v1758, 4
          %v1760 = vrot.slane %v1725, 5
          %v1761 = vsel %vm656, %v1759, %v1760
          %v1762 = vrot.slane %v1726, 5
          %v1763 = vrot.slane %v1762, 4
          %v1764 = vrot.slane %v1727, 5
          %v1765 = vsel %vm656, %v1763, %v1764
          %v1766 = vrot.slane %v1728, 5
          %v1767 = vrot.slane %v1766, 4
          %v1768 = vrot.slane %v1729, 5
          %v1769 = vsel %vm656, %v1767, %v1768
          %v1770 = vrot.slane %v1730, 5
          %v1771 = vrot.slane %v1770, 4
          %v1772 = vrot.slane %v1731, 5
          %v1773 = vsel %vm656, %v1771, %v1772
          %v1774 = vrot.slane %v1732, 5
          %v1775 = vrot.slane %v1774, 4
          %v1776 = vrot.slane %v1733, 5
          %v1777 = vsel %vm656, %v1775, %v1776
          %v1778 = vrot.slane %v1734, 5
          %v1779 = vrot.slane %v1778, 4
          %v1780 = vrot.slane %v1735, 5
          %v1781 = vsel %vm656, %v1779, %v1780
          %v1782 = vrot.slane %v1736, 5
          %v1783 = vrot.slane %v1782, 4
          %v1784 = vrot.slane %v1737, 5
          %v1785 = vsel %vm656, %v1783, %v1784
          %s1786 = scalar_lea.vmem %s318, 448 [#allocation7]
          %v1787 = vld [vmem:[%s1786] sm:$0xf]
          %v1788 = vld [vmem:[%s1786 + $0x4] sm:$0xf]
          %v1789 = vld [vmem:[%s1786 + $0x8] sm:$0xf]
          %v1790 = vld [vmem:[%s1786 + $0xc] sm:$0xf]
          %v1791 = vld [vmem:[%s1786 + $0x10] sm:$0xf]
          %v1792 = vld [vmem:[%s1786 + $0x14] sm:$0xf]
          %v1793 = vld [vmem:[%s1786 + $0x18] sm:$0xf]
          %v1794 = vld [vmem:[%s1786 + $0x1c] sm:$0xf]
          %v1795 = vld [vmem:[%s1786 + $0x20] sm:$0xf]
          %v1796 = vld [vmem:[%s1786 + $0x24] sm:$0xf]
          %v1797 = vld [vmem:[%s1786 + $0x28] sm:$0xf]
          %v1798 = vld [vmem:[%s1786 + $0x2c] sm:$0xf]
          %v1799 = vld [vmem:[%s1786 + $0x30] sm:$0xf]
          %v1800 = vld [vmem:[%s1786 + $0x34] sm:$0xf]
          %v1801 = vld [vmem:[%s1786 + $0x38] sm:$0xf]
          %v1802 = vld [vmem:[%s1786 + $0x3c] sm:$0xf]
          %v1803 = vunpack.c.l.b16 %v1757
          %v1804 = vunpack.c.l.b16 %v1761
          %v1805 = vunpack.c.l.b16 %v1765
          %v1806 = vunpack.c.l.b16 %v1769
          %v1807 = vunpack.c.l.b16 %v1773
          %v1808 = vunpack.c.l.b16 %v1777
          %v1809 = vunpack.c.l.b16 %v1781
          %v1810 = vunpack.c.l.b16 %v1785
          %v1811 = vpack.c.b16 %v1804, %v1803
          %v1812 = vpack.c.b16 %v1806, %v1805
          %v1813 = vpack.c.b16 %v1808, %v1807
          %v1814 = vpack.c.b16 %v1810, %v1809
          %v1835 = vunpack.c.l.b16 %v1787
          %v1836 = vunpack.c.l.b16 %v1788
          %v1837 = vunpack.c.l.b16 %v1789
          %v1838 = vunpack.c.l.b16 %v1790
          %v1839 = vunpack.c.l.b16 %v1791
          %v1840 = vunpack.c.l.b16 %v1792
          %v1841 = vunpack.c.l.b16 %v1793
          %v1842 = vunpack.c.l.b16 %v1794
          %v1843 = vunpack.c.l.b16 %v1795
          %v1844 = vunpack.c.l.b16 %v1796
          %v1845 = vunpack.c.l.b16 %v1797
          %v1846 = vunpack.c.l.b16 %v1798
          %v1847 = vunpack.c.l.b16 %v1799
          %v1848 = vunpack.c.l.b16 %v1800
          %v1849 = vunpack.c.l.b16 %v1801
          %v1850 = vunpack.c.l.b16 %v1802
          %v1851 = vpack.c.b16 %v1836, %v1835
          %v1852 = vpack.c.b16 %v1838, %v1837
          %v1853 = vpack.c.b16 %v1840, %v1839
          %v1854 = vpack.c.b16 %v1842, %v1841
          %v1855 = vpack.c.b16 %v1844, %v1843
          %v1856 = vpack.c.b16 %v1846, %v1845
          %v1857 = vpack.c.b16 %v1848, %v1847
          %v1858 = vpack.c.b16 %v1850, %v1849
          %1867 = vmatpush.bf16.msra.mxu0 %v1858
          %1868 = vmatpush.bf16.msra.mxu0 %v1857
          %1869 = vmatpush.bf16.msra.mxu0 %v1856
          %1870 = vmatpush.bf16.msra.mxu0 %v1855
          %1871 = vmatpush.bf16.msra.mxu0 %v1854
          %1872 = vmatpush.bf16.msra.mxu0 %v1853
          %1873 = vmatpush.bf16.msra.mxu0 %v1852
          %1874 = vmatpush.bf16.msra.mxu0 %v1851
          %1875 = vmatmul.bf16.gmra.mxu0 %v1811
          %v1876 = vpop.f32.mrf.mxu0
          %v1877 = vadd.f32 0.0, %v1876
          %v1878 = vpop.f32.mrf.mxu0
          %v1879 = vadd.f32 0.0, %v1878
          %1880 = vmatmul.bf16.gmra.mxu0 %v1812
          %v1881 = vpop.f32.mrf.mxu0
          %v1882 = vadd.f32 0.0, %v1881
          %v1883 = vpop.f32.mrf.mxu0
          %v1884 = vadd.f32 0.0, %v1883
          %1885 = vmatmul.bf16.gmra.mxu0 %v1813
          %v1886 = vpop.f32.mrf.mxu0
          %v1887 = vadd.f32 0.0, %v1886
          %v1888 = vpop.f32.mrf.mxu0
          %v1889 = vadd.f32 0.0, %v1888
          %1890 = vmatmul.bf16.gmra.mxu0 %v1814
          %v1891 = vpop.f32.mrf.mxu0
          %v1892 = vadd.f32 0.0, %v1891
          %v1893 = vpop.f32.mrf.mxu0
          %v1894 = vadd.f32 0.0, %v1893
          %1895 = vdwg.mxu0
          %v1896 = vld [vmem:[#allocation3] sm:$0xff]
          %v1897 = vld [vmem:[#allocation3 + $0x8] sm:$0xff]
          %v1898 = vld [vmem:[#allocation3 + $0x10] sm:$0xff]
          %v1899 = vld [vmem:[#allocation3 + $0x18] sm:$0xff]
          %v1900 = vld [vmem:[#allocation3 + $0x20] sm:$0xff]
          %v1901 = vld [vmem:[#allocation3 + $0x28] sm:$0xff]
          %v1902 = vld [vmem:[#allocation3 + $0x30] sm:$0xff]
          %v1903 = vld [vmem:[#allocation3 + $0x38] sm:$0xff]
          %v1904 = vadd.f32 %v1896, %v1877
          %v1905 = vadd.f32 %v1897, %v1879
          %v1906 = vadd.f32 %v1898, %v1882
          %v1907 = vadd.f32 %v1899, %v1884
          %v1908 = vadd.f32 %v1900, %v1887
          %v1909 = vadd.f32 %v1901, %v1889
          %v1910 = vadd.f32 %v1902, %v1892
          %v1911 = vadd.f32 %v1903, %v1894
          %1912 = vst [vmem:[#allocation3] sm:$0xff] %v1904
          %1913 = vst [vmem:[#allocation3 + $0x8] sm:$0xff] %v1905
          %1914 = vst [vmem:[#allocation3 + $0x10] sm:$0xff] %v1906
          %1915 = vst [vmem:[#allocation3 + $0x18] sm:$0xff] %v1907
          %1916 = vst [vmem:[#allocation3 + $0x20] sm:$0xff] %v1908
          %1917 = vst [vmem:[#allocation3 + $0x28] sm:$0xff] %v1909
          %1918 = vst [vmem:[#allocation3 + $0x30] sm:$0xff] %v1910
          %1919 = vst [vmem:[#allocation3 + $0x38] sm:$0xff] %v1911
          %v1920 = vld [vmem:[%s1571] sm:$0xc]
          %v1921 = vld [vmem:[%s1571 + $0x4] sm:$0x3]
          %v1922 = vld [vmem:[%s1571 + $0x8] sm:$0xc]
          %v1923 = vld [vmem:[%s1571 + $0xc] sm:$0x3]
          %v1924 = vld [vmem:[%s1571 + $0x10] sm:$0xc]
          %v1925 = vld [vmem:[%s1571 + $0x14] sm:$0x3]
          %v1926 = vld [vmem:[%s1571 + $0x18] sm:$0xc]
          %v1927 = vld [vmem:[%s1571 + $0x1c] sm:$0x3]
          %v1928 = vld [vmem:[%s1571 + $0x20] sm:$0xc]
          %v1929 = vld [vmem:[%s1571 + $0x24] sm:$0x3]
          %v1930 = vld [vmem:[%s1571 + $0x28] sm:$0xc]
          %v1931 = vld [vmem:[%s1571 + $0x2c] sm:$0x3]
          %v1932 = vld [vmem:[%s1571 + $0x30] sm:$0xc]
          %v1933 = vld [vmem:[%s1571 + $0x34] sm:$0x3]
          %v1934 = vld [vmem:[%s1571 + $0x38] sm:$0xc]
          %v1935 = vld [vmem:[%s1571 + $0x3c] sm:$0x3]
          %v1952 = vrot.slane %v1920, 6
          %v1953 = vrot.slane %v1952, 4
          %v1954 = vrot.slane %v1921, 6
          %v1955 = vsel %vm857, %v1953, %v1954
          %v1956 = vrot.slane %v1922, 6
          %v1957 = vrot.slane %v1956, 4
          %v1958 = vrot.slane %v1923, 6
          %v1959 = vsel %vm857, %v1957, %v1958
          %v1960 = vrot.slane %v1924, 6
          %v1961 = vrot.slane %v1960, 4
          %v1962 = vrot.slane %v1925, 6
          %v1963 = vsel %vm857, %v1961, %v1962
          %v1964 = vrot.slane %v1926, 6
          %v1965 = vrot.slane %v1964, 4
          %v1966 = vrot.slane %v1927, 6
          %v1967 = vsel %vm857, %v1965, %v1966
          %v1968 = vrot.slane %v1928, 6
          %v1969 = vrot.slane %v1968, 4
          %v1970 = vrot.slane %v1929, 6
          %v1971 = vsel %vm857, %v1969, %v1970
          %v1972 = vrot.slane %v1930, 6
          %v1973 = vrot.slane %v1972, 4
          %v1974 = vrot.slane %v1931, 6
          %v1975 = vsel %vm857, %v1973, %v1974
          %v1976 = vrot.slane %v1932, 6
          %v1977 = vrot.slane %v1976, 4
          %v1978 = vrot.slane %v1933, 6
          %v1979 = vsel %vm857, %v1977, %v1978
          %v1980 = vrot.slane %v1934, 6
          %v1981 = vrot.slane %v1980, 4
          %v1982 = vrot.slane %v1935, 6
          %v1983 = vsel %vm857, %v1981, %v1982
          %s1984 = scalar_lea.vmem %s318, 512 [#allocation7]
          %v1985 = vld [vmem:[%s1984] sm:$0xf]
          %v1986 = vld [vmem:[%s1984 + $0x4] sm:$0xf]
          %v1987 = vld [vmem:[%s1984 + $0x8] sm:$0xf]
          %v1988 = vld [vmem:[%s1984 + $0xc] sm:$0xf]
          %v1989 = vld [vmem:[%s1984 + $0x10] sm:$0xf]
          %v1990 = vld [vmem:[%s1984 + $0x14] sm:$0xf]
          %v1991 = vld [vmem:[%s1984 + $0x18] sm:$0xf]
          %v1992 = vld [vmem:[%s1984 + $0x1c] sm:$0xf]
          %v1993 = vld [vmem:[%s1984 + $0x20] sm:$0xf]
          %v1994 = vld [vmem:[%s1984 + $0x24] sm:$0xf]
          %v1995 = vld [vmem:[%s1984 + $0x28] sm:$0xf]
          %v1996 = vld [vmem:[%s1984 + $0x2c] sm:$0xf]
          %v1997 = vld [vmem:[%s1984 + $0x30] sm:$0xf]
          %v1998 = vld [vmem:[%s1984 + $0x34] sm:$0xf]
          %v1999 = vld [vmem:[%s1984 + $0x38] sm:$0xf]
          %v2000 = vld [vmem:[%s1984 + $0x3c] sm:$0xf]
          %v2001 = vunpack.c.l.b16 %v1955
          %v2002 = vunpack.c.l.b16 %v1959
          %v2003 = vunpack.c.l.b16 %v1963
          %v2004 = vunpack.c.l.b16 %v1967
          %v2005 = vunpack.c.l.b16 %v1971
          %v2006 = vunpack.c.l.b16 %v1975
          %v2007 = vunpack.c.l.b16 %v1979
          %v2008 = vunpack.c.l.b16 %v1983
          %v2009 = vpack.c.b16 %v2002, %v2001
          %v2010 = vpack.c.b16 %v2004, %v2003
          %v2011 = vpack.c.b16 %v2006, %v2005
          %v2012 = vpack.c.b16 %v2008, %v2007
          %v2033 = vunpack.c.l.b16 %v1985
          %v2034 = vunpack.c.l.b16 %v1986
          %v2035 = vunpack.c.l.b16 %v1987
          %v2036 = vunpack.c.l.b16 %v1988
          %v2037 = vunpack.c.l.b16 %v1989
          %v2038 = vunpack.c.l.b16 %v1990
          %v2039 = vunpack.c.l.b16 %v1991
          %v2040 = vunpack.c.l.b16 %v1992
          %v2041 = vunpack.c.l.b16 %v1993
          %v2042 = vunpack.c.l.b16 %v1994
          %v2043 = vunpack.c.l.b16 %v1995
          %v2044 = vunpack.c.l.b16 %v1996
          %v2045 = vunpack.c.l.b16 %v1997
          %v2046 = vunpack.c.l.b16 %v1998
          %v2047 = vunpack.c.l.b16 %v1999
          %v2048 = vunpack.c.l.b16 %v2000
          %v2049 = vpack.c.b16 %v2034, %v2033
          %v2050 = vpack.c.b16 %v2036, %v2035
          %v2051 = vpack.c.b16 %v2038, %v2037
          %v2052 = vpack.c.b16 %v2040, %v2039
          %v2053 = vpack.c.b16 %v2042, %v2041
          %v2054 = vpack.c.b16 %v2044, %v2043
          %v2055 = vpack.c.b16 %v2046, %v2045
          %v2056 = vpack.c.b16 %v2048, %v2047
          %2065 = vmatpush.bf16.msra.mxu0 %v2056
          %2066 = vmatpush.bf16.msra.mxu0 %v2055
          %2067 = vmatpush.bf16.msra.mxu0 %v2054
          %2068 = vmatpush.bf16.msra.mxu0 %v2053
          %2069 = vmatpush.bf16.msra.mxu0 %v2052
          %2070 = vmatpush.bf16.msra.mxu0 %v2051
          %2071 = vmatpush.bf16.msra.mxu0 %v2050
          %2072 = vmatpush.bf16.msra.mxu0 %v2049
          %2073 = vmatmul.bf16.gmra.mxu0 %v2009
          %v2074 = vpop.f32.mrf.mxu0
          %v2075 = vadd.f32 0.0, %v2074
          %v2076 = vpop.f32.mrf.mxu0
          %v2077 = vadd.f32 0.0, %v2076
          %2078 = vmatmul.bf16.gmra.mxu0 %v2010
          %v2079 = vpop.f32.mrf.mxu0
          %v2080 = vadd.f32 0.0, %v2079
          %v2081 = vpop.f32.mrf.mxu0
          %v2082 = vadd.f32 0.0, %v2081
          %2083 = vmatmul.bf16.gmra.mxu0 %v2011
          %v2084 = vpop.f32.mrf.mxu0
          %v2085 = vadd.f32 0.0, %v2084
          %v2086 = vpop.f32.mrf.mxu0
          %v2087 = vadd.f32 0.0, %v2086
          %2088 = vmatmul.bf16.gmra.mxu0 %v2012
          %v2089 = vpop.f32.mrf.mxu0
          %v2090 = vadd.f32 0.0, %v2089
          %v2091 = vpop.f32.mrf.mxu0
          %v2092 = vadd.f32 0.0, %v2091
          %2093 = vdwg.mxu0
          %v2094 = vld [vmem:[#allocation3] sm:$0xff]
          %v2095 = vld [vmem:[#allocation3 + $0x8] sm:$0xff]
          %v2096 = vld [vmem:[#allocation3 + $0x10] sm:$0xff]
          %v2097 = vld [vmem:[#allocation3 + $0x18] sm:$0xff]
          %v2098 = vld [vmem:[#allocation3 + $0x20] sm:$0xff]
          %v2099 = vld [vmem:[#allocation3 + $0x28] sm:$0xff]
          %v2100 = vld [vmem:[#allocation3 + $0x30] sm:$0xff]
          %v2101 = vld [vmem:[#allocation3 + $0x38] sm:$0xff]
          %v2102 = vadd.f32 %v2094, %v2075
          %v2103 = vadd.f32 %v2095, %v2077
          %v2104 = vadd.f32 %v2096, %v2080
          %v2105 = vadd.f32 %v2097, %v2082
          %v2106 = vadd.f32 %v2098, %v2085
          %v2107 = vadd.f32 %v2099, %v2087
          %v2108 = vadd.f32 %v2100, %v2090
          %v2109 = vadd.f32 %v2101, %v2092
          %2110 = vst [vmem:[#allocation3] sm:$0xff] %v2102
          %2111 = vst [vmem:[#allocation3 + $0x8] sm:$0xff] %v2103
          %2112 = vst [vmem:[#allocation3 + $0x10] sm:$0xff] %v2104
          %2113 = vst [vmem:[#allocation3 + $0x18] sm:$0xff] %v2105
          %2114 = vst [vmem:[#allocation3 + $0x20] sm:$0xff] %v2106
          %2115 = vst [vmem:[#allocation3 + $0x28] sm:$0xff] %v2107
          %2116 = vst [vmem:[#allocation3 + $0x30] sm:$0xff] %v2108
          %2117 = vst [vmem:[#allocation3 + $0x38] sm:$0xff] %v2109
          %v2118 = vld [vmem:[#allocation3] sm:$0xff]
          %v2119 = vld [vmem:[#allocation3 + $0x8] sm:$0xff]
          %v2120 = vld [vmem:[#allocation3 + $0x10] sm:$0xff]
          %v2121 = vld [vmem:[#allocation3 + $0x18] sm:$0xff]
          %v2122 = vld [vmem:[#allocation3 + $0x20] sm:$0xff]
          %v2123 = vld [vmem:[#allocation3 + $0x28] sm:$0xff]
          %v2124 = vld [vmem:[#allocation3 + $0x30] sm:$0xff]
          %v2125 = vld [vmem:[#allocation3 + $0x38] sm:$0xff]
          %v2126 = vld [vmem:[%s327] sm:$0x1]
          %v2128 = vperm.slane %v2126, 0
          %v2130 = vmul.f32 %v2118, %v2128
          %v2131 = vmul.f32 %v2119, %v2128
          %v2132 = vmul.f32 %v2120, %v2128
          %v2133 = vmul.f32 %v2121, %v2128
          %v2134 = vmul.f32 %v2122, %v2128
          %v2135 = vmul.f32 %v2123, %v2128
          %v2136 = vmul.f32 %v2124, %v2128
          %v2137 = vmul.f32 %v2125, %v2128
          %v2138 = vld [vmem:[%s336] sm:$0x1]
          %v2140 = vperm.slane %v2138, 0
          %v2142 = vadd.f32 %v2130, %v2140
          %v2143 = vadd.f32 %v2131, %v2140
          %v2144 = vadd.f32 %v2132, %v2140
          %v2145 = vadd.f32 %v2133, %v2140
          %v2146 = vadd.f32 %v2134, %v2140
          %v2147 = vadd.f32 %v2135, %v2140
          %v2148 = vadd.f32 %v2136, %v2140
          %v2149 = vadd.f32 %v2137, %v2140
          %v2150 = vmax.f32 %v2142, 0.0
          %v2151 = vmax.f32 %v2143, 0.0
          %v2152 = vmax.f32 %v2144, 0.0
          %v2153 = vmax.f32 %v2145, 0.0
          %v2154 = vmax.f32 %v2146, 0.0
          %v2155 = vmax.f32 %v2147, 0.0
          %v2156 = vmax.f32 %v2148, 0.0
          %v2157 = vmax.f32 %v2149, 0.0
          %v2158 = vpack.c.bf16 %v2150, %v2150
          %v2159 = vpack.c.bf16 %v2151, %v2151
          %v2160 = vpack.c.bf16 %v2152, %v2152
          %v2161 = vpack.c.bf16 %v2153, %v2153
          %v2162 = vpack.c.bf16 %v2154, %v2154
          %v2163 = vpack.c.bf16 %v2155, %v2155
          %v2164 = vpack.c.bf16 %v2156, %v2156
          %v2165 = vpack.c.bf16 %v2157, %v2157
          %v2174 = vrot.slane %v2158, 7
          %v2175 = vrot.slane %v2174, 4
          %v2176 = vrot.slane %v2159, 7
          %v2177 = vrot.slane %v2176, 4
          %v2178 = vrot.slane %v2160, 7
          %v2179 = vrot.slane %v2178, 4
          %v2180 = vrot.slane %v2161, 7
          %v2181 = vrot.slane %v2180, 4
          %v2182 = vrot.slane %v2162, 7
          %v2183 = vrot.slane %v2182, 4
          %v2184 = vrot.slane %v2163, 7
          %v2185 = vrot.slane %v2184, 4
          %v2186 = vrot.slane %v2164, 7
          %v2187 = vrot.slane %v2186, 4
          %v2188 = vrot.slane %v2165, 7
          %v2189 = vrot.slane %v2188, 4
          %2206 = vst [vmem:[%s1024] sm:$0xe] %v2174
          %2207 = vst [vmem:[%s1024 + $0x4] sm:$0x1] %v2175
          %2208 = vst [vmem:[%s1024 + $0x8] sm:$0xe] %v2176
          %2209 = vst [vmem:[%s1024 + $0xc] sm:$0x1] %v2177
          %2210 = vst [vmem:[%s1024 + $0x10] sm:$0xe] %v2178
          %2211 = vst [vmem:[%s1024 + $0x14] sm:$0x1] %v2179
          %2212 = vst [vmem:[%s1024 + $0x18] sm:$0xe] %v2180
          %2213 = vst [vmem:[%s1024 + $0x1c] sm:$0x1] %v2181
          %2214 = vst [vmem:[%s1024 + $0x20] sm:$0xe] %v2182
          %2215 = vst [vmem:[%s1024 + $0x24] sm:$0x1] %v2183
          %2216 = vst [vmem:[%s1024 + $0x28] sm:$0xe] %v2184
          %2217 = vst [vmem:[%s1024 + $0x2c] sm:$0x1] %v2185
          %2218 = vst [vmem:[%s1024 + $0x30] sm:$0xe] %v2186
          %2219 = vst [vmem:[%s1024 + $0x34] sm:$0x1] %v2187
          %2220 = vst [vmem:[%s1024 + $0x38] sm:$0xe] %v2188
          %2221 = vst [vmem:[%s1024 + $0x3c] sm:$0x1] %v2189
        $region68: #{tpu_custom_call.1} parent=39 // pred_fallthru
          _
        %p2222 = scmp.ge.s32.totalorder %s33, 2
        // Predicated region
        $region69: #{tpu_custom_call.1} parent=39 // pred_check
          %p2223 = pneg %p2222
        $region70: #{tpu_custom_call.1} parent=39 // pred_check_branch
          %2225 = sbr.rel (%p2223) target = $region72
        $region71: #{tpu_custom_call.1} parent=39 // pred_region
          %s2226 = scalar_lea.vmem [#allocation2], 8
          %v2227 = vld [vmem:[%s2226] sm:$0xf]
          %v2228 = vld [vmem:[%s2226 + $0x4] sm:$0x1]
          %v2229 = vld [vmem:[%s2226 + $0x8] sm:$0xf]
          %v2230 = vld [vmem:[%s2226 + $0xc] sm:$0x1]
          %v2231 = vld [vmem:[%s2226 + $0x10] sm:$0xf]
          %v2232 = vld [vmem:[%s2226 + $0x14] sm:$0x1]
          %v2233 = vld [vmem:[%s2226 + $0x18] sm:$0xf]
          %v2234 = vld [vmem:[%s2226 + $0x1c] sm:$0x1]
          %v2235 = vld [vmem:[%s2226 + $0x20] sm:$0xf]
          %v2236 = vld [vmem:[%s2226 + $0x24] sm:$0x1]
          %v2237 = vld [vmem:[%s2226 + $0x28] sm:$0xf]
          %v2238 = vld [vmem:[%s2226 + $0x2c] sm:$0x1]
          %v2239 = vld [vmem:[%s2226 + $0x30] sm:$0xf]
          %v2240 = vld [vmem:[%s2226 + $0x34] sm:$0x1]
          %v2241 = vld [vmem:[%s2226 + $0x38] sm:$0xf]
          %v2242 = vld [vmem:[%s2226 + $0x3c] sm:$0x1]
          %vm2243 = vsmask.f32 3328
          %vm2244 = vsmask.f32 7440
          %vm2245 = vmor %vm2243, %vm2244
          %v2247 = vshrl.u32 %v2227, 16
          %v2249 = vrot.slane %v2247, 4
          %v2250 = vshll.u32 %v2227, 16
          %v2252 = vrot.slane %v2250, 5
          %v2253 = vor.u32 %v2249, %v2252
          %v2254 = vrot.slane %v2253, 4
          %v2256 = vshll.u32 %v2228, 16
          %v2258 = vrot.slane %v2256, 5
          %v2259 = vsel %vm2245, %v2254, %v2258
          %v2261 = vshrl.u32 %v2229, 16
          %v2263 = vrot.slane %v2261, 4
          %v2264 = vshll.u32 %v2229, 16
          %v2266 = vrot.slane %v2264, 5
          %v2267 = vor.u32 %v2263, %v2266
          %v2268 = vrot.slane %v2267, 4
          %v2270 = vshll.u32 %v2230, 16
          %v2272 = vrot.slane %v2270, 5
          %v2273 = vsel %vm2245, %v2268, %v2272
          %v2275 = vshrl.u32 %v2231, 16
          %v2277 = vrot.slane %v2275, 4
          %v2278 = vshll.u32 %v2231, 16
          %v2280 = vrot.slane %v2278, 5
          %v2281 = vor.u32 %v2277, %v2280
          %v2282 = vrot.slane %v2281, 4
          %v2284 = vshll.u32 %v2232, 16
          %v2286 = vrot.slane %v2284, 5
          %v2287 = vsel %vm2245, %v2282, %v2286
          %v2289 = vshrl.u32 %v2233, 16
          %v2291 = vrot.slane %v2289, 4
          %v2292 = vshll.u32 %v2233, 16
          %v2294 = vrot.slane %v2292, 5
          %v2295 = vor.u32 %v2291, %v2294
          %v2296 = vrot.slane %v2295, 4
          %v2298 = vshll.u32 %v2234, 16
          %v2300 = vrot.slane %v2298, 5
          %v2301 = vsel %vm2245, %v2296, %v2300
          %v2303 = vshrl.u32 %v2235, 16
          %v2305 = vrot.slane %v2303, 4
          %v2306 = vshll.u32 %v2235, 16
          %v2308 = vrot.slane %v2306, 5
          %v2309 = vor.u32 %v2305, %v2308
          %v2310 = vrot.slane %v2309, 4
          %v2312 = vshll.u32 %v2236, 16
          %v2314 = vrot.slane %v2312, 5
          %v2315 = vsel %vm2245, %v2310, %v2314
          %v2317 = vshrl.u32 %v2237, 16
          %v2319 = vrot.slane %v2317, 4
          %v2320 = vshll.u32 %v2237, 16
          %v2322 = vrot.slane %v2320, 5
          %v2323 = vor.u32 %v2319, %v2322
          %v2324 = vrot.slane %v2323, 4
          %v2326 = vshll.u32 %v2238, 16
          %v2328 = vrot.slane %v2326, 5
          %v2329 = vsel %vm2245, %v2324, %v2328
          %v2331 = vshrl.u32 %v2239, 16
          %v2333 = vrot.slane %v2331, 4
          %v2334 = vshll.u32 %v2239, 16
          %v2336 = vrot.slane %v2334, 5
          %v2337 = vor.u32 %v2333, %v2336
          %v2338 = vrot.slane %v2337, 4
          %v2340 = vshll.u32 %v2240, 16
          %v2342 = vrot.slane %v2340, 5
          %v2343 = vsel %vm2245, %v2338, %v2342
          %v2345 = vshrl.u32 %v2241, 16
          %v2347 = vrot.slane %v2345, 4
          %v2348 = vshll.u32 %v2241, 16
          %v2350 = vrot.slane %v2348, 5
          %v2351 = vor.u32 %v2347, %v2350
          %v2352 = vrot.slane %v2351, 4
          %v2354 = vshll.u32 %v2242, 16
          %v2356 = vrot.slane %v2354, 5
          %v2357 = vsel %vm2245, %v2352, %v2356
          %v2358 = vld [vmem:[%s318] sm:$0xf]
          %v2359 = vld [vmem:[%s318 + $0x4] sm:$0xf]
          %v2360 = vld [vmem:[%s318 + $0x8] sm:$0xf]
          %v2361 = vld [vmem:[%s318 + $0xc] sm:$0xf]
          %v2362 = vld [vmem:[%s318 + $0x10] sm:$0xf]
          %v2363 = vld [vmem:[%s318 + $0x14] sm:$0xf]
          %v2364 = vld [vmem:[%s318 + $0x18] sm:$0xf]
          %v2365 = vld [vmem:[%s318 + $0x1c] sm:$0xf]
          %v2366 = vld [vmem:[%s318 + $0x20] sm:$0xf]
          %v2367 = vld [vmem:[%s318 + $0x24] sm:$0xf]
          %v2368 = vld [vmem:[%s318 + $0x28] sm:$0xf]
          %v2369 = vld [vmem:[%s318 + $0x2c] sm:$0xf]
          %v2370 = vld [vmem:[%s318 + $0x30] sm:$0xf]
          %v2371 = vld [vmem:[%s318 + $0x34] sm:$0xf]
          %v2372 = vld [vmem:[%s318 + $0x38] sm:$0xf]
          %v2373 = vld [vmem:[%s318 + $0x3c] sm:$0xf]
          %v2374 = vunpack.c.l.b16 %v2259
          %v2375 = vunpack.c.l.b16 %v2273
          %v2376 = vunpack.c.l.b16 %v2287
          %v2377 = vunpack.c.l.b16 %v2301
          %v2378 = vunpack.c.l.b16 %v2315
          %v2379 = vunpack.c.l.b16 %v2329
          %v2380 = vunpack.c.l.b16 %v2343
          %v2381 = vunpack.c.l.b16 %v2357
          %v2382 = vpack.c.b16 %v2375, %v2374
          %v2383 = vpack.c.b16 %v2377, %v2376
          %v2384 = vpack.c.b16 %v2379, %v2378
          %v2385 = vpack.c.b16 %v2381, %v2380
          %v2406 = vunpack.c.l.b16 %v2358
          %v2407 = vunpack.c.l.b16 %v2359
          %v2408 = vunpack.c.l.b16 %v2360
          %v2409 = vunpack.c.l.b16 %v2361
          %v2410 = vunpack.c.l.b16 %v2362
          %v2411 = vunpack.c.l.b16 %v2363
          %v2412 = vunpack.c.l.b16 %v2364
          %v2413 = vunpack.c.l.b16 %v2365
          %v2414 = vunpack.c.l.b16 %v2366
          %v2415 = vunpack.c.l.b16 %v2367
          %v2416 = vunpack.c.l.b16 %v2368
          %v2417 = vunpack.c.l.b16 %v2369
          %v2418 = vunpack.c.l.b16 %v2370
          %v2419 = vunpack.c.l.b16 %v2371
          %v2420 = vunpack.c.l.b16 %v2372
          %v2421 = vunpack.c.l.b16 %v2373
          %v2422 = vpack.c.b16 %v2407, %v2406
          %v2423 = vpack.c.b16 %v2409, %v2408
          %v2424 = vpack.c.b16 %v2411, %v2410
          %v2425 = vpack.c.b16 %v2413, %v2412
          %v2426 = vpack.c.b16 %v2415, %v2414
          %v2427 = vpack.c.b16 %v2417, %v2416
          %v2428 = vpack.c.b16 %v2419, %v2418
          %v2429 = vpack.c.b16 %v2421, %v2420
          %2438 = vmatpush.bf16.msra.mxu0 %v2429
          %2439 = vmatpush.bf16.msra.mxu0 %v2428
          %2440 = vmatpush.bf16.msra.mxu0 %v2427
          %2441 = vmatpush.bf16.msra.mxu0 %v2426
          %2442 = vmatpush.bf16.msra.mxu0 %v2425
          %2443 = vmatpush.bf16.msra.mxu0 %v2424
          %2444 = vmatpush.bf16.msra.mxu0 %v2423
          %2445 = vmatpush.bf16.msra.mxu0 %v2422
          %2446 = vmatmul.bf16.gmra.mxu0 %v2382
          %v2447 = vpop.f32.mrf.mxu0
          %v2448 = vadd.f32 0.0, %v2447
          %v2449 = vpop.f32.mrf.mxu0
          %v2450 = vadd.f32 0.0, %v2449
          %2451 = vmatmul.bf16.gmra.mxu0 %v2383
          %v2452 = vpop.f32.mrf.mxu0
          %v2453 = vadd.f32 0.0, %v2452
          %v2454 = vpop.f32.mrf.mxu0
          %v2455 = vadd.f32 0.0, %v2454
          %2456 = vmatmul.bf16.gmra.mxu0 %v2384
          %v2457 = vpop.f32.mrf.mxu0
          %v2458 = vadd.f32 0.0, %v2457
          %v2459 = vpop.f32.mrf.mxu0
          %v2460 = vadd.f32 0.0, %v2459
          %2461 = vmatmul.bf16.gmra.mxu0 %v2385
          %v2462 = vpop.f32.mrf.mxu0
          %v2463 = vadd.f32 0.0, %v2462
          %v2464 = vpop.f32.mrf.mxu0
          %v2465 = vadd.f32 0.0, %v2464
          %2466 = vdwg.mxu0
          %2467 = vst [vmem:[#allocation3] sm:$0xff] %v2448
          %2468 = vst [vmem:[#allocation3 + $0x8] sm:$0xff] %v2450
          %2469 = vst [vmem:[#allocation3 + $0x10] sm:$0xff] %v2453
          %2470 = vst [vmem:[#allocation3 + $0x18] sm:$0xff] %v2455
          %2471 = vst [vmem:[#allocation3 + $0x20] sm:$0xff] %v2458
          %2472 = vst [vmem:[#allocation3 + $0x28] sm:$0xff] %v2460
          %2473 = vst [vmem:[#allocation3 + $0x30] sm:$0xff] %v2463
          %2474 = vst [vmem:[#allocation3 + $0x38] sm:$0xff] %v2465
          %v2475 = vld [vmem:[%s2226] sm:$0xe]
          %v2476 = vld [vmem:[%s2226 + $0x4] sm:$0x1]
          %v2477 = vld [vmem:[%s2226 + $0x8] sm:$0xe]
          %v2478 = vld [vmem:[%s2226 + $0xc] sm:$0x1]
          %v2479 = vld [vmem:[%s2226 + $0x10] sm:$0xe]
          %v2480 = vld [vmem:[%s2226 + $0x14] sm:$0x1]
          %v2481 = vld [vmem:[%s2226 + $0x18] sm:$0xe]
          %v2482 = vld [vmem:[%s2226 + $0x1c] sm:$0x1]
          %v2483 = vld [vmem:[%s2226 + $0x20] sm:$0xe]
          %v2484 = vld [vmem:[%s2226 + $0x24] sm:$0x1]
          %v2485 = vld [vmem:[%s2226 + $0x28] sm:$0xe]
          %v2486 = vld [vmem:[%s2226 + $0x2c] sm:$0x1]
          %v2487 = vld [vmem:[%s2226 + $0x30] sm:$0xe]
          %v2488 = vld [vmem:[%s2226 + $0x34] sm:$0x1]
          %v2489 = vld [vmem:[%s2226 + $0x38] sm:$0xe]
          %v2490 = vld [vmem:[%s2226 + $0x3c] sm:$0x1]
          %vm2507 = vcmask 1042432
          %vm2508 = vcmask 1046532
          %vm2509 = vmor %vm2507, %vm2508
          %v2510 = vrot.slane %v2475, 5
          %v2511 = vrot.slane %v2510, 4
          %v2512 = vrot.slane %v2476, 5
          %v2513 = vsel %vm2509, %v2511, %v2512
          %v2514 = vrot.slane %v2477, 5
          %v2515 = vrot.slane %v2514, 4
          %v2516 = vrot.slane %v2478, 5
          %v2517 = vsel %vm2509, %v2515, %v2516
          %v2518 = vrot.slane %v2479, 5
          %v2519 = vrot.slane %v2518, 4
          %v2520 = vrot.slane %v2480, 5
          %v2521 = vsel %vm2509, %v2519, %v2520
          %v2522 = vrot.slane %v2481, 5
          %v2523 = vrot.slane %v2522, 4
          %v2524 = vrot.slane %v2482, 5
          %v2525 = vsel %vm2509, %v2523, %v2524
          %v2526 = vrot.slane %v2483, 5
          %v2527 = vrot.slane %v2526, 4
          %v2528 = vrot.slane %v2484, 5
          %v2529 = vsel %vm2509, %v2527, %v2528
          %v2530 = vrot.slane %v2485, 5
          %v2531 = vrot.slane %v2530, 4
          %v2532 = vrot.slane %v2486, 5
          %v2533 = vsel %vm2509, %v2531, %v2532
          %v2534 = vrot.slane %v2487, 5
          %v2535 = vrot.slane %v2534, 4
          %v2536 = vrot.slane %v2488, 5
          %v2537 = vsel %vm2509, %v2535, %v2536
          %v2538 = vrot.slane %v2489, 5
          %v2539 = vrot.slane %v2538, 4
          %v2540 = vrot.slane %v2490, 5
          %v2541 = vsel %vm2509, %v2539, %v2540
          %s2542 = scalar_lea.vmem %s318, 64 [#allocation7]
          %v2543 = vld [vmem:[%s2542] sm:$0xf]
          %v2544 = vld [vmem:[%s2542 + $0x4] sm:$0xf]
          %v2545 = vld [vmem:[%s2542 + $0x8] sm:$0xf]
          %v2546 = vld [vmem:[%s2542 + $0xc] sm:$0xf]
          %v2547 = vld [vmem:[%s2542 + $0x10] sm:$0xf]
          %v2548 = vld [vmem:[%s2542 + $0x14] sm:$0xf]
          %v2549 = vld [vmem:[%s2542 + $0x18] sm:$0xf]
          %v2550 = vld [vmem:[%s2542 + $0x1c] sm:$0xf]
          %v2551 = vld [vmem:[%s2542 + $0x20] sm:$0xf]
          %v2552 = vld [vmem:[%s2542 + $0x24] sm:$0xf]
          %v2553 = vld [vmem:[%s2542 + $0x28] sm:$0xf]
          %v2554 = vld [vmem:[%s2542 + $0x2c] sm:$0xf]
          %v2555 = vld [vmem:[%s2542 + $0x30] sm:$0xf]
          %v2556 = vld [vmem:[%s2542 + $0x34] sm:$0xf]
          %v2557 = vld [vmem:[%s2542 + $0x38] sm:$0xf]
          %v2558 = vld [vmem:[%s2542 + $0x3c] sm:$0xf]
          %v2559 = vunpack.c.l.b16 %v2513
          %v2560 = vunpack.c.l.b16 %v2517
          %v2561 = vunpack.c.l.b16 %v2521
          %v2562 = vunpack.c.l.b16 %v2525
          %v2563 = vunpack.c.l.b16 %v2529
          %v2564 = vunpack.c.l.b16 %v2533
          %v2565 = vunpack.c.l.b16 %v2537
          %v2566 = vunpack.c.l.b16 %v2541
          %v2567 = vpack.c.b16 %v2560, %v2559
          %v2568 = vpack.c.b16 %v2562, %v2561
          %v2569 = vpack.c.b16 %v2564, %v2563
          %v2570 = vpack.c.b16 %v2566, %v2565
          %v2591 = vunpack.c.l.b16 %v2543
          %v2592 = vunpack.c.l.b16 %v2544
          %v2593 = vunpack.c.l.b16 %v2545
          %v2594 = vunpack.c.l.b16 %v2546
          %v2595 = vunpack.c.l.b16 %v2547
          %v2596 = vunpack.c.l.b16 %v2548
          %v2597 = vunpack.c.l.b16 %v2549
          %v2598 = vunpack.c.l.b16 %v2550
          %v2599 = vunpack.c.l.b16 %v2551
          %v2600 = vunpack.c.l.b16 %v2552
          %v2601 = vunpack.c.l.b16 %v2553
          %v2602 = vunpack.c.l.b16 %v2554
          %v2603 = vunpack.c.l.b16 %v2555
          %v2604 = vunpack.c.l.b16 %v2556
          %v2605 = vunpack.c.l.b16 %v2557
          %v2606 = vunpack.c.l.b16 %v2558
          %v2607 = vpack.c.b16 %v2592, %v2591
          %v2608 = vpack.c.b16 %v2594, %v2593
          %v2609 = vpack.c.b16 %v2596, %v2595
          %v2610 = vpack.c.b16 %v2598, %v2597
          %v2611 = vpack.c.b16 %v2600, %v2599
          %v2612 = vpack.c.b16 %v2602, %v2601
          %v2613 = vpack.c.b16 %v2604, %v2603
          %v2614 = vpack.c.b16 %v2606, %v2605
          %2623 = vmatpush.bf16.msra.mxu0 %v2614
          %2624 = vmatpush.bf16.msra.mxu0 %v2613
          %2625 = vmatpush.bf16.msra.mxu0 %v2612
          %2626 = vmatpush.bf16.msra.mxu0 %v2611
          %2627 = vmatpush.bf16.msra.mxu0 %v2610
          %2628 = vmatpush.bf16.msra.mxu0 %v2609
          %2629 = vmatpush.bf16.msra.mxu0 %v2608
          %2630 = vmatpush.bf16.msra.mxu0 %v2607
          %2631 = vmatmul.bf16.gmra.mxu0 %v2567
          %v2632 = vpop.f32.mrf.mxu0
          %v2633 = vadd.f32 0.0, %v2632
          %v2634 = vpop.f32.mrf.mxu0
          %v2635 = vadd.f32 0.0, %v2634
          %2636 = vmatmul.bf16.gmra.mxu0 %v2568
          %v2637 = vpop.f32.mrf.mxu0
          %v2638 = vadd.f32 0.0, %v2637
          %v2639 = vpop.f32.mrf.mxu0
          %v2640 = vadd.f32 0.0, %v2639
          %2641 = vmatmul.bf16.gmra.mxu0 %v2569
          %v2642 = vpop.f32.mrf.mxu0
          %v2643 = vadd.f32 0.0, %v2642
          %v2644 = vpop.f32.mrf.mxu0
          %v2645 = vadd.f32 0.0, %v2644
          %2646 = vmatmul.bf16.gmra.mxu0 %v2570
          %v2647 = vpop.f32.mrf.mxu0
          %v2648 = vadd.f32 0.0, %v2647
          %v2649 = vpop.f32.mrf.mxu0
          %v2650 = vadd.f32 0.0, %v2649
          %2651 = vdwg.mxu0
          %v2652 = vld [vmem:[#allocation3] sm:$0xff]
          %v2653 = vld [vmem:[#allocation3 + $0x8] sm:$0xff]
          %v2654 = vld [vmem:[#allocation3 + $0x10] sm:$0xff]
          %v2655 = vld [vmem:[#allocation3 + $0x18] sm:$0xff]
          %v2656 = vld [vmem:[#allocation3 + $0x20] sm:$0xff]
          %v2657 = vld [vmem:[#allocation3 + $0x28] sm:$0xff]
          %v2658 = vld [vmem:[#allocation3 + $0x30] sm:$0xff]
          %v2659 = vld [vmem:[#allocation3 + $0x38] sm:$0xff]
          %v2660 = vadd.f32 %v2652, %v2633
          %v2661 = vadd.f32 %v2653, %v2635
          %v2662 = vadd.f32 %v2654, %v2638
          %v2663 = vadd.f32 %v2655, %v2640
          %v2664 = vadd.f32 %v2656, %v2643
          %v2665 = vadd.f32 %v2657, %v2645
          %v2666 = vadd.f32 %v2658, %v2648
          %v2667 = vadd.f32 %v2659, %v2650
          %2668 = vst [vmem:[#allocation3] sm:$0xff] %v2660
          %2669 = vst [vmem:[#allocation3 + $0x8] sm:$0xff] %v2661
          %2670 = vst [vmem:[#allocation3 + $0x10] sm:$0xff] %v2662
          %2671 = vst [vmem:[#allocation3 + $0x18] sm:$0xff] %v2663
          %2672 = vst [vmem:[#allocation3 + $0x20] sm:$0xff] %v2664
          %2673 = vst [vmem:[#allocation3 + $0x28] sm:$0xff] %v2665
          %2674 = vst [vmem:[#allocation3 + $0x30] sm:$0xff] %v2666
          %2675 = vst [vmem:[#allocation3 + $0x38] sm:$0xff] %v2667
          %v2676 = vld [vmem:[%s2226] sm:$0xe]
          %v2677 = vld [vmem:[%s2226 + $0x4] sm:$0x3]
          %v2678 = vld [vmem:[%s2226 + $0x8] sm:$0xe]
          %v2679 = vld [vmem:[%s2226 + $0xc] sm:$0x3]
          %v2680 = vld [vmem:[%s2226 + $0x10] sm:$0xe]
          %v2681 = vld [vmem:[%s2226 + $0x14] sm:$0x3]
          %v2682 = vld [vmem:[%s2226 + $0x18] sm:$0xe]
          %v2683 = vld [vmem:[%s2226 + $0x1c] sm:$0x3]
          %v2684 = vld [vmem:[%s2226 + $0x20] sm:$0xe]
          %v2685 = vld [vmem:[%s2226 + $0x24] sm:$0x3]
          %v2686 = vld [vmem:[%s2226 + $0x28] sm:$0xe]
          %v2687 = vld [vmem:[%s2226 + $0x2c] sm:$0x3]
          %v2688 = vld [vmem:[%s2226 + $0x30] sm:$0xe]
          %v2689 = vld [vmem:[%s2226 + $0x34] sm:$0x3]
          %v2690 = vld [vmem:[%s2226 + $0x38] sm:$0xe]
          %v2691 = vld [vmem:[%s2226 + $0x3c] sm:$0x3]
          %vm2692 = vsmask.f32 2304
          %vm2693 = vsmask.f32 6416
          %vm2694 = vmor %vm2692, %vm2693
          %v2696 = vshrl.u32 %v2676, 16
          %v2698 = vrot.slane %v2696, 5
          %v2699 = vshll.u32 %v2676, 16
          %v2701 = vrot.slane %v2699, 6
          %v2702 = vor.u32 %v2698, %v2701
          %v2703 = vrot.slane %v2702, 4
          %v2705 = vshrl.u32 %v2677, 16
          %v2707 = vrot.slane %v2705, 5
          %v2708 = vshll.u32 %v2677, 16
          %v2710 = vrot.slane %v2708, 6
          %v2711 = vor.u32 %v2707, %v2710
          %v2712 = vsel %vm2694, %v2703, %v2711
          %v2714 = vshrl.u32 %v2678, 16
          %v2716 = vrot.slane %v2714, 5
          %v2717 = vshll.u32 %v2678, 16
          %v2719 = vrot.slane %v2717, 6
          %v2720 = vor.u32 %v2716, %v2719
          %v2721 = vrot.slane %v2720, 4
          %v2723 = vshrl.u32 %v2679, 16
          %v2725 = vrot.slane %v2723, 5
          %v2726 = vshll.u32 %v2679, 16
          %v2728 = vrot.slane %v2726, 6
          %v2729 = vor.u32 %v2725, %v2728
          %v2730 = vsel %vm2694, %v2721, %v2729
          %v2732 = vshrl.u32 %v2680, 16
          %v2734 = vrot.slane %v2732, 5
          %v2735 = vshll.u32 %v2680, 16
          %v2737 = vrot.slane %v2735, 6
          %v2738 = vor.u32 %v2734, %v2737
          %v2739 = vrot.slane %v2738, 4
          %v2741 = vshrl.u32 %v2681, 16
          %v2743 = vrot.slane %v2741, 5
          %v2744 = vshll.u32 %v2681, 16
          %v2746 = vrot.slane %v2744, 6
          %v2747 = vor.u32 %v2743, %v2746
          %v2748 = vsel %vm2694, %v2739, %v2747
          %v2750 = vshrl.u32 %v2682, 16
          %v2752 = vrot.slane %v2750, 5
          %v2753 = vshll.u32 %v2682, 16
          %v2755 = vrot.slane %v2753, 6
          %v2756 = vor.u32 %v2752, %v2755
          %v2757 = vrot.slane %v2756, 4
          %v2759 = vshrl.u32 %v2683, 16
          %v2761 = vrot.slane %v2759, 5
          %v2762 = vshll.u32 %v2683, 16
          %v2764 = vrot.slane %v2762, 6
          %v2765 = vor.u32 %v2761, %v2764
          %v2766 = vsel %vm2694, %v2757, %v2765
          %v2768 = vshrl.u32 %v2684, 16
          %v2770 = vrot.slane %v2768, 5
          %v2771 = vshll.u32 %v2684, 16
          %v2773 = vrot.slane %v2771, 6
          %v2774 = vor.u32 %v2770, %v2773
          %v2775 = vrot.slane %v2774, 4
          %v2777 = vshrl.u32 %v2685, 16
          %v2779 = vrot.slane %v2777, 5
          %v2780 = vshll.u32 %v2685, 16
          %v2782 = vrot.slane %v2780, 6
          %v2783 = vor.u32 %v2779, %v2782
          %v2784 = vsel %vm2694, %v2775, %v2783
          %v2786 = vshrl.u32 %v2686, 16
          %v2788 = vrot.slane %v2786, 5
          %v2789 = vshll.u32 %v2686, 16
          %v2791 = vrot.slane %v2789, 6
          %v2792 = vor.u32 %v2788, %v2791
          %v2793 = vrot.slane %v2792, 4
          %v2795 = vshrl.u32 %v2687, 16
          %v2797 = vrot.slane %v2795, 5
          %v2798 = vshll.u32 %v2687, 16
          %v2800 = vrot.slane %v2798, 6
          %v2801 = vor.u32 %v2797, %v2800
          %v2802 = vsel %vm2694, %v2793, %v2801
          %v2804 = vshrl.u32 %v2688, 16
          %v2806 = vrot.slane %v2804, 5
          %v2807 = vshll.u32 %v2688, 16
          %v2809 = vrot.slane %v2807, 6
          %v2810 = vor.u32 %v2806, %v2809
          %v2811 = vrot.slane %v2810, 4
          %v2813 = vshrl.u32 %v2689, 16
          %v2815 = vrot.slane %v2813, 5
          %v2816 = vshll.u32 %v2689, 16
          %v2818 = vrot.slane %v2816, 6
          %v2819 = vor.u32 %v2815, %v2818
          %v2820 = vsel %vm2694, %v2811, %v2819
          %v2822 = vshrl.u32 %v2690, 16
          %v2824 = vrot.slane %v2822, 5
          %v2825 = vshll.u32 %v2690, 16
          %v2827 = vrot.slane %v2825, 6
          %v2828 = vor.u32 %v2824, %v2827
          %v2829 = vrot.slane %v2828, 4
          %v2831 = vshrl.u32 %v2691, 16
          %v2833 = vrot.slane %v2831, 5
          %v2834 = vshll.u32 %v2691, 16
          %v2836 = vrot.slane %v2834, 6
          %v2837 = vor.u32 %v2833, %v2836
          %v2838 = vsel %vm2694, %v2829, %v2837
          %s2839 = scalar_lea.vmem %s318, 128 [#allocation7]
          %v2840 = vld [vmem:[%s2839] sm:$0xf]
          %v2841 = vld [vmem:[%s2839 + $0x4] sm:$0xf]
          %v2842 = vld [vmem:[%s2839 + $0x8] sm:$0xf]
          %v2843 = vld [vmem:[%s2839 + $0xc] sm:$0xf]
          %v2844 = vld [vmem:[%s2839 + $0x10] sm:$0xf]
          %v2845 = vld [vmem:[%s2839 + $0x14] sm:$0xf]
          %v2846 = vld [vmem:[%s2839 + $0x18] sm:$0xf]
          %v2847 = vld [vmem:[%s2839 + $0x1c] sm:$0xf]
          %v2848 = vld [vmem:[%s2839 + $0x20] sm:$0xf]
          %v2849 = vld [vmem:[%s2839 + $0x24] sm:$0xf]
          %v2850 = vld [vmem:[%s2839 + $0x28] sm:$0xf]
          %v2851 = vld [vmem:[%s2839 + $0x2c] sm:$0xf]
          %v2852 = vld [vmem:[%s2839 + $0x30] sm:$0xf]
          %v2853 = vld [vmem:[%s2839 + $0x34] sm:$0xf]
          %v2854 = vld [vmem:[%s2839 + $0x38] sm:$0xf]
          %v2855 = vld [vmem:[%s2839 + $0x3c] sm:$0xf]
          %v2856 = vunpack.c.l.b16 %v2712
          %v2857 = vunpack.c.l.b16 %v2730
          %v2858 = vunpack.c.l.b16 %v2748
          %v2859 = vunpack.c.l.b16 %v2766
          %v2860 = vunpack.c.l.b16 %v2784
          %v2861 = vunpack.c.l.b16 %v2802
          %v2862 = vunpack.c.l.b16 %v2820
          %v2863 = vunpack.c.l.b16 %v2838
          %v2864 = vpack.c.b16 %v2857, %v2856
          %v2865 = vpack.c.b16 %v2859, %v2858
          %v2866 = vpack.c.b16 %v2861, %v2860
          %v2867 = vpack.c.b16 %v2863, %v2862
          %v2888 = vunpack.c.l.b16 %v2840
          %v2889 = vunpack.c.l.b16 %v2841
          %v2890 = vunpack.c.l.b16 %v2842
          %v2891 = vunpack.c.l.b16 %v2843
          %v2892 = vunpack.c.l.b16 %v2844
          %v2893 = vunpack.c.l.b16 %v2845
          %v2894 = vunpack.c.l.b16 %v2846
          %v2895 = vunpack.c.l.b16 %v2847
          %v2896 = vunpack.c.l.b16 %v2848
          %v2897 = vunpack.c.l.b16 %v2849
          %v2898 = vunpack.c.l.b16 %v2850
          %v2899 = vunpack.c.l.b16 %v2851
          %v2900 = vunpack.c.l.b16 %v2852
          %v2901 = vunpack.c.l.b16 %v2853
          %v2902 = vunpack.c.l.b16 %v2854
          %v2903 = vunpack.c.l.b16 %v2855
          %v2904 = vpack.c.b16 %v2889, %v2888
          %v2905 = vpack.c.b16 %v2891, %v2890
          %v2906 = vpack.c.b16 %v2893, %v2892
          %v2907 = vpack.c.b16 %v2895, %v2894
          %v2908 = vpack.c.b16 %v2897, %v2896
          %v2909 = vpack.c.b16 %v2899, %v2898
          %v2910 = vpack.c.b16 %v2901, %v2900
          %v2911 = vpack.c.b16 %v2903, %v2902
          %2920 = vmatpush.bf16.msra.mxu0 %v2911
          %2921 = vmatpush.bf16.msra.mxu0 %v2910
          %2922 = vmatpush.bf16.msra.mxu0 %v2909
          %2923 = vmatpush.bf16.msra.mxu0 %v2908
          %2924 = vmatpush.bf16.msra.mxu0 %v2907
          %2925 = vmatpush.bf16.msra.mxu0 %v2906
          %2926 = vmatpush.bf16.msra.mxu0 %v2905
          %2927 = vmatpush.bf16.msra.mxu0 %v2904
          %2928 = vmatmul.bf16.gmra.mxu0 %v2864
          %v2929 = vpop.f32.mrf.mxu0
          %v2930 = vadd.f32 0.0, %v2929
          %v2931 = vpop.f32.mrf.mxu0
          %v2932 = vadd.f32 0.0, %v2931
          %2933 = vmatmul.bf16.gmra.mxu0 %v2865
          %v2934 = vpop.f32.mrf.mxu0
          %v2935 = vadd.f32 0.0, %v2934
          %v2936 = vpop.f32.mrf.mxu0
          %v2937 = vadd.f32 0.0, %v2936
          %2938 = vmatmul.bf16.gmra.mxu0 %v2866
          %v2939 = vpop.f32.mrf.mxu0
          %v2940 = vadd.f32 0.0, %v2939
          %v2941 = vpop.f32.mrf.mxu0
          %v2942 = vadd.f32 0.0, %v2941
          %2943 = vmatmul.bf16.gmra.mxu0 %v2867
          %v2944 = vpop.f32.mrf.mxu0
          %v2945 = vadd.f32 0.0, %v2944
          %v2946 = vpop.f32.mrf.mxu0
          %v2947 = vadd.f32 0.0, %v2946
          %2948 = vdwg.mxu0
          %v2949 = vld [vmem:[#allocation3] sm:$0xff]
          %v2950 = vld [vmem:[#allocation3 + $0x8] sm:$0xff]
          %v2951 = vld [vmem:[#allocation3 + $0x10] sm:$0xff]
          %v2952 = vld [vmem:[#allocation3 + $0x18] sm:$0xff]
          %v2953 = vld [vmem:[#allocation3 + $0x20] sm:$0xff]
          %v2954 = vld [vmem:[#allocation3 + $0x28] sm:$0xff]
          %v2955 = vld [vmem:[#allocation3 + $0x30] sm:$0xff]
          %v2956 = vld [vmem:[#allocation3 + $0x38] sm:$0xff]
          %v2957 = vadd.f32 %v2949, %v2930
          %v2958 = vadd.f32 %v2950, %v2932
          %v2959 = vadd.f32 %v2951, %v2935
          %v2960 = vadd.f32 %v2952, %v2937
          %v2961 = vadd.f32 %v2953, %v2940
          %v2962 = vadd.f32 %v2954, %v2942
          %v2963 = vadd.f32 %v2955, %v2945
          %v2964 = vadd.f32 %v2956, %v2947
          %2965 = vst [vmem:[#allocation3] sm:$0xff] %v2957
          %2966 = vst [vmem:[#allocation3 + $0x8] sm:$0xff] %v2958
          %2967 = vst [vmem:[#allocation3 + $0x10] sm:$0xff] %v2959
          %2968 = vst [vmem:[#allocation3 + $0x18] sm:$0xff] %v2960
          %2969 = vst [vmem:[#allocation3 + $0x20] sm:$0xff] %v2961
          %2970 = vst [vmem:[#allocation3 + $0x28] sm:$0xff] %v2962
          %2971 = vst [vmem:[#allocation3 + $0x30] sm:$0xff] %v2963
          %2972 = vst [vmem:[#allocation3 + $0x38] sm:$0xff] %v2964
          %s2973 = scalar_lea.vmem [#allocation2], 16
          %v2974 = vld [vmem:[%s2973] sm:$0xf]
          %v2975 = vld [vmem:[%s2973 + $0x4] sm:$0x1]
          %v2976 = vld [vmem:[%s2973 + $0x8] sm:$0xf]
          %v2977 = vld [vmem:[%s2973 + $0xc] sm:$0x1]
          %v2978 = vld [vmem:[%s2973 + $0x10] sm:$0xf]
          %v2979 = vld [vmem:[%s2973 + $0x14] sm:$0x1]
          %v2980 = vld [vmem:[%s2973 + $0x18] sm:$0xf]
          %v2981 = vld [vmem:[%s2973 + $0x1c] sm:$0x1]
          %v2982 = vld [vmem:[%s2973 + $0x20] sm:$0xf]
          %v2983 = vld [vmem:[%s2973 + $0x24] sm:$0x1]
          %v2984 = vld [vmem:[%s2973 + $0x28] sm:$0xf]
          %v2985 = vld [vmem:[%s2973 + $0x2c] sm:$0x1]
          %v2986 = vld [vmem:[%s2973 + $0x30] sm:$0xf]
          %v2987 = vld [vmem:[%s2973 + $0x34] sm:$0x1]
          %v2988 = vld [vmem:[%s2973 + $0x38] sm:$0xf]
          %v2989 = vld [vmem:[%s2973 + $0x3c] sm:$0x1]
          %v2991 = vshrl.u32 %v2974, 16
          %v2993 = vrot.slane %v2991, 4
          %v2994 = vshll.u32 %v2974, 16
          %v2996 = vrot.slane %v2994, 5
          %v2997 = vor.u32 %v2993, %v2996
          %v2998 = vrot.slane %v2997, 4
          %v3000 = vshll.u32 %v2975, 16
          %v3002 = vrot.slane %v3000, 5
          %v3003 = vsel %vm2245, %v2998, %v3002
          %v3005 = vshrl.u32 %v2976, 16
          %v3007 = vrot.slane %v3005, 4
          %v3008 = vshll.u32 %v2976, 16
          %v3010 = vrot.slane %v3008, 5
          %v3011 = vor.u32 %v3007, %v3010
          %v3012 = vrot.slane %v3011, 4
          %v3014 = vshll.u32 %v2977, 16
          %v3016 = vrot.slane %v3014, 5
          %v3017 = vsel %vm2245, %v3012, %v3016
          %v3019 = vshrl.u32 %v2978, 16
          %v3021 = vrot.slane %v3019, 4
          %v3022 = vshll.u32 %v2978, 16
          %v3024 = vrot.slane %v3022, 5
          %v3025 = vor.u32 %v3021, %v3024
          %v3026 = vrot.slane %v3025, 4
          %v3028 = vshll.u32 %v2979, 16
          %v3030 = vrot.slane %v3028, 5
          %v3031 = vsel %vm2245, %v3026, %v3030
          %v3033 = vshrl.u32 %v2980, 16
          %v3035 = vrot.slane %v3033, 4
          %v3036 = vshll.u32 %v2980, 16
          %v3038 = vrot.slane %v3036, 5
          %v3039 = vor.u32 %v3035, %v3038
          %v3040 = vrot.slane %v3039, 4
          %v3042 = vshll.u32 %v2981, 16
          %v3044 = vrot.slane %v3042, 5
          %v3045 = vsel %vm2245, %v3040, %v3044
          %v3047 = vshrl.u32 %v2982, 16
          %v3049 = vrot.slane %v3047, 4
          %v3050 = vshll.u32 %v2982, 16
          %v3052 = vrot.slane %v3050, 5
          %v3053 = vor.u32 %v3049, %v3052
          %v3054 = vrot.slane %v3053, 4
          %v3056 = vshll.u32 %v2983, 16
          %v3058 = vrot.slane %v3056, 5
          %v3059 = vsel %vm2245, %v3054, %v3058
          %v3061 = vshrl.u32 %v2984, 16
          %v3063 = vrot.slane %v3061, 4
          %v3064 = vshll.u32 %v2984, 16
          %v3066 = vrot.slane %v3064, 5
          %v3067 = vor.u32 %v3063, %v3066
          %v3068 = vrot.slane %v3067, 4
          %v3070 = vshll.u32 %v2985, 16
          %v3072 = vrot.slane %v3070, 5
          %v3073 = vsel %vm2245, %v3068, %v3072
          %v3075 = vshrl.u32 %v2986, 16
          %v3077 = vrot.slane %v3075, 4
          %v3078 = vshll.u32 %v2986, 16
          %v3080 = vrot.slane %v3078, 5
          %v3081 = vor.u32 %v3077, %v3080
          %v3082 = vrot.slane %v3081, 4
          %v3084 = vshll.u32 %v2987, 16
          %v3086 = vrot.slane %v3084, 5
          %v3087 = vsel %vm2245, %v3082, %v3086
          %v3089 = vshrl.u32 %v2988, 16
          %v3091 = vrot.slane %v3089, 4
          %v3092 = vshll.u32 %v2988, 16
          %v3094 = vrot.slane %v3092, 5
          %v3095 = vor.u32 %v3091, %v3094
          %v3096 = vrot.slane %v3095, 4
          %v3098 = vshll.u32 %v2989, 16
          %v3100 = vrot.slane %v3098, 5
          %v3101 = vsel %vm2245, %v3096, %v3100
          %s3102 = scalar_lea.vmem %s318, 192 [#allocation7]
          %v3103 = vld [vmem:[%s3102] sm:$0xf]
          %v3104 = vld [vmem:[%s3102 + $0x4] sm:$0xf]
          %v3105 = vld [vmem:[%s3102 + $0x8] sm:$0xf]
          %v3106 = vld [vmem:[%s3102 + $0xc] sm:$0xf]
          %v3107 = vld [vmem:[%s3102 + $0x10] sm:$0xf]
          %v3108 = vld [vmem:[%s3102 + $0x14] sm:$0xf]
          %v3109 = vld [vmem:[%s3102 + $0x18] sm:$0xf]
          %v3110 = vld [vmem:[%s3102 + $0x1c] sm:$0xf]
          %v3111 = vld [vmem:[%s3102 + $0x20] sm:$0xf]
          %v3112 = vld [vmem:[%s3102 + $0x24] sm:$0xf]
          %v3113 = vld [vmem:[%s3102 + $0x28] sm:$0xf]
          %v3114 = vld [vmem:[%s3102 + $0x2c] sm:$0xf]
          %v3115 = vld [vmem:[%s3102 + $0x30] sm:$0xf]
          %v3116 = vld [vmem:[%s3102 + $0x34] sm:$0xf]
          %v3117 = vld [vmem:[%s3102 + $0x38] sm:$0xf]
          %v3118 = vld [vmem:[%s3102 + $0x3c] sm:$0xf]
          %v3119 = vunpack.c.l.b16 %v3003
          %v3120 = vunpack.c.l.b16 %v3017
          %v3121 = vunpack.c.l.b16 %v3031
          %v3122 = vunpack.c.l.b16 %v3045
          %v3123 = vunpack.c.l.b16 %v3059
          %v3124 = vunpack.c.l.b16 %v3073
          %v3125 = vunpack.c.l.b16 %v3087
          %v3126 = vunpack.c.l.b16 %v3101
          %v3127 = vpack.c.b16 %v3120, %v3119
          %v3128 = vpack.c.b16 %v3122, %v3121
          %v3129 = vpack.c.b16 %v3124, %v3123
          %v3130 = vpack.c.b16 %v3126, %v3125
          %v3151 = vunpack.c.l.b16 %v3103
          %v3152 = vunpack.c.l.b16 %v3104
          %v3153 = vunpack.c.l.b16 %v3105
          %v3154 = vunpack.c.l.b16 %v3106
          %v3155 = vunpack.c.l.b16 %v3107
          %v3156 = vunpack.c.l.b16 %v3108
          %v3157 = vunpack.c.l.b16 %v3109
          %v3158 = vunpack.c.l.b16 %v3110
          %v3159 = vunpack.c.l.b16 %v3111
          %v3160 = vunpack.c.l.b16 %v3112
          %v3161 = vunpack.c.l.b16 %v3113
          %v3162 = vunpack.c.l.b16 %v3114
          %v3163 = vunpack.c.l.b16 %v3115
          %v3164 = vunpack.c.l.b16 %v3116
          %v3165 = vunpack.c.l.b16 %v3117
          %v3166 = vunpack.c.l.b16 %v3118
          %v3167 = vpack.c.b16 %v3152, %v3151
          %v3168 = vpack.c.b16 %v3154, %v3153
          %v3169 = vpack.c.b16 %v3156, %v3155
          %v3170 = vpack.c.b16 %v3158, %v3157
          %v3171 = vpack.c.b16 %v3160, %v3159
          %v3172 = vpack.c.b16 %v3162, %v3161
          %v3173 = vpack.c.b16 %v3164, %v3163
          %v3174 = vpack.c.b16 %v3166, %v3165
          %3183 = vmatpush.bf16.msra.mxu0 %v3174
          %3184 = vmatpush.bf16.msra.mxu0 %v3173
          %3185 = vmatpush.bf16.msra.mxu0 %v3172
          %3186 = vmatpush.bf16.msra.mxu0 %v3171
          %3187 = vmatpush.bf16.msra.mxu0 %v3170
          %3188 = vmatpush.bf16.msra.mxu0 %v3169
          %3189 = vmatpush.bf16.msra.mxu0 %v3168
          %3190 = vmatpush.bf16.msra.mxu0 %v3167
          %3191 = vmatmul.bf16.gmra.mxu0 %v3127
          %v3192 = vpop.f32.mrf.mxu0
          %v3193 = vadd.f32 0.0, %v3192
          %v3194 = vpop.f32.mrf.mxu0
          %v3195 = vadd.f32 0.0, %v3194
          %3196 = vmatmul.bf16.gmra.mxu0 %v3128
          %v3197 = vpop.f32.mrf.mxu0
          %v3198 = vadd.f32 0.0, %v3197
          %v3199 = vpop.f32.mrf.mxu0
          %v3200 = vadd.f32 0.0, %v3199
          %3201 = vmatmul.bf16.gmra.mxu0 %v3129
          %v3202 = vpop.f32.mrf.mxu0
          %v3203 = vadd.f32 0.0, %v3202
          %v3204 = vpop.f32.mrf.mxu0
          %v3205 = vadd.f32 0.0, %v3204
          %3206 = vmatmul.bf16.gmra.mxu0 %v3130
          %v3207 = vpop.f32.mrf.mxu0
          %v3208 = vadd.f32 0.0, %v3207
          %v3209 = vpop.f32.mrf.mxu0
          %v3210 = vadd.f32 0.0, %v3209
          %3211 = vdwg.mxu0
          %v3212 = vld [vmem:[#allocation3] sm:$0xff]
          %v3213 = vld [vmem:[#allocation3 + $0x8] sm:$0xff]
          %v3214 = vld [vmem:[#allocation3 + $0x10] sm:$0xff]
          %v3215 = vld [vmem:[#allocation3 + $0x18] sm:$0xff]
          %v3216 = vld [vmem:[#allocation3 + $0x20] sm:$0xff]
          %v3217 = vld [vmem:[#allocation3 + $0x28] sm:$0xff]
          %v3218 = vld [vmem:[#allocation3 + $0x30] sm:$0xff]
          %v3219 = vld [vmem:[#allocation3 + $0x38] sm:$0xff]
          %v3220 = vadd.f32 %v3212, %v3193
          %v3221 = vadd.f32 %v3213, %v3195
          %v3222 = vadd.f32 %v3214, %v3198
          %v3223 = vadd.f32 %v3215, %v3200
          %v3224 = vadd.f32 %v3216, %v3203
          %v3225 = vadd.f32 %v3217, %v3205
          %v3226 = vadd.f32 %v3218, %v3208
          %v3227 = vadd.f32 %v3219, %v3210
          %3228 = vst [vmem:[#allocation3] sm:$0xff] %v3220
          %3229 = vst [vmem:[#allocation3 + $0x8] sm:$0xff] %v3221
          %3230 = vst [vmem:[#allocation3 + $0x10] sm:$0xff] %v3222
          %3231 = vst [vmem:[#allocation3 + $0x18] sm:$0xff] %v3223
          %3232 = vst [vmem:[#allocation3 + $0x20] sm:$0xff] %v3224
          %3233 = vst [vmem:[#allocation3 + $0x28] sm:$0xff] %v3225
          %3234 = vst [vmem:[#allocation3 + $0x30] sm:$0xff] %v3226
          %3235 = vst [vmem:[#allocation3 + $0x38] sm:$0xff] %v3227
          %v3236 = vld [vmem:[%s2973] sm:$0xe]
          %v3237 = vld [vmem:[%s2973 + $0x4] sm:$0x1]
          %v3238 = vld [vmem:[%s2973 + $0x8] sm:$0xe]
          %v3239 = vld [vmem:[%s2973 + $0xc] sm:$0x1]
          %v3240 = vld [vmem:[%s2973 + $0x10] sm:$0xe]
          %v3241 = vld [vmem:[%s2973 + $0x14] sm:$0x1]
          %v3242 = vld [vmem:[%s2973 + $0x18] sm:$0xe]
          %v3243 = vld [vmem:[%s2973 + $0x1c] sm:$0x1]
          %v3244 = vld [vmem:[%s2973 + $0x20] sm:$0xe]
          %v3245 = vld [vmem:[%s2973 + $0x24] sm:$0x1]
          %v3246 = vld [vmem:[%s2973 + $0x28] sm:$0xe]
          %v3247 = vld [vmem:[%s2973 + $0x2c] sm:$0x1]
          %v3248 = vld [vmem:[%s2973 + $0x30] sm:$0xe]
          %v3249 = vld [vmem:[%s2973 + $0x34] sm:$0x1]
          %v3250 = vld [vmem:[%s2973 + $0x38] sm:$0xe]
          %v3251 = vld [vmem:[%s2973 + $0x3c] sm:$0x1]
          %v3268 = vrot.slane %v3236, 5
          %v3269 = vrot.slane %v3268, 4
          %v3270 = vrot.slane %v3237, 5
          %v3271 = vsel %vm2509, %v3269, %v3270
          %v3272 = vrot.slane %v3238, 5
          %v3273 = vrot.slane %v3272, 4
          %v3274 = vrot.slane %v3239, 5
          %v3275 = vsel %vm2509, %v3273, %v3274
          %v3276 = vrot.slane %v3240, 5
          %v3277 = vrot.slane %v3276, 4
          %v3278 = vrot.slane %v3241, 5
          %v3279 = vsel %vm2509, %v3277, %v3278
          %v3280 = vrot.slane %v3242, 5
          %v3281 = vrot.slane %v3280, 4
          %v3282 = vrot.slane %v3243, 5
          %v3283 = vsel %vm2509, %v3281, %v3282
          %v3284 = vrot.slane %v3244, 5
          %v3285 = vrot.slane %v3284, 4
          %v3286 = vrot.slane %v3245, 5
          %v3287 = vsel %vm2509, %v3285, %v3286
          %v3288 = vrot.slane %v3246, 5
          %v3289 = vrot.slane %v3288, 4
          %v3290 = vrot.slane %v3247, 5
          %v3291 = vsel %vm2509, %v3289, %v3290
          %v3292 = vrot.slane %v3248, 5
          %v3293 = vrot.slane %v3292, 4
          %v3294 = vrot.slane %v3249, 5
          %v3295 = vsel %vm2509, %v3293, %v3294
          %v3296 = vrot.slane %v3250, 5
          %v3297 = vrot.slane %v3296, 4
          %v3298 = vrot.slane %v3251, 5
          %v3299 = vsel %vm2509, %v3297, %v3298
          %s3300 = scalar_lea.vmem %s318, 256 [#allocation7]
          %v3301 = vld [vmem:[%s3300] sm:$0xf]
          %v3302 = vld [vmem:[%s3300 + $0x4] sm:$0xf]
          %v3303 = vld [vmem:[%s3300 + $0x8] sm:$0xf]
          %v3304 = vld [vmem:[%s3300 + $0xc] sm:$0xf]
          %v3305 = vld [vmem:[%s3300 + $0x10] sm:$0xf]
          %v3306 = vld [vmem:[%s3300 + $0x14] sm:$0xf]
          %v3307 = vld [vmem:[%s3300 + $0x18] sm:$0xf]
          %v3308 = vld [vmem:[%s3300 + $0x1c] sm:$0xf]
          %v3309 = vld [vmem:[%s3300 + $0x20] sm:$0xf]
          %v3310 = vld [vmem:[%s3300 + $0x24] sm:$0xf]
          %v3311 = vld [vmem:[%s3300 + $0x28] sm:$0xf]
          %v3312 = vld [vmem:[%s3300 + $0x2c] sm:$0xf]
          %v3313 = vld [vmem:[%s3300 + $0x30] sm:$0xf]
          %v3314 = vld [vmem:[%s3300 + $0x34] sm:$0xf]
          %v3315 = vld [vmem:[%s3300 + $0x38] sm:$0xf]
          %v3316 = vld [vmem:[%s3300 + $0x3c] sm:$0xf]
          %v3317 = vunpack.c.l.b16 %v3271
          %v3318 = vunpack.c.l.b16 %v3275
          %v3319 = vunpack.c.l.b16 %v3279
          %v3320 = vunpack.c.l.b16 %v3283
          %v3321 = vunpack.c.l.b16 %v3287
          %v3322 = vunpack.c.l.b16 %v3291
          %v3323 = vunpack.c.l.b16 %v3295
          %v3324 = vunpack.c.l.b16 %v3299
          %v3325 = vpack.c.b16 %v3318, %v3317
          %v3326 = vpack.c.b16 %v3320, %v3319
          %v3327 = vpack.c.b16 %v3322, %v3321
          %v3328 = vpack.c.b16 %v3324, %v3323
          %v3349 = vunpack.c.l.b16 %v3301
          %v3350 = vunpack.c.l.b16 %v3302
          %v3351 = vunpack.c.l.b16 %v3303
          %v3352 = vunpack.c.l.b16 %v3304
          %v3353 = vunpack.c.l.b16 %v3305
          %v3354 = vunpack.c.l.b16 %v3306
          %v3355 = vunpack.c.l.b16 %v3307
          %v3356 = vunpack.c.l.b16 %v3308
          %v3357 = vunpack.c.l.b16 %v3309
          %v3358 = vunpack.c.l.b16 %v3310
          %v3359 = vunpack.c.l.b16 %v3311
          %v3360 = vunpack.c.l.b16 %v3312
          %v3361 = vunpack.c.l.b16 %v3313
          %v3362 = vunpack.c.l.b16 %v3314
          %v3363 = vunpack.c.l.b16 %v3315
          %v3364 = vunpack.c.l.b16 %v3316
          %v3365 = vpack.c.b16 %v3350, %v3349
          %v3366 = vpack.c.b16 %v3352, %v3351
          %v3367 = vpack.c.b16 %v3354, %v3353
          %v3368 = vpack.c.b16 %v3356, %v3355
          %v3369 = vpack.c.b16 %v3358, %v3357
          %v3370 = vpack.c.b16 %v3360, %v3359
          %v3371 = vpack.c.b16 %v3362, %v3361
          %v3372 = vpack.c.b16 %v3364, %v3363
          %3381 = vmatpush.bf16.msra.mxu0 %v3372
          %3382 = vmatpush.bf16.msra.mxu0 %v3371
          %3383 = vmatpush.bf16.msra.mxu0 %v3370
          %3384 = vmatpush.bf16.msra.mxu0 %v3369
          %3385 = vmatpush.bf16.msra.mxu0 %v3368
          %3386 = vmatpush.bf16.msra.mxu0 %v3367
          %3387 = vmatpush.bf16.msra.mxu0 %v3366
          %3388 = vmatpush.bf16.msra.mxu0 %v3365
          %3389 = vmatmul.bf16.gmra.mxu0 %v3325
          %v3390 = vpop.f32.mrf.mxu0
          %v3391 = vadd.f32 0.0, %v3390
          %v3392 = vpop.f32.mrf.mxu0
          %v3393 = vadd.f32 0.0, %v3392
          %3394 = vmatmul.bf16.gmra.mxu0 %v3326
          %v3395 = vpop.f32.mrf.mxu0
          %v3396 = vadd.f32 0.0, %v3395
          %v3397 = vpop.f32.mrf.mxu0
          %v3398 = vadd.f32 0.0, %v3397
          %3399 = vmatmul.bf16.gmra.mxu0 %v3327
          %v3400 = vpop.f32.mrf.mxu0
          %v3401 = vadd.f32 0.0, %v3400
          %v3402 = vpop.f32.mrf.mxu0
          %v3403 = vadd.f32 0.0, %v3402
          %3404 = vmatmul.bf16.gmra.mxu0 %v3328
          %v3405 = vpop.f32.mrf.mxu0
          %v3406 = vadd.f32 0.0, %v3405
          %v3407 = vpop.f32.mrf.mxu0
          %v3408 = vadd.f32 0.0, %v3407
          %3409 = vdwg.mxu0
          %v3410 = vld [vmem:[#allocation3] sm:$0xff]
          %v3411 = vld [vmem:[#allocation3 + $0x8] sm:$0xff]
          %v3412 = vld [vmem:[#allocation3 + $0x10] sm:$0xff]
          %v3413 = vld [vmem:[#allocation3 + $0x18] sm:$0xff]
          %v3414 = vld [vmem:[#allocation3 + $0x20] sm:$0xff]
          %v3415 = vld [vmem:[#allocation3 + $0x28] sm:$0xff]
          %v3416 = vld [vmem:[#allocation3 + $0x30] sm:$0xff]
          %v3417 = vld [vmem:[#allocation3 + $0x38] sm:$0xff]
          %v3418 = vadd.f32 %v3410, %v3391
          %v3419 = vadd.f32 %v3411, %v3393
          %v3420 = vadd.f32 %v3412, %v3396
          %v3421 = vadd.f32 %v3413, %v3398
          %v3422 = vadd.f32 %v3414, %v3401
          %v3423 = vadd.f32 %v3415, %v3403
          %v3424 = vadd.f32 %v3416, %v3406
          %v3425 = vadd.f32 %v3417, %v3408
          %3426 = vst [vmem:[#allocation3] sm:$0xff] %v3418
          %3427 = vst [vmem:[#allocation3 + $0x8] sm:$0xff] %v3419
          %3428 = vst [vmem:[#allocation3 + $0x10] sm:$0xff] %v3420
          %3429 = vst [vmem:[#allocation3 + $0x18] sm:$0xff] %v3421
          %3430 = vst [vmem:[#allocation3 + $0x20] sm:$0xff] %v3422
          %3431 = vst [vmem:[#allocation3 + $0x28] sm:$0xff] %v3423
          %3432 = vst [vmem:[#allocation3 + $0x30] sm:$0xff] %v3424
          %3433 = vst [vmem:[#allocation3 + $0x38] sm:$0xff] %v3425
          %v3434 = vld [vmem:[%s2973] sm:$0xe]
          %v3435 = vld [vmem:[%s2973 + $0x4] sm:$0x3]
          %v3436 = vld [vmem:[%s2973 + $0x8] sm:$0xe]
          %v3437 = vld [vmem:[%s2973 + $0xc] sm:$0x3]
          %v3438 = vld [vmem:[%s2973 + $0x10] sm:$0xe]
          %v3439 = vld [vmem:[%s2973 + $0x14] sm:$0x3]
          %v3440 = vld [vmem:[%s2973 + $0x18] sm:$0xe]
          %v3441 = vld [vmem:[%s2973 + $0x1c] sm:$0x3]
          %v3442 = vld [vmem:[%s2973 + $0x20] sm:$0xe]
          %v3443 = vld [vmem:[%s2973 + $0x24] sm:$0x3]
          %v3444 = vld [vmem:[%s2973 + $0x28] sm:$0xe]
          %v3445 = vld [vmem:[%s2973 + $0x2c] sm:$0x3]
          %v3446 = vld [vmem:[%s2973 + $0x30] sm:$0xe]
          %v3447 = vld [vmem:[%s2973 + $0x34] sm:$0x3]
          %v3448 = vld [vmem:[%s2973 + $0x38] sm:$0xe]
          %v3449 = vld [vmem:[%s2973 + $0x3c] sm:$0x3]
          %v3451 = vshrl.u32 %v3434, 16
          %v3453 = vrot.slane %v3451, 5
          %v3454 = vshll.u32 %v3434, 16
          %v3456 = vrot.slane %v3454, 6
          %v3457 = vor.u32 %v3453, %v3456
          %v3458 = vrot.slane %v3457, 4
          %v3460 = vshrl.u32 %v3435, 16
          %v3462 = vrot.slane %v3460, 5
          %v3463 = vshll.u32 %v3435, 16
          %v3465 = vrot.slane %v3463, 6
          %v3466 = vor.u32 %v3462, %v3465
          %v3467 = vsel %vm2694, %v3458, %v3466
          %v3469 = vshrl.u32 %v3436, 16
          %v3471 = vrot.slane %v3469, 5
          %v3472 = vshll.u32 %v3436, 16
          %v3474 = vrot.slane %v3472, 6
          %v3475 = vor.u32 %v3471, %v3474
          %v3476 = vrot.slane %v3475, 4
          %v3478 = vshrl.u32 %v3437, 16
          %v3480 = vrot.slane %v3478, 5
          %v3481 = vshll.u32 %v3437, 16
          %v3483 = vrot.slane %v3481, 6
          %v3484 = vor.u32 %v3480, %v3483
          %v3485 = vsel %vm2694, %v3476, %v3484
          %v3487 = vshrl.u32 %v3438, 16
          %v3489 = vrot.slane %v3487, 5
          %v3490 = vshll.u32 %v3438, 16
          %v3492 = vrot.slane %v3490, 6
          %v3493 = vor.u32 %v3489, %v3492
          %v3494 = vrot.slane %v3493, 4
          %v3496 = vshrl.u32 %v3439, 16
          %v3498 = vrot.slane %v3496, 5
          %v3499 = vshll.u32 %v3439, 16
          %v3501 = vrot.slane %v3499, 6
          %v3502 = vor.u32 %v3498, %v3501
          %v3503 = vsel %vm2694, %v3494, %v3502
          %v3505 = vshrl.u32 %v3440, 16
          %v3507 = vrot.slane %v3505, 5
          %v3508 = vshll.u32 %v3440, 16
          %v3510 = vrot.slane %v3508, 6
          %v3511 = vor.u32 %v3507, %v3510
          %v3512 = vrot.slane %v3511, 4
          %v3514 = vshrl.u32 %v3441, 16
          %v3516 = vrot.slane %v3514, 5
          %v3517 = vshll.u32 %v3441, 16
          %v3519 = vrot.slane %v3517, 6
          %v3520 = vor.u32 %v3516, %v3519
          %v3521 = vsel %vm2694, %v3512, %v3520
          %v3523 = vshrl.u32 %v3442, 16
          %v3525 = vrot.slane %v3523, 5
          %v3526 = vshll.u32 %v3442, 16
          %v3528 = vrot.slane %v3526, 6
          %v3529 = vor.u32 %v3525, %v3528
          %v3530 = vrot.slane %v3529, 4
          %v3532 = vshrl.u32 %v3443, 16
          %v3534 = vrot.slane %v3532, 5
          %v3535 = vshll.u32 %v3443, 16
          %v3537 = vrot.slane %v3535, 6
          %v3538 = vor.u32 %v3534, %v3537
          %v3539 = vsel %vm2694, %v3530, %v3538
          %v3541 = vshrl.u32 %v3444, 16
          %v3543 = vrot.slane %v3541, 5
          %v3544 = vshll.u32 %v3444, 16
          %v3546 = vrot.slane %v3544, 6
          %v3547 = vor.u32 %v3543, %v3546
          %v3548 = vrot.slane %v3547, 4
          %v3550 = vshrl.u32 %v3445, 16
          %v3552 = vrot.slane %v3550, 5
          %v3553 = vshll.u32 %v3445, 16
          %v3555 = vrot.slane %v3553, 6
          %v3556 = vor.u32 %v3552, %v3555
          %v3557 = vsel %vm2694, %v3548, %v3556
          %v3559 = vshrl.u32 %v3446, 16
          %v3561 = vrot.slane %v3559, 5
          %v3562 = vshll.u32 %v3446, 16
          %v3564 = vrot.slane %v3562, 6
          %v3565 = vor.u32 %v3561, %v3564
          %v3566 = vrot.slane %v3565, 4
          %v3568 = vshrl.u32 %v3447, 16
          %v3570 = vrot.slane %v3568, 5
          %v3571 = vshll.u32 %v3447, 16
          %v3573 = vrot.slane %v3571, 6
          %v3574 = vor.u32 %v3570, %v3573
          %v3575 = vsel %vm2694, %v3566, %v3574
          %v3577 = vshrl.u32 %v3448, 16
          %v3579 = vrot.slane %v3577, 5
          %v3580 = vshll.u32 %v3448, 16
          %v3582 = vrot.slane %v3580, 6
          %v3583 = vor.u32 %v3579, %v3582
          %v3584 = vrot.slane %v3583, 4
          %v3586 = vshrl.u32 %v3449, 16
          %v3588 = vrot.slane %v3586, 5
          %v3589 = vshll.u32 %v3449, 16
          %v3591 = vrot.slane %v3589, 6
          %v3592 = vor.u32 %v3588, %v3591
          %v3593 = vsel %vm2694, %v3584, %v3592
          %s3594 = scalar_lea.vmem %s318, 320 [#allocation7]
          %v3595 = vld [vmem:[%s3594] sm:$0xf]
          %v3596 = vld [vmem:[%s3594 + $0x4] sm:$0xf]
          %v3597 = vld [vmem:[%s3594 + $0x8] sm:$0xf]
          %v3598 = vld [vmem:[%s3594 + $0xc] sm:$0xf]
          %v3599 = vld [vmem:[%s3594 + $0x10] sm:$0xf]
          %v3600 = vld [vmem:[%s3594 + $0x14] sm:$0xf]
          %v3601 = vld [vmem:[%s3594 + $0x18] sm:$0xf]
          %v3602 = vld [vmem:[%s3594 + $0x1c] sm:$0xf]
          %v3603 = vld [vmem:[%s3594 + $0x20] sm:$0xf]
          %v3604 = vld [vmem:[%s3594 + $0x24] sm:$0xf]
          %v3605 = vld [vmem:[%s3594 + $0x28] sm:$0xf]
          %v3606 = vld [vmem:[%s3594 + $0x2c] sm:$0xf]
          %v3607 = vld [vmem:[%s3594 + $0x30] sm:$0xf]
          %v3608 = vld [vmem:[%s3594 + $0x34] sm:$0xf]
          %v3609 = vld [vmem:[%s3594 + $0x38] sm:$0xf]
          %v3610 = vld [vmem:[%s3594 + $0x3c] sm:$0xf]
          %v3611 = vunpack.c.l.b16 %v3467
          %v3612 = vunpack.c.l.b16 %v3485
          %v3613 = vunpack.c.l.b16 %v3503
          %v3614 = vunpack.c.l.b16 %v3521
          %v3615 = vunpack.c.l.b16 %v3539
          %v3616 = vunpack.c.l.b16 %v3557
          %v3617 = vunpack.c.l.b16 %v3575
          %v3618 = vunpack.c.l.b16 %v3593
          %v3619 = vpack.c.b16 %v3612, %v3611
          %v3620 = vpack.c.b16 %v3614, %v3613
          %v3621 = vpack.c.b16 %v3616, %v3615
          %v3622 = vpack.c.b16 %v3618, %v3617
          %v3643 = vunpack.c.l.b16 %v3595
          %v3644 = vunpack.c.l.b16 %v3596
          %v3645 = vunpack.c.l.b16 %v3597
          %v3646 = vunpack.c.l.b16 %v3598
          %v3647 = vunpack.c.l.b16 %v3599
          %v3648 = vunpack.c.l.b16 %v3600
          %v3649 = vunpack.c.l.b16 %v3601
          %v3650 = vunpack.c.l.b16 %v3602
          %v3651 = vunpack.c.l.b16 %v3603
          %v3652 = vunpack.c.l.b16 %v3604
          %v3653 = vunpack.c.l.b16 %v3605
          %v3654 = vunpack.c.l.b16 %v3606
          %v3655 = vunpack.c.l.b16 %v3607
          %v3656 = vunpack.c.l.b16 %v3608
          %v3657 = vunpack.c.l.b16 %v3609
          %v3658 = vunpack.c.l.b16 %v3610
          %v3659 = vpack.c.b16 %v3644, %v3643
          %v3660 = vpack.c.b16 %v3646, %v3645
          %v3661 = vpack.c.b16 %v3648, %v3647
          %v3662 = vpack.c.b16 %v3650, %v3649
          %v3663 = vpack.c.b16 %v3652, %v3651
          %v3664 = vpack.c.b16 %v3654, %v3653
          %v3665 = vpack.c.b16 %v3656, %v3655
          %v3666 = vpack.c.b16 %v3658, %v3657
          %3675 = vmatpush.bf16.msra.mxu0 %v3666
          %3676 = vmatpush.bf16.msra.mxu0 %v3665
          %3677 = vmatpush.bf16.msra.mxu0 %v3664
          %3678 = vmatpush.bf16.msra.mxu0 %v3663
          %3679 = vmatpush.bf16.msra.mxu0 %v3662
          %3680 = vmatpush.bf16.msra.mxu0 %v3661
          %3681 = vmatpush.bf16.msra.mxu0 %v3660
          %3682 = vmatpush.bf16.msra.mxu0 %v3659
          %3683 = vmatmul.bf16.gmra.mxu0 %v3619
          %v3684 = vpop.f32.mrf.mxu0
          %v3685 = vadd.f32 0.0, %v3684
          %v3686 = vpop.f32.mrf.mxu0
          %v3687 = vadd.f32 0.0, %v3686
          %3688 = vmatmul.bf16.gmra.mxu0 %v3620
          %v3689 = vpop.f32.mrf.mxu0
          %v3690 = vadd.f32 0.0, %v3689
          %v3691 = vpop.f32.mrf.mxu0
          %v3692 = vadd.f32 0.0, %v3691
          %3693 = vmatmul.bf16.gmra.mxu0 %v3621
          %v3694 = vpop.f32.mrf.mxu0
          %v3695 = vadd.f32 0.0, %v3694
          %v3696 = vpop.f32.mrf.mxu0
          %v3697 = vadd.f32 0.0, %v3696
          %3698 = vmatmul.bf16.gmra.mxu0 %v3622
          %v3699 = vpop.f32.mrf.mxu0
          %v3700 = vadd.f32 0.0, %v3699
          %v3701 = vpop.f32.mrf.mxu0
          %v3702 = vadd.f32 0.0, %v3701
          %3703 = vdwg.mxu0
          %v3704 = vld [vmem:[#allocation3] sm:$0xff]
          %v3705 = vld [vmem:[#allocation3 + $0x8] sm:$0xff]
          %v3706 = vld [vmem:[#allocation3 + $0x10] sm:$0xff]
          %v3707 = vld [vmem:[#allocation3 + $0x18] sm:$0xff]
          %v3708 = vld [vmem:[#allocation3 + $0x20] sm:$0xff]
          %v3709 = vld [vmem:[#allocation3 + $0x28] sm:$0xff]
          %v3710 = vld [vmem:[#allocation3 + $0x30] sm:$0xff]
          %v3711 = vld [vmem:[#allocation3 + $0x38] sm:$0xff]
          %v3712 = vadd.f32 %v3704, %v3685
          %v3713 = vadd.f32 %v3705, %v3687
          %v3714 = vadd.f32 %v3706, %v3690
          %v3715 = vadd.f32 %v3707, %v3692
          %v3716 = vadd.f32 %v3708, %v3695
          %v3717 = vadd.f32 %v3709, %v3697
          %v3718 = vadd.f32 %v3710, %v3700
          %v3719 = vadd.f32 %v3711, %v3702
          %3720 = vst [vmem:[#allocation3] sm:$0xff] %v3712
          %3721 = vst [vmem:[#allocation3 + $0x8] sm:$0xff] %v3713
          %3722 = vst [vmem:[#allocation3 + $0x10] sm:$0xff] %v3714
          %3723 = vst [vmem:[#allocation3 + $0x18] sm:$0xff] %v3715
          %3724 = vst [vmem:[#allocation3 + $0x20] sm:$0xff] %v3716
          %3725 = vst [vmem:[#allocation3 + $0x28] sm:$0xff] %v3717
          %3726 = vst [vmem:[#allocation3 + $0x30] sm:$0xff] %v3718
          %3727 = vst [vmem:[#allocation3 + $0x38] sm:$0xff] %v3719
          %s3728 = scalar_lea.vmem [#allocation2], 24
          %v3729 = vld [vmem:[%s3728] sm:$0xf]
          %v3730 = vld [vmem:[%s3728 + $0x4] sm:$0x1]
          %v3731 = vld [vmem:[%s3728 + $0x8] sm:$0xf]
          %v3732 = vld [vmem:[%s3728 + $0xc] sm:$0x1]
          %v3733 = vld [vmem:[%s3728 + $0x10] sm:$0xf]
          %v3734 = vld [vmem:[%s3728 + $0x14] sm:$0x1]
          %v3735 = vld [vmem:[%s3728 + $0x18] sm:$0xf]
          %v3736 = vld [vmem:[%s3728 + $0x1c] sm:$0x1]
          %v3737 = vld [vmem:[%s3728 + $0x20] sm:$0xf]
          %v3738 = vld [vmem:[%s3728 + $0x24] sm:$0x1]
          %v3739 = vld [vmem:[%s3728 + $0x28] sm:$0xf]
          %v3740 = vld [vmem:[%s3728 + $0x2c] sm:$0x1]
          %v3741 = vld [vmem:[%s3728 + $0x30] sm:$0xf]
          %v3742 = vld [vmem:[%s3728 + $0x34] sm:$0x1]
          %v3743 = vld [vmem:[%s3728 + $0x38] sm:$0xf]
          %v3744 = vld [vmem:[%s3728 + $0x3c] sm:$0x1]
          %v3746 = vshrl.u32 %v3729, 16
          %v3748 = vrot.slane %v3746, 4
          %v3749 = vshll.u32 %v3729, 16
          %v3751 = vrot.slane %v3749, 5
          %v3752 = vor.u32 %v3748, %v3751
          %v3753 = vrot.slane %v3752, 4
          %v3755 = vshll.u32 %v3730, 16
          %v3757 = vrot.slane %v3755, 5
          %v3758 = vsel %vm2245, %v3753, %v3757
          %v3760 = vshrl.u32 %v3731, 16
          %v3762 = vrot.slane %v3760, 4
          %v3763 = vshll.u32 %v3731, 16
          %v3765 = vrot.slane %v3763, 5
          %v3766 = vor.u32 %v3762, %v3765
          %v3767 = vrot.slane %v3766, 4
          %v3769 = vshll.u32 %v3732, 16
          %v3771 = vrot.slane %v3769, 5
          %v3772 = vsel %vm2245, %v3767, %v3771
          %v3774 = vshrl.u32 %v3733, 16
          %v3776 = vrot.slane %v3774, 4
          %v3777 = vshll.u32 %v3733, 16
          %v3779 = vrot.slane %v3777, 5
          %v3780 = vor.u32 %v3776, %v3779
          %v3781 = vrot.slane %v3780, 4
          %v3783 = vshll.u32 %v3734, 16
          %v3785 = vrot.slane %v3783, 5
          %v3786 = vsel %vm2245, %v3781, %v3785
          %v3788 = vshrl.u32 %v3735, 16
          %v3790 = vrot.slane %v3788, 4
          %v3791 = vshll.u32 %v3735, 16
          %v3793 = vrot.slane %v3791, 5
          %v3794 = vor.u32 %v3790, %v3793
          %v3795 = vrot.slane %v3794, 4
          %v3797 = vshll.u32 %v3736, 16
          %v3799 = vrot.slane %v3797, 5
          %v3800 = vsel %vm2245, %v3795, %v3799
          %v3802 = vshrl.u32 %v3737, 16
          %v3804 = vrot.slane %v3802, 4
          %v3805 = vshll.u32 %v3737, 16
          %v3807 = vrot.slane %v3805, 5
          %v3808 = vor.u32 %v3804, %v3807
          %v3809 = vrot.slane %v3808, 4
          %v3811 = vshll.u32 %v3738, 16
          %v3813 = vrot.slane %v3811, 5
          %v3814 = vsel %vm2245, %v3809, %v3813
          %v3816 = vshrl.u32 %v3739, 16
          %v3818 = vrot.slane %v3816, 4
          %v3819 = vshll.u32 %v3739, 16
          %v3821 = vrot.slane %v3819, 5
          %v3822 = vor.u32 %v3818, %v3821
          %v3823 = vrot.slane %v3822, 4
          %v3825 = vshll.u32 %v3740, 16
          %v3827 = vrot.slane %v3825, 5
          %v3828 = vsel %vm2245, %v3823, %v3827
          %v3830 = vshrl.u32 %v3741, 16
          %v3832 = vrot.slane %v3830, 4
          %v3833 = vshll.u32 %v3741, 16
          %v3835 = vrot.slane %v3833, 5
          %v3836 = vor.u32 %v3832, %v3835
          %v3837 = vrot.slane %v3836, 4
          %v3839 = vshll.u32 %v3742, 16
          %v3841 = vrot.slane %v3839, 5
          %v3842 = vsel %vm2245, %v3837, %v3841
          %v3844 = vshrl.u32 %v3743, 16
          %v3846 = vrot.slane %v3844, 4
          %v3847 = vshll.u32 %v3743, 16
          %v3849 = vrot.slane %v3847, 5
          %v3850 = vor.u32 %v3846, %v3849
          %v3851 = vrot.slane %v3850, 4
          %v3853 = vshll.u32 %v3744, 16
          %v3855 = vrot.slane %v3853, 5
          %v3856 = vsel %vm2245, %v3851, %v3855
          %s3857 = scalar_lea.vmem %s318, 384 [#allocation7]
          %v3858 = vld [vmem:[%s3857] sm:$0xf]
          %v3859 = vld [vmem:[%s3857 + $0x4] sm:$0xf]
          %v3860 = vld [vmem:[%s3857 + $0x8] sm:$0xf]
          %v3861 = vld [vmem:[%s3857 + $0xc] sm:$0xf]
          %v3862 = vld [vmem:[%s3857 + $0x10] sm:$0xf]
          %v3863 = vld [vmem:[%s3857 + $0x14] sm:$0xf]
          %v3864 = vld [vmem:[%s3857 + $0x18] sm:$0xf]
          %v3865 = vld [vmem:[%s3857 + $0x1c] sm:$0xf]
          %v3866 = vld [vmem:[%s3857 + $0x20] sm:$0xf]
          %v3867 = vld [vmem:[%s3857 + $0x24] sm:$0xf]
          %v3868 = vld [vmem:[%s3857 + $0x28] sm:$0xf]
          %v3869 = vld [vmem:[%s3857 + $0x2c] sm:$0xf]
          %v3870 = vld [vmem:[%s3857 + $0x30] sm:$0xf]
          %v3871 = vld [vmem:[%s3857 + $0x34] sm:$0xf]
          %v3872 = vld [vmem:[%s3857 + $0x38] sm:$0xf]
          %v3873 = vld [vmem:[%s3857 + $0x3c] sm:$0xf]
          %v3874 = vunpack.c.l.b16 %v3758
          %v3875 = vunpack.c.l.b16 %v3772
          %v3876 = vunpack.c.l.b16 %v3786
          %v3877 = vunpack.c.l.b16 %v3800
          %v3878 = vunpack.c.l.b16 %v3814
          %v3879 = vunpack.c.l.b16 %v3828
          %v3880 = vunpack.c.l.b16 %v3842
          %v3881 = vunpack.c.l.b16 %v3856
          %v3882 = vpack.c.b16 %v3875, %v3874
          %v3883 = vpack.c.b16 %v3877, %v3876
          %v3884 = vpack.c.b16 %v3879, %v3878
          %v3885 = vpack.c.b16 %v3881, %v3880
          %v3906 = vunpack.c.l.b16 %v3858
          %v3907 = vunpack.c.l.b16 %v3859
          %v3908 = vunpack.c.l.b16 %v3860
          %v3909 = vunpack.c.l.b16 %v3861
          %v3910 = vunpack.c.l.b16 %v3862
          %v3911 = vunpack.c.l.b16 %v3863
          %v3912 = vunpack.c.l.b16 %v3864
          %v3913 = vunpack.c.l.b16 %v3865
          %v3914 = vunpack.c.l.b16 %v3866
          %v3915 = vunpack.c.l.b16 %v3867
          %v3916 = vunpack.c.l.b16 %v3868
          %v3917 = vunpack.c.l.b16 %v3869
          %v3918 = vunpack.c.l.b16 %v3870
          %v3919 = vunpack.c.l.b16 %v3871
          %v3920 = vunpack.c.l.b16 %v3872
          %v3921 = vunpack.c.l.b16 %v3873
          %v3922 = vpack.c.b16 %v3907, %v3906
          %v3923 = vpack.c.b16 %v3909, %v3908
          %v3924 = vpack.c.b16 %v3911, %v3910
          %v3925 = vpack.c.b16 %v3913, %v3912
          %v3926 = vpack.c.b16 %v3915, %v3914
          %v3927 = vpack.c.b16 %v3917, %v3916
          %v3928 = vpack.c.b16 %v3919, %v3918
          %v3929 = vpack.c.b16 %v3921, %v3920
          %3938 = vmatpush.bf16.msra.mxu0 %v3929
          %3939 = vmatpush.bf16.msra.mxu0 %v3928
          %3940 = vmatpush.bf16.msra.mxu0 %v3927
          %3941 = vmatpush.bf16.msra.mxu0 %v3926
          %3942 = vmatpush.bf16.msra.mxu0 %v3925
          %3943 = vmatpush.bf16.msra.mxu0 %v3924
          %3944 = vmatpush.bf16.msra.mxu0 %v3923
          %3945 = vmatpush.bf16.msra.mxu0 %v3922
          %3946 = vmatmul.bf16.gmra.mxu0 %v3882
          %v3947 = vpop.f32.mrf.mxu0
          %v3948 = vadd.f32 0.0, %v3947
          %v3949 = vpop.f32.mrf.mxu0
          %v3950 = vadd.f32 0.0, %v3949
          %3951 = vmatmul.bf16.gmra.mxu0 %v3883
          %v3952 = vpop.f32.mrf.mxu0
          %v3953 = vadd.f32 0.0, %v3952
          %v3954 = vpop.f32.mrf.mxu0
          %v3955 = vadd.f32 0.0, %v3954
          %3956 = vmatmul.bf16.gmra.mxu0 %v3884
          %v3957 = vpop.f32.mrf.mxu0
          %v3958 = vadd.f32 0.0, %v3957
          %v3959 = vpop.f32.mrf.mxu0
          %v3960 = vadd.f32 0.0, %v3959
          %3961 = vmatmul.bf16.gmra.mxu0 %v3885
          %v3962 = vpop.f32.mrf.mxu0
          %v3963 = vadd.f32 0.0, %v3962
          %v3964 = vpop.f32.mrf.mxu0
          %v3965 = vadd.f32 0.0, %v3964
          %3966 = vdwg.mxu0
          %v3967 = vld [vmem:[#allocation3] sm:$0xff]
          %v3968 = vld [vmem:[#allocation3 + $0x8] sm:$0xff]
          %v3969 = vld [vmem:[#allocation3 + $0x10] sm:$0xff]
          %v3970 = vld [vmem:[#allocation3 + $0x18] sm:$0xff]
          %v3971 = vld [vmem:[#allocation3 + $0x20] sm:$0xff]
          %v3972 = vld [vmem:[#allocation3 + $0x28] sm:$0xff]
          %v3973 = vld [vmem:[#allocation3 + $0x30] sm:$0xff]
          %v3974 = vld [vmem:[#allocation3 + $0x38] sm:$0xff]
          %v3975 = vadd.f32 %v3967, %v3948
          %v3976 = vadd.f32 %v3968, %v3950
          %v3977 = vadd.f32 %v3969, %v3953
          %v3978 = vadd.f32 %v3970, %v3955
          %v3979 = vadd.f32 %v3971, %v3958
          %v3980 = vadd.f32 %v3972, %v3960
          %v3981 = vadd.f32 %v3973, %v3963
          %v3982 = vadd.f32 %v3974, %v3965
          %3983 = vst [vmem:[#allocation3] sm:$0xff] %v3975
          %3984 = vst [vmem:[#allocation3 + $0x8] sm:$0xff] %v3976
          %3985 = vst [vmem:[#allocation3 + $0x10] sm:$0xff] %v3977
          %3986 = vst [vmem:[#allocation3 + $0x18] sm:$0xff] %v3978
          %3987 = vst [vmem:[#allocation3 + $0x20] sm:$0xff] %v3979
          %3988 = vst [vmem:[#allocation3 + $0x28] sm:$0xff] %v3980
          %3989 = vst [vmem:[#allocation3 + $0x30] sm:$0xff] %v3981
          %3990 = vst [vmem:[#allocation3 + $0x38] sm:$0xff] %v3982
          %v3991 = vld [vmem:[%s3728] sm:$0xe]
          %v3992 = vld [vmem:[%s3728 + $0x4] sm:$0x1]
          %v3993 = vld [vmem:[%s3728 + $0x8] sm:$0xe]
          %v3994 = vld [vmem:[%s3728 + $0xc] sm:$0x1]
          %v3995 = vld [vmem:[%s3728 + $0x10] sm:$0xe]
          %v3996 = vld [vmem:[%s3728 + $0x14] sm:$0x1]
          %v3997 = vld [vmem:[%s3728 + $0x18] sm:$0xe]
          %v3998 = vld [vmem:[%s3728 + $0x1c] sm:$0x1]
          %v3999 = vld [vmem:[%s3728 + $0x20] sm:$0xe]
          %v4000 = vld [vmem:[%s3728 + $0x24] sm:$0x1]
          %v4001 = vld [vmem:[%s3728 + $0x28] sm:$0xe]
          %v4002 = vld [vmem:[%s3728 + $0x2c] sm:$0x1]
          %v4003 = vld [vmem:[%s3728 + $0x30] sm:$0xe]
          %v4004 = vld [vmem:[%s3728 + $0x34] sm:$0x1]
          %v4005 = vld [vmem:[%s3728 + $0x38] sm:$0xe]
          %v4006 = vld [vmem:[%s3728 + $0x3c] sm:$0x1]
          %v4023 = vrot.slane %v3991, 5
          %v4024 = vrot.slane %v4023, 4
          %v4025 = vrot.slane %v3992, 5
          %v4026 = vsel %vm2509, %v4024, %v4025
          %v4027 = vrot.slane %v3993, 5
          %v4028 = vrot.slane %v4027, 4
          %v4029 = vrot.slane %v3994, 5
          %v4030 = vsel %vm2509, %v4028, %v4029
          %v4031 = vrot.slane %v3995, 5
          %v4032 = vrot.slane %v4031, 4
          %v4033 = vrot.slane %v3996, 5
          %v4034 = vsel %vm2509, %v4032, %v4033
          %v4035 = vrot.slane %v3997, 5
          %v4036 = vrot.slane %v4035, 4
          %v4037 = vrot.slane %v3998, 5
          %v4038 = vsel %vm2509, %v4036, %v4037
          %v4039 = vrot.slane %v3999, 5
          %v4040 = vrot.slane %v4039, 4
          %v4041 = vrot.slane %v4000, 5
          %v4042 = vsel %vm2509, %v4040, %v4041
          %v4043 = vrot.slane %v4001, 5
          %v4044 = vrot.slane %v4043, 4
          %v4045 = vrot.slane %v4002, 5
          %v4046 = vsel %vm2509, %v4044, %v4045
          %v4047 = vrot.slane %v4003, 5
          %v4048 = vrot.slane %v4047, 4
          %v4049 = vrot.slane %v4004, 5
          %v4050 = vsel %vm2509, %v4048, %v4049
          %v4051 = vrot.slane %v4005, 5
          %v4052 = vrot.slane %v4051, 4
          %v4053 = vrot.slane %v4006, 5
          %v4054 = vsel %vm2509, %v4052, %v4053
          %s4055 = scalar_lea.vmem %s318, 448 [#allocation7]
          %v4056 = vld [vmem:[%s4055] sm:$0xf]
          %v4057 = vld [vmem:[%s4055 + $0x4] sm:$0xf]
          %v4058 = vld [vmem:[%s4055 + $0x8] sm:$0xf]
          %v4059 = vld [vmem:[%s4055 + $0xc] sm:$0xf]
          %v4060 = vld [vmem:[%s4055 + $0x10] sm:$0xf]
          %v4061 = vld [vmem:[%s4055 + $0x14] sm:$0xf]
          %v4062 = vld [vmem:[%s4055 + $0x18] sm:$0xf]
          %v4063 = vld [vmem:[%s4055 + $0x1c] sm:$0xf]
          %v4064 = vld [vmem:[%s4055 + $0x20] sm:$0xf]
          %v4065 = vld [vmem:[%s4055 + $0x24] sm:$0xf]
          %v4066 = vld [vmem:[%s4055 + $0x28] sm:$0xf]
          %v4067 = vld [vmem:[%s4055 + $0x2c] sm:$0xf]
          %v4068 = vld [vmem:[%s4055 + $0x30] sm:$0xf]
          %v4069 = vld [vmem:[%s4055 + $0x34] sm:$0xf]
          %v4070 = vld [vmem:[%s4055 + $0x38] sm:$0xf]
          %v4071 = vld [vmem:[%s4055 + $0x3c] sm:$0xf]
          %v4072 = vunpack.c.l.b16 %v4026
          %v4073 = vunpack.c.l.b16 %v4030
          %v4074 = vunpack.c.l.b16 %v4034
          %v4075 = vunpack.c.l.b16 %v4038
          %v4076 = vunpack.c.l.b16 %v4042
          %v4077 = vunpack.c.l.b16 %v4046
          %v4078 = vunpack.c.l.b16 %v4050
          %v4079 = vunpack.c.l.b16 %v4054
          %v4080 = vpack.c.b16 %v4073, %v4072
          %v4081 = vpack.c.b16 %v4075, %v4074
          %v4082 = vpack.c.b16 %v4077, %v4076
          %v4083 = vpack.c.b16 %v4079, %v4078
          %v4104 = vunpack.c.l.b16 %v4056
          %v4105 = vunpack.c.l.b16 %v4057
          %v4106 = vunpack.c.l.b16 %v4058
          %v4107 = vunpack.c.l.b16 %v4059
          %v4108 = vunpack.c.l.b16 %v4060
          %v4109 = vunpack.c.l.b16 %v4061
          %v4110 = vunpack.c.l.b16 %v4062
          %v4111 = vunpack.c.l.b16 %v4063
          %v4112 = vunpack.c.l.b16 %v4064
          %v4113 = vunpack.c.l.b16 %v4065
          %v4114 = vunpack.c.l.b16 %v4066
          %v4115 = vunpack.c.l.b16 %v4067
          %v4116 = vunpack.c.l.b16 %v4068
          %v4117 = vunpack.c.l.b16 %v4069
          %v4118 = vunpack.c.l.b16 %v4070
          %v4119 = vunpack.c.l.b16 %v4071
          %v4120 = vpack.c.b16 %v4105, %v4104
          %v4121 = vpack.c.b16 %v4107, %v4106
          %v4122 = vpack.c.b16 %v4109, %v4108
          %v4123 = vpack.c.b16 %v4111, %v4110
          %v4124 = vpack.c.b16 %v4113, %v4112
          %v4125 = vpack.c.b16 %v4115, %v4114
          %v4126 = vpack.c.b16 %v4117, %v4116
          %v4127 = vpack.c.b16 %v4119, %v4118
          %4136 = vmatpush.bf16.msra.mxu0 %v4127
          %4137 = vmatpush.bf16.msra.mxu0 %v4126
          %4138 = vmatpush.bf16.msra.mxu0 %v4125
          %4139 = vmatpush.bf16.msra.mxu0 %v4124
          %4140 = vmatpush.bf16.msra.mxu0 %v4123
          %4141 = vmatpush.bf16.msra.mxu0 %v4122
          %4142 = vmatpush.bf16.msra.mxu0 %v4121
          %4143 = vmatpush.bf16.msra.mxu0 %v4120
          %4144 = vmatmul.bf16.gmra.mxu0 %v4080
          %v4145 = vpop.f32.mrf.mxu0
          %v4146 = vadd.f32 0.0, %v4145
          %v4147 = vpop.f32.mrf.mxu0
          %v4148 = vadd.f32 0.0, %v4147
          %4149 = vmatmul.bf16.gmra.mxu0 %v4081
          %v4150 = vpop.f32.mrf.mxu0
          %v4151 = vadd.f32 0.0, %v4150
          %v4152 = vpop.f32.mrf.mxu0
          %v4153 = vadd.f32 0.0, %v4152
          %4154 = vmatmul.bf16.gmra.mxu0 %v4082
          %v4155 = vpop.f32.mrf.mxu0
          %v4156 = vadd.f32 0.0, %v4155
          %v4157 = vpop.f32.mrf.mxu0
          %v4158 = vadd.f32 0.0, %v4157
          %4159 = vmatmul.bf16.gmra.mxu0 %v4083
          %v4160 = vpop.f32.mrf.mxu0
          %v4161 = vadd.f32 0.0, %v4160
          %v4162 = vpop.f32.mrf.mxu0
          %v4163 = vadd.f32 0.0, %v4162
          %4164 = vdwg.mxu0
          %v4165 = vld [vmem:[#allocation3] sm:$0xff]
          %v4166 = vld [vmem:[#allocation3 + $0x8] sm:$0xff]
          %v4167 = vld [vmem:[#allocation3 + $0x10] sm:$0xff]
          %v4168 = vld [vmem:[#allocation3 + $0x18] sm:$0xff]
          %v4169 = vld [vmem:[#allocation3 + $0x20] sm:$0xff]
          %v4170 = vld [vmem:[#allocation3 + $0x28] sm:$0xff]
          %v4171 = vld [vmem:[#allocation3 + $0x30] sm:$0xff]
          %v4172 = vld [vmem:[#allocation3 + $0x38] sm:$0xff]
          %v4173 = vadd.f32 %v4165, %v4146
          %v4174 = vadd.f32 %v4166, %v4148
          %v4175 = vadd.f32 %v4167, %v4151
          %v4176 = vadd.f32 %v4168, %v4153
          %v4177 = vadd.f32 %v4169, %v4156
          %v4178 = vadd.f32 %v4170, %v4158
          %v4179 = vadd.f32 %v4171, %v4161
          %v4180 = vadd.f32 %v4172, %v4163
          %4181 = vst [vmem:[#allocation3] sm:$0xff] %v4173
          %4182 = vst [vmem:[#allocation3 + $0x8] sm:$0xff] %v4174
          %4183 = vst [vmem:[#allocation3 + $0x10] sm:$0xff] %v4175
          %4184 = vst [vmem:[#allocation3 + $0x18] sm:$0xff] %v4176
          %4185 = vst [vmem:[#allocation3 + $0x20] sm:$0xff] %v4177
          %4186 = vst [vmem:[#allocation3 + $0x28] sm:$0xff] %v4178
          %4187 = vst [vmem:[#allocation3 + $0x30] sm:$0xff] %v4179
          %4188 = vst [vmem:[#allocation3 + $0x38] sm:$0xff] %v4180
          %v4189 = vld [vmem:[%s3728] sm:$0xe]
          %v4190 = vld [vmem:[%s3728 + $0x4] sm:$0x3]
          %v4191 = vld [vmem:[%s3728 + $0x8] sm:$0xe]
          %v4192 = vld [vmem:[%s3728 + $0xc] sm:$0x3]
          %v4193 = vld [vmem:[%s3728 + $0x10] sm:$0xe]
          %v4194 = vld [vmem:[%s3728 + $0x14] sm:$0x3]
          %v4195 = vld [vmem:[%s3728 + $0x18] sm:$0xe]
          %v4196 = vld [vmem:[%s3728 + $0x1c] sm:$0x3]
          %v4197 = vld [vmem:[%s3728 + $0x20] sm:$0xe]
          %v4198 = vld [vmem:[%s3728 + $0x24] sm:$0x3]
          %v4199 = vld [vmem:[%s3728 + $0x28] sm:$0xe]
          %v4200 = vld [vmem:[%s3728 + $0x2c] sm:$0x3]
          %v4201 = vld [vmem:[%s3728 + $0x30] sm:$0xe]
          %v4202 = vld [vmem:[%s3728 + $0x34] sm:$0x3]
          %v4203 = vld [vmem:[%s3728 + $0x38] sm:$0xe]
          %v4204 = vld [vmem:[%s3728 + $0x3c] sm:$0x3]
          %v4206 = vshrl.u32 %v4189, 16
          %v4208 = vrot.slane %v4206, 5
          %v4209 = vshll.u32 %v4189, 16
          %v4211 = vrot.slane %v4209, 6
          %v4212 = vor.u32 %v4208, %v4211
          %v4213 = vrot.slane %v4212, 4
          %v4215 = vshrl.u32 %v4190, 16
          %v4217 = vrot.slane %v4215, 5
          %v4218 = vshll.u32 %v4190, 16
          %v4220 = vrot.slane %v4218, 6
          %v4221 = vor.u32 %v4217, %v4220
          %v4222 = vsel %vm2694, %v4213, %v4221
          %v4224 = vshrl.u32 %v4191, 16
          %v4226 = vrot.slane %v4224, 5
          %v4227 = vshll.u32 %v4191, 16
          %v4229 = vrot.slane %v4227, 6
          %v4230 = vor.u32 %v4226, %v4229
          %v4231 = vrot.slane %v4230, 4
          %v4233 = vshrl.u32 %v4192, 16
          %v4235 = vrot.slane %v4233, 5
          %v4236 = vshll.u32 %v4192, 16
          %v4238 = vrot.slane %v4236, 6
          %v4239 = vor.u32 %v4235, %v4238
          %v4240 = vsel %vm2694, %v4231, %v4239
          %v4242 = vshrl.u32 %v4193, 16
          %v4244 = vrot.slane %v4242, 5
          %v4245 = vshll.u32 %v4193, 16
          %v4247 = vrot.slane %v4245, 6
          %v4248 = vor.u32 %v4244, %v4247
          %v4249 = vrot.slane %v4248, 4
          %v4251 = vshrl.u32 %v4194, 16
          %v4253 = vrot.slane %v4251, 5
          %v4254 = vshll.u32 %v4194, 16
          %v4256 = vrot.slane %v4254, 6
          %v4257 = vor.u32 %v4253, %v4256
          %v4258 = vsel %vm2694, %v4249, %v4257
          %v4260 = vshrl.u32 %v4195, 16
          %v4262 = vrot.slane %v4260, 5
          %v4263 = vshll.u32 %v4195, 16
          %v4265 = vrot.slane %v4263, 6
          %v4266 = vor.u32 %v4262, %v4265
          %v4267 = vrot.slane %v4266, 4
          %v4269 = vshrl.u32 %v4196, 16
          %v4271 = vrot.slane %v4269, 5
          %v4272 = vshll.u32 %v4196, 16
          %v4274 = vrot.slane %v4272, 6
          %v4275 = vor.u32 %v4271, %v4274
          %v4276 = vsel %vm2694, %v4267, %v4275
          %v4278 = vshrl.u32 %v4197, 16
          %v4280 = vrot.slane %v4278, 5
          %v4281 = vshll.u32 %v4197, 16
          %v4283 = vrot.slane %v4281, 6
          %v4284 = vor.u32 %v4280, %v4283
          %v4285 = vrot.slane %v4284, 4
          %v4287 = vshrl.u32 %v4198, 16
          %v4289 = vrot.slane %v4287, 5
          %v4290 = vshll.u32 %v4198, 16
          %v4292 = vrot.slane %v4290, 6
          %v4293 = vor.u32 %v4289, %v4292
          %v4294 = vsel %vm2694, %v4285, %v4293
          %v4296 = vshrl.u32 %v4199, 16
          %v4298 = vrot.slane %v4296, 5
          %v4299 = vshll.u32 %v4199, 16
          %v4301 = vrot.slane %v4299, 6
          %v4302 = vor.u32 %v4298, %v4301
          %v4303 = vrot.slane %v4302, 4
          %v4305 = vshrl.u32 %v4200, 16
          %v4307 = vrot.slane %v4305, 5
          %v4308 = vshll.u32 %v4200, 16
          %v4310 = vrot.slane %v4308, 6
          %v4311 = vor.u32 %v4307, %v4310
          %v4312 = vsel %vm2694, %v4303, %v4311
          %v4314 = vshrl.u32 %v4201, 16
          %v4316 = vrot.slane %v4314, 5
          %v4317 = vshll.u32 %v4201, 16
          %v4319 = vrot.slane %v4317, 6
          %v4320 = vor.u32 %v4316, %v4319
          %v4321 = vrot.slane %v4320, 4
          %v4323 = vshrl.u32 %v4202, 16
          %v4325 = vrot.slane %v4323, 5
          %v4326 = vshll.u32 %v4202, 16
          %v4328 = vrot.slane %v4326, 6
          %v4329 = vor.u32 %v4325, %v4328
          %v4330 = vsel %vm2694, %v4321, %v4329
          %v4332 = vshrl.u32 %v4203, 16
          %v4334 = vrot.slane %v4332, 5
          %v4335 = vshll.u32 %v4203, 16
          %v4337 = vrot.slane %v4335, 6
          %v4338 = vor.u32 %v4334, %v4337
          %v4339 = vrot.slane %v4338, 4
          %v4341 = vshrl.u32 %v4204, 16
          %v4343 = vrot.slane %v4341, 5
          %v4344 = vshll.u32 %v4204, 16
          %v4346 = vrot.slane %v4344, 6
          %v4347 = vor.u32 %v4343, %v4346
          %v4348 = vsel %vm2694, %v4339, %v4347
          %s4349 = scalar_lea.vmem %s318, 512 [#allocation7]
          %v4350 = vld [vmem:[%s4349] sm:$0xf]
          %v4351 = vld [vmem:[%s4349 + $0x4] sm:$0xf]
          %v4352 = vld [vmem:[%s4349 + $0x8] sm:$0xf]
          %v4353 = vld [vmem:[%s4349 + $0xc] sm:$0xf]
          %v4354 = vld [vmem:[%s4349 + $0x10] sm:$0xf]
          %v4355 = vld [vmem:[%s4349 + $0x14] sm:$0xf]
          %v4356 = vld [vmem:[%s4349 + $0x18] sm:$0xf]
          %v4357 = vld [vmem:[%s4349 + $0x1c] sm:$0xf]
          %v4358 = vld [vmem:[%s4349 + $0x20] sm:$0xf]
          %v4359 = vld [vmem:[%s4349 + $0x24] sm:$0xf]
          %v4360 = vld [vmem:[%s4349 + $0x28] sm:$0xf]
          %v4361 = vld [vmem:[%s4349 + $0x2c] sm:$0xf]
          %v4362 = vld [vmem:[%s4349 + $0x30] sm:$0xf]
          %v4363 = vld [vmem:[%s4349 + $0x34] sm:$0xf]
          %v4364 = vld [vmem:[%s4349 + $0x38] sm:$0xf]
          %v4365 = vld [vmem:[%s4349 + $0x3c] sm:$0xf]
          %v4366 = vunpack.c.l.b16 %v4222
          %v4367 = vunpack.c.l.b16 %v4240
          %v4368 = vunpack.c.l.b16 %v4258
          %v4369 = vunpack.c.l.b16 %v4276
          %v4370 = vunpack.c.l.b16 %v4294
          %v4371 = vunpack.c.l.b16 %v4312
          %v4372 = vunpack.c.l.b16 %v4330
          %v4373 = vunpack.c.l.b16 %v4348
          %v4374 = vpack.c.b16 %v4367, %v4366
          %v4375 = vpack.c.b16 %v4369, %v4368
          %v4376 = vpack.c.b16 %v4371, %v4370
          %v4377 = vpack.c.b16 %v4373, %v4372
          %v4398 = vunpack.c.l.b16 %v4350
          %v4399 = vunpack.c.l.b16 %v4351
          %v4400 = vunpack.c.l.b16 %v4352
          %v4401 = vunpack.c.l.b16 %v4353
          %v4402 = vunpack.c.l.b16 %v4354
          %v4403 = vunpack.c.l.b16 %v4355
          %v4404 = vunpack.c.l.b16 %v4356
          %v4405 = vunpack.c.l.b16 %v4357
          %v4406 = vunpack.c.l.b16 %v4358
          %v4407 = vunpack.c.l.b16 %v4359
          %v4408 = vunpack.c.l.b16 %v4360
          %v4409 = vunpack.c.l.b16 %v4361
          %v4410 = vunpack.c.l.b16 %v4362
          %v4411 = vunpack.c.l.b16 %v4363
          %v4412 = vunpack.c.l.b16 %v4364
          %v4413 = vunpack.c.l.b16 %v4365
          %v4414 = vpack.c.b16 %v4399, %v4398
          %v4415 = vpack.c.b16 %v4401, %v4400
          %v4416 = vpack.c.b16 %v4403, %v4402
          %v4417 = vpack.c.b16 %v4405, %v4404
          %v4418 = vpack.c.b16 %v4407, %v4406
          %v4419 = vpack.c.b16 %v4409, %v4408
          %v4420 = vpack.c.b16 %v4411, %v4410
          %v4421 = vpack.c.b16 %v4413, %v4412
          %4430 = vmatpush.bf16.msra.mxu0 %v4421
          %4431 = vmatpush.bf16.msra.mxu0 %v4420
          %4432 = vmatpush.bf16.msra.mxu0 %v4419
          %4433 = vmatpush.bf16.msra.mxu0 %v4418
          %4434 = vmatpush.bf16.msra.mxu0 %v4417
          %4435 = vmatpush.bf16.msra.mxu0 %v4416
          %4436 = vmatpush.bf16.msra.mxu0 %v4415
          %4437 = vmatpush.bf16.msra.mxu0 %v4414
          %4438 = vmatmul.bf16.gmra.mxu0 %v4374
          %v4439 = vpop.f32.mrf.mxu0
          %v4440 = vadd.f32 0.0, %v4439
          %v4441 = vpop.f32.mrf.mxu0
          %v4442 = vadd.f32 0.0, %v4441
          %4443 = vmatmul.bf16.gmra.mxu0 %v4375
          %v4444 = vpop.f32.mrf.mxu0
          %v4445 = vadd.f32 0.0, %v4444
          %v4446 = vpop.f32.mrf.mxu0
          %v4447 = vadd.f32 0.0, %v4446
          %4448 = vmatmul.bf16.gmra.mxu0 %v4376
          %v4449 = vpop.f32.mrf.mxu0
          %v4450 = vadd.f32 0.0, %v4449
          %v4451 = vpop.f32.mrf.mxu0
          %v4452 = vadd.f32 0.0, %v4451
          %4453 = vmatmul.bf16.gmra.mxu0 %v4377
          %v4454 = vpop.f32.mrf.mxu0
          %v4455 = vadd.f32 0.0, %v4454
          %v4456 = vpop.f32.mrf.mxu0
          %v4457 = vadd.f32 0.0, %v4456
          %4458 = vdwg.mxu0
          %v4459 = vld [vmem:[#allocation3] sm:$0xff]
          %v4460 = vld [vmem:[#allocation3 + $0x8] sm:$0xff]
          %v4461 = vld [vmem:[#allocation3 + $0x10] sm:$0xff]
          %v4462 = vld [vmem:[#allocation3 + $0x18] sm:$0xff]
          %v4463 = vld [vmem:[#allocation3 + $0x20] sm:$0xff]
          %v4464 = vld [vmem:[#allocation3 + $0x28] sm:$0xff]
          %v4465 = vld [vmem:[#allocation3 + $0x30] sm:$0xff]
          %v4466 = vld [vmem:[#allocation3 + $0x38] sm:$0xff]
          %v4467 = vadd.f32 %v4459, %v4440
          %v4468 = vadd.f32 %v4460, %v4442
          %v4469 = vadd.f32 %v4461, %v4445
          %v4470 = vadd.f32 %v4462, %v4447
          %v4471 = vadd.f32 %v4463, %v4450
          %v4472 = vadd.f32 %v4464, %v4452
          %v4473 = vadd.f32 %v4465, %v4455
          %v4474 = vadd.f32 %v4466, %v4457
          %4475 = vst [vmem:[#allocation3] sm:$0xff] %v4467
          %4476 = vst [vmem:[#allocation3 + $0x8] sm:$0xff] %v4468
          %4477 = vst [vmem:[#allocation3 + $0x10] sm:$0xff] %v4469
          %4478 = vst [vmem:[#allocation3 + $0x18] sm:$0xff] %v4470
          %4479 = vst [vmem:[#allocation3 + $0x20] sm:$0xff] %v4471
          %4480 = vst [vmem:[#allocation3 + $0x28] sm:$0xff] %v4472
          %4481 = vst [vmem:[#allocation3 + $0x30] sm:$0xff] %v4473
          %4482 = vst [vmem:[#allocation3 + $0x38] sm:$0xff] %v4474
          %v4483 = vld [vmem:[#allocation3] sm:$0xff]
          %v4484 = vld [vmem:[#allocation3 + $0x8] sm:$0xff]
          %v4485 = vld [vmem:[#allocation3 + $0x10] sm:$0xff]
          %v4486 = vld [vmem:[#allocation3 + $0x18] sm:$0xff]
          %v4487 = vld [vmem:[#allocation3 + $0x20] sm:$0xff]
          %v4488 = vld [vmem:[#allocation3 + $0x28] sm:$0xff]
          %v4489 = vld [vmem:[#allocation3 + $0x30] sm:$0xff]
          %v4490 = vld [vmem:[#allocation3 + $0x38] sm:$0xff]
          %v4491 = vld [vmem:[%s327] sm:$0x1]
          %v4493 = vperm.slane %v4491, 0
          %v4495 = vmul.f32 %v4483, %v4493
          %v4496 = vmul.f32 %v4484, %v4493
          %v4497 = vmul.f32 %v4485, %v4493
          %v4498 = vmul.f32 %v4486, %v4493
          %v4499 = vmul.f32 %v4487, %v4493
          %v4500 = vmul.f32 %v4488, %v4493
          %v4501 = vmul.f32 %v4489, %v4493
          %v4502 = vmul.f32 %v4490, %v4493
          %v4503 = vld [vmem:[%s336] sm:$0x1]
          %v4505 = vperm.slane %v4503, 0
          %v4507 = vadd.f32 %v4495, %v4505
          %v4508 = vadd.f32 %v4496, %v4505
          %v4509 = vadd.f32 %v4497, %v4505
          %v4510 = vadd.f32 %v4498, %v4505
          %v4511 = vadd.f32 %v4499, %v4505
          %v4512 = vadd.f32 %v4500, %v4505
          %v4513 = vadd.f32 %v4501, %v4505
          %v4514 = vadd.f32 %v4502, %v4505
          %v4515 = vmax.f32 %v4507, 0.0
          %v4516 = vmax.f32 %v4508, 0.0
          %v4517 = vmax.f32 %v4509, 0.0
          %v4518 = vmax.f32 %v4510, 0.0
          %v4519 = vmax.f32 %v4511, 0.0
          %v4520 = vmax.f32 %v4512, 0.0
          %v4521 = vmax.f32 %v4513, 0.0
          %v4522 = vmax.f32 %v4514, 0.0
          %v4523 = vpack.c.bf16 %v4515, %v4515
          %v4524 = vpack.c.bf16 %v4516, %v4516
          %v4525 = vpack.c.bf16 %v4517, %v4517
          %v4526 = vpack.c.bf16 %v4518, %v4518
          %v4527 = vpack.c.bf16 %v4519, %v4519
          %v4528 = vpack.c.bf16 %v4520, %v4520
          %v4529 = vpack.c.bf16 %v4521, %v4521
          %v4530 = vpack.c.bf16 %v4522, %v4522
          %v4539 = vrot.slane %v4523, 7
          %v4540 = vrot.slane %v4539, 4
          %v4541 = vrot.slane %v4524, 7
          %v4542 = vrot.slane %v4541, 4
          %v4543 = vrot.slane %v4525, 7
          %v4544 = vrot.slane %v4543, 4
          %v4545 = vrot.slane %v4526, 7
          %v4546 = vrot.slane %v4545, 4
          %v4547 = vrot.slane %v4527, 7
          %v4548 = vrot.slane %v4547, 4
          %v4549 = vrot.slane %v4528, 7
          %v4550 = vrot.slane %v4549, 4
          %v4551 = vrot.slane %v4529, 7
          %v4552 = vrot.slane %v4551, 4
          %v4553 = vrot.slane %v4530, 7
          %v4554 = vrot.slane %v4553, 4
          %4571 = vst [vmem:[%s2973] sm:$0xe] %v4539
          %4572 = vst [vmem:[%s2973 + $0x4] sm:$0x1] %v4540
          %4573 = vst [vmem:[%s2973 + $0x8] sm:$0xe] %v4541
          %4574 = vst [vmem:[%s2973 + $0xc] sm:$0x1] %v4542
          %4575 = vst [vmem:[%s2973 + $0x10] sm:$0xe] %v4543
          %4576 = vst [vmem:[%s2973 + $0x14] sm:$0x1] %v4544
          %4577 = vst [vmem:[%s2973 + $0x18] sm:$0xe] %v4545
          %4578 = vst [vmem:[%s2973 + $0x1c] sm:$0x1] %v4546
          %4579 = vst [vmem:[%s2973 + $0x20] sm:$0xe] %v4547
          %4580 = vst [vmem:[%s2973 + $0x24] sm:$0x1] %v4548
          %4581 = vst [vmem:[%s2973 + $0x28] sm:$0xe] %v4549
          %4582 = vst [vmem:[%s2973 + $0x2c] sm:$0x1] %v4550
          %4583 = vst [vmem:[%s2973 + $0x30] sm:$0xe] %v4551
          %4584 = vst [vmem:[%s2973 + $0x34] sm:$0x1] %v4552
          %4585 = vst [vmem:[%s2973 + $0x38] sm:$0xe] %v4553
          %4586 = vst [vmem:[%s2973 + $0x3c] sm:$0x1] %v4554
        $region72: #{tpu_custom_call.1} parent=39 // pred_fallthru
          _
        %p4587 = scmp.eq.s32.totalorder %s33, 3
        // Predicated region
        $region73: #{tpu_custom_call.1} parent=39 // pred_check
          %p4588 = pneg %p4587
        $region74: #{tpu_custom_call.1} parent=39 // pred_check_branch
          %4590 = sbr.rel (%p4588) target = $region76
        $region75: #{tpu_custom_call.1} parent=39 // pred_region
          %s4591 = scalar_lea.vmem [#allocation2], 16
          %v4592 = vld [vmem:[%s4591] sm:$0xe]
          %v4593 = vld [vmem:[%s4591 + $0x4] sm:$0x1]
          %v4594 = vld [vmem:[%s4591 + $0x8] sm:$0xe]
          %v4595 = vld [vmem:[%s4591 + $0xc] sm:$0x1]
          %v4596 = vld [vmem:[%s4591 + $0x10] sm:$0xe]
          %v4597 = vld [vmem:[%s4591 + $0x14] sm:$0x1]
          %v4598 = vld [vmem:[%s4591 + $0x18] sm:$0xe]
          %v4599 = vld [vmem:[%s4591 + $0x1c] sm:$0x1]
          %v4600 = vld [vmem:[%s4591 + $0x20] sm:$0xe]
          %v4601 = vld [vmem:[%s4591 + $0x24] sm:$0x1]
          %v4602 = vld [vmem:[%s4591 + $0x28] sm:$0xe]
          %v4603 = vld [vmem:[%s4591 + $0x2c] sm:$0x1]
          %v4604 = vld [vmem:[%s4591 + $0x30] sm:$0xe]
          %v4605 = vld [vmem:[%s4591 + $0x34] sm:$0x1]
          %v4606 = vld [vmem:[%s4591 + $0x38] sm:$0xe]
          %v4607 = vld [vmem:[%s4591 + $0x3c] sm:$0x1]
          %vm4624 = vcmask 1042432
          %vm4625 = vcmask 1046532
          %vm4626 = vmor %vm4624, %vm4625
          %v4627 = vrot.slane %v4592, 5
          %v4628 = vrot.slane %v4627, 4
          %v4629 = vrot.slane %v4593, 5
          %v4630 = vsel %vm4626, %v4628, %v4629
          %v4631 = vrot.slane %v4594, 5
          %v4632 = vrot.slane %v4631, 4
          %v4633 = vrot.slane %v4595, 5
          %v4634 = vsel %vm4626, %v4632, %v4633
          %v4635 = vrot.slane %v4596, 5
          %v4636 = vrot.slane %v4635, 4
          %v4637 = vrot.slane %v4597, 5
          %v4638 = vsel %vm4626, %v4636, %v4637
          %v4639 = vrot.slane %v4598, 5
          %v4640 = vrot.slane %v4639, 4
          %v4641 = vrot.slane %v4599, 5
          %v4642 = vsel %vm4626, %v4640, %v4641
          %v4643 = vrot.slane %v4600, 5
          %v4644 = vrot.slane %v4643, 4
          %v4645 = vrot.slane %v4601, 5
          %v4646 = vsel %vm4626, %v4644, %v4645
          %v4647 = vrot.slane %v4602, 5
          %v4648 = vrot.slane %v4647, 4
          %v4649 = vrot.slane %v4603, 5
          %v4650 = vsel %vm4626, %v4648, %v4649
          %v4651 = vrot.slane %v4604, 5
          %v4652 = vrot.slane %v4651, 4
          %v4653 = vrot.slane %v4605, 5
          %v4654 = vsel %vm4626, %v4652, %v4653
          %v4655 = vrot.slane %v4606, 5
          %v4656 = vrot.slane %v4655, 4
          %v4657 = vrot.slane %v4607, 5
          %v4658 = vsel %vm4626, %v4656, %v4657
          %v4659 = vld [vmem:[#allocation12] sm:$0xf]
          %v4660 = vld [vmem:[#allocation12 + $0x4] sm:$0xf]
          %v4661 = vld [vmem:[#allocation12 + $0x8] sm:$0xf]
          %v4662 = vld [vmem:[#allocation12 + $0xc] sm:$0xf]
          %v4663 = vld [vmem:[#allocation12 + $0x10] sm:$0xf]
          %v4664 = vld [vmem:[#allocation12 + $0x14] sm:$0xf]
          %v4665 = vld [vmem:[#allocation12 + $0x18] sm:$0xf]
          %v4666 = vld [vmem:[#allocation12 + $0x1c] sm:$0xf]
          %v4667 = vld [vmem:[#allocation12 + $0x20] sm:$0xf]
          %v4668 = vld [vmem:[#allocation12 + $0x24] sm:$0xf]
          %v4669 = vld [vmem:[#allocation12 + $0x28] sm:$0xf]
          %v4670 = vld [vmem:[#allocation12 + $0x2c] sm:$0xf]
          %v4671 = vld [vmem:[#allocation12 + $0x30] sm:$0xf]
          %v4672 = vld [vmem:[#allocation12 + $0x34] sm:$0xf]
          %v4673 = vld [vmem:[#allocation12 + $0x38] sm:$0xf]
          %v4674 = vld [vmem:[#allocation12 + $0x3c] sm:$0xf]
          %v4675 = vunpack.c.l.b16 %v4630
          %v4676 = vunpack.c.l.b16 %v4634
          %v4677 = vunpack.c.l.b16 %v4638
          %v4678 = vunpack.c.l.b16 %v4642
          %v4679 = vunpack.c.l.b16 %v4646
          %v4680 = vunpack.c.l.b16 %v4650
          %v4681 = vunpack.c.l.b16 %v4654
          %v4682 = vunpack.c.l.b16 %v4658
          %v4683 = vpack.c.b16 %v4676, %v4675
          %v4684 = vpack.c.b16 %v4678, %v4677
          %v4685 = vpack.c.b16 %v4680, %v4679
          %v4686 = vpack.c.b16 %v4682, %v4681
          %v4707 = vunpack.c.l.b16 %v4659
          %v4708 = vunpack.c.l.b16 %v4660
          %v4709 = vunpack.c.l.b16 %v4661
          %v4710 = vunpack.c.l.b16 %v4662
          %v4711 = vunpack.c.l.b16 %v4663
          %v4712 = vunpack.c.l.b16 %v4664
          %v4713 = vunpack.c.l.b16 %v4665
          %v4714 = vunpack.c.l.b16 %v4666
          %v4715 = vunpack.c.l.b16 %v4667
          %v4716 = vunpack.c.l.b16 %v4668
          %v4717 = vunpack.c.l.b16 %v4669
          %v4718 = vunpack.c.l.b16 %v4670
          %v4719 = vunpack.c.l.b16 %v4671
          %v4720 = vunpack.c.l.b16 %v4672
          %v4721 = vunpack.c.l.b16 %v4673
          %v4722 = vunpack.c.l.b16 %v4674
          %v4723 = vpack.c.b16 %v4708, %v4707
          %v4724 = vpack.c.b16 %v4710, %v4709
          %v4725 = vpack.c.b16 %v4712, %v4711
          %v4726 = vpack.c.b16 %v4714, %v4713
          %v4727 = vpack.c.b16 %v4716, %v4715
          %v4728 = vpack.c.b16 %v4718, %v4717
          %v4729 = vpack.c.b16 %v4720, %v4719
          %v4730 = vpack.c.b16 %v4722, %v4721
          %4739 = vmatpush.bf16.msra.mxu0 %v4730
          %4740 = vmatpush.bf16.msra.mxu0 %v4729
          %4741 = vmatpush.bf16.msra.mxu0 %v4728
          %4742 = vmatpush.bf16.msra.mxu0 %v4727
          %4743 = vmatpush.bf16.msra.mxu0 %v4726
          %4744 = vmatpush.bf16.msra.mxu0 %v4725
          %4745 = vmatpush.bf16.msra.mxu0 %v4724
          %4746 = vmatpush.bf16.msra.mxu0 %v4723
          %4747 = vmatmul.bf16.gmra.mxu0 %v4683
          %v4748 = vpop.f32.mrf.mxu0
          %v4749 = vadd.f32 0.0, %v4748
          %v4750 = vpop.f32.mrf.mxu0
          %v4751 = vadd.f32 0.0, %v4750
          %4752 = vmatmul.bf16.gmra.mxu0 %v4684
          %v4753 = vpop.f32.mrf.mxu0
          %v4754 = vadd.f32 0.0, %v4753
          %v4755 = vpop.f32.mrf.mxu0
          %v4756 = vadd.f32 0.0, %v4755
          %4757 = vmatmul.bf16.gmra.mxu0 %v4685
          %v4758 = vpop.f32.mrf.mxu0
          %v4759 = vadd.f32 0.0, %v4758
          %v4760 = vpop.f32.mrf.mxu0
          %v4761 = vadd.f32 0.0, %v4760
          %4762 = vmatmul.bf16.gmra.mxu0 %v4686
          %v4763 = vpop.f32.mrf.mxu0
          %v4764 = vadd.f32 0.0, %v4763
          %v4765 = vpop.f32.mrf.mxu0
          %v4766 = vadd.f32 0.0, %v4765
          %4767 = vdwg.mxu0
          %v4768 = vpack.c.bf16 %v4749, %v4749
          %v4769 = vpack.c.bf16 %v4751, %v4751
          %v4770 = vpack.c.bf16 %v4754, %v4754
          %v4771 = vpack.c.bf16 %v4756, %v4756
          %v4772 = vpack.c.bf16 %v4759, %v4759
          %v4773 = vpack.c.bf16 %v4761, %v4761
          %v4774 = vpack.c.bf16 %v4764, %v4764
          %v4775 = vpack.c.bf16 %v4766, %v4766
          %4776 = vst [vmem:[%s381] sm:$0xf] %v4768
          %4777 = vst [vmem:[%s381 + $0x4] sm:$0xf] %v4769
          %4778 = vst [vmem:[%s381 + $0x8] sm:$0xf] %v4770
          %4779 = vst [vmem:[%s381 + $0xc] sm:$0xf] %v4771
          %4780 = vst [vmem:[%s381 + $0x10] sm:$0xf] %v4772
          %4781 = vst [vmem:[%s381 + $0x14] sm:$0xf] %v4773
          %4782 = vst [vmem:[%s381 + $0x18] sm:$0xf] %v4774
          %4783 = vst [vmem:[%s381 + $0x1c] sm:$0xf] %v4775
        $region76: #{tpu_custom_call.1} parent=39 // pred_fallthru
          _
        %s4784 = sand.u32 %s173, 1
        %s4785 = scalar_lea.sflag [#allocation6], %s4784
        %s4786 = sand.u32 %s173, 1
        %s4787 = smul.addr %s4786, 32
        %s4788 = scalar_lea.vmem [#allocation13], %s4787
        // Predicated region
        $region77: #{tpu_custom_call.1} parent=39 // pred_check
          %p4789 = pneg %p183
        $region78: #{tpu_custom_call.1} parent=39 // pred_check_branch
          %4791 = sbr.rel (%p4789) target = $region80
        $region79: #{tpu_custom_call.1} parent=39 // pred_region
          %4793 = vsyncadd %s4785, 0
          %s4794 = smul.addr %s32, 8
          %s4795 = smul.addr %s4794, 4
          %s4796 = scalar_lea.hbm %s5, %s4795
          %s4797 = sshll.u32 %s4788, 4
          %s4798 = int_to_ptr.vmem [resolvable:$true] %s4797
          %s4799 = sshll.u32 %s4796, 4
          %s4800 = int_to_ptr.hbm [resolvable:$true] %s4799
          %4805 = dma.vmem_to_hbm [thread:$0]  %s4798, 512, %s4800, %s4785, 64, 64, 4
        $region80: #{tpu_custom_call.1} parent=39 // pred_fallthru
          _
      $region40: #{tpu_custom_call.1} parent=5 // pred_fallthru
        _
      %p4806 = scmp.le.s32.totalorder 2, %s23
      // Predicated region
      $region81: #{tpu_custom_call.1} parent=5 // pred_check
        %p4807 = pneg %p4806
      $region82: #{tpu_custom_call.1} parent=5 // pred_check_branch
        %4809 = sbr.rel (%p4807) target = $region84
      $region83: #{tpu_custom_call.1} parent=5 // pred_region
        %s4810 = ssub.s32 %s23, 2
        // Predicated region
        $region85: #{tpu_custom_call.1} parent=83 // pred_check
          %p4811 = pneg %p189
        $region86: #{tpu_custom_call.1} parent=83 // pred_check_branch
          %4813 = sbr.rel (%p4811) target = $region88
        $region87: #{tpu_custom_call.1} parent=83 // pred_region
          %s4814 = sand.u32 %s174, 1
          %s4815 = scalar_lea.sflag [#allocation6], %s4814
          %s4816 = sand.u32 %s174, 1
          %s4817 = smul.addr %s4816, 32
          %s4818 = scalar_lea.vmem [#allocation13], %s4817
          %4820 = dma.done %s4815, 512
        $region88: #{tpu_custom_call.1} parent=83 // pred_fallthru
          _
      $region84: #{tpu_custom_call.1} parent=5 // pred_fallthru
        _
    $region6: #{tpu_custom_call.1} parent=1 // loop_footer
      %s27 = sadd.s32 1, %s23
    $region7: #{tpu_custom_call.1} parent=1 // loop_footer_branch
      %22 = sbr.rel target = $region3
    $region8: #{tpu_custom_call.1} parent=1 // loop_exit
      _
    %4821 = vsyncpa [#allocation5], 1
    %s4822 = scalar_lea.sflag [#allocation5], 1
    %4823 = vsyncpa %s4822, 1
    %4824 = vsyncpa [#allocation8], 1
    %s4825 = scalar_lea.sflag [#allocation8], 1
    %4826 = vsyncpa %s4825, 1
    %4827 = vsyncpa [#allocation11], 1
    %s4828 = scalar_lea.sflag [#allocation11], 1
    %4829 = vsyncpa %s4828, 1
    %4830 = vsyncpa [#allocation6], 1
    %s4831 = scalar_lea.sflag [#allocation6], 1
    %4832 = vsyncpa %s4831, 1

</llo_original>
